<compile_context>
chip_gen: v6e
topology: v6e:2x2x1
jax: 0.10.0
libtpu: 0.0.40
codegen_flags: <defaults>
</compile_context>

<pallas_src>
import functools

import jax
import jax.numpy as jnp
from jax.experimental import pallas as pl
from jax.experimental.pallas import tpu as pltpu

KS, STRIDE, PAD = 4, 2, 1
BN_EPS = 1e-5
LRELU_SLOPE = 0.2


# ----------------------------------------------------------------------------
# XLA glue: im2col in channel-major layout.
# Activations are carried as (C, N, H, W); the patch matrix is (K, M) with
#   K = C*KS*KS   (index order ci, kh, kw  -- matches PyTorch weight.reshape)
#   M = N*OH*OW   (index order n, oh, ow)
# so the conv matmul is W(Cout,K) @ P(K,M) -> Y(Cout,M): the lane axis of every
# Pallas load/store is M, which is >=128 for the big layers (dense stores).
# ----------------------------------------------------------------------------
def _im2col_cf(x):
    c, n, h, w = x.shape
    oh = (h + 2 * PAD - KS) // STRIDE + 1
    ow = (w + 2 * PAD - KS) // STRIDE + 1
    xp = jnp.pad(x, ((0, 0), (0, 0), (PAD, PAD), (PAD, PAD)))
    taps = []
    for i in range(KS):
        for j in range(KS):
            taps.append(xp[:, :, i:i + oh * STRIDE:STRIDE,
                           j:j + ow * STRIDE:STRIDE])
    p = jnp.stack(taps, axis=1)                       # (C, KS*KS, N, OH, OW)
    return p.reshape(c * KS * KS, n * oh * ow), oh, ow


# ----------------------------------------------------------------------------
# Kernel 1: fused conv(matmul) + bias + BatchNorm (batch stats) + LeakyReLU.
# Everything for one layer fits in VMEM, so a single grid step computes the
# matmul, reduces per-channel mean/var over the lane axis, normalizes, applies
# the affine and the LeakyReLU, and writes only the bf16 activation to HBM.
# ----------------------------------------------------------------------------
def _block_kernel(p_ref, w_ref, b_ref, g_ref, be_ref, o_ref, *, inv_m):
    # Conv as matmul on the MXU: bf16 inputs, f32 accumulation.
    y = jnp.dot(w_ref[...], p_ref[...], preferred_element_type=jnp.float32)
    y = y + b_ref[...]                                   # (Cout, M) f32
    # Training-mode BatchNorm2d stats (biased variance), centered two-pass.
    mean = jnp.sum(y, axis=1, keepdims=True) * inv_m
    yc = y - mean
    var = jnp.sum(yc * yc, axis=1, keepdims=True) * inv_m
    scale = g_ref[...] * jax.lax.rsqrt(var + BN_EPS)     # EUP rsqrt
    z = yc * scale + be_ref[...]
    o_ref[...] = jnp.where(z >= 0, z, LRELU_SLOPE * z).astype(o_ref.dtype)


def _fused_block(patches, w, b, g, be):
    k, m = patches.shape
    cout = w.shape[0]
    kern = functools.partial(_block_kernel, inv_m=1.0 / m)
    return pl.pallas_call(
        kern,
        out_shape=jax.ShapeDtypeStruct((cout, m), jnp.bfloat16),
        grid_spec=pltpu.PrefetchScalarGridSpec(
            num_scalar_prefetch=0,
            grid=(1,),
            in_specs=[pl.BlockSpec((k, m), lambda i: (0, 0)),
                      pl.BlockSpec((cout, k), lambda i: (0, 0)),
                      pl.BlockSpec((cout, 1), lambda i: (0, 0)),
                      pl.BlockSpec((cout, 1), lambda i: (0, 0)),
                      pl.BlockSpec((cout, 1), lambda i: (0, 0))],
            out_specs=pl.BlockSpec((cout, m), lambda i: (0, 0))),
        compiler_params=pltpu.CompilerParams(
            dimension_semantics=("arbitrary",)),
    )(patches, w, b, g, be)


# ----------------------------------------------------------------------------
# Kernel 2: final conv(matmul) + bias + sigmoid (exp + approx reciprocal on
# the otherwise-idle EUP slot).
# ----------------------------------------------------------------------------
def _final_kernel(p_ref, w_ref, b_ref, o_ref):
    y = jnp.dot(w_ref[...], p_ref[...], preferred_element_type=jnp.float32)
    y = y + b_ref[...]
    o_ref[...] = pl.reciprocal(1.0 + jnp.exp(-y), approx=True)


def _fused_final(patches, w, b):
    k, m = patches.shape
    cout = w.shape[0]
    return pl.pallas_call(
        _final_kernel,
        out_shape=jax.ShapeDtypeStruct((cout, m), jnp.float32),
        grid_spec=pltpu.PrefetchScalarGridSpec(
            num_scalar_prefetch=0,
            grid=(1,),
            in_specs=[pl.BlockSpec((k, m), lambda i: (0, 0)),
                      pl.BlockSpec((cout, k), lambda i: (0, 0)),
                      pl.BlockSpec((cout, 1), lambda i: (0, 0))],
            out_specs=pl.BlockSpec((cout, m), lambda i: (0, 0))),
        compiler_params=pltpu.CompilerParams(
            dimension_semantics=("arbitrary",)),
    )(patches, w, b)


# ----------------------------------------------------------------------------
# Forward pass (public wrapper accepts NCHW, returns NCHW).
# ----------------------------------------------------------------------------
@jax.jit
def discriminator_forward(x_nchw, params):
    n = x_nchw.shape[0]
    # NCHW -> channel-major (C, N, H, W), bf16 activations for the MXU path.
    x = jnp.transpose(x_nchw, (1, 0, 2, 3)).astype(jnp.bfloat16)
    for (w, b, g, be) in params[:4]:
        patches, oh, ow = _im2col_cf(x)                  # (K, M) bf16
        y = _fused_block(patches, w.astype(jnp.bfloat16), b, g, be)
        x = y.reshape(-1, n, oh, ow)                     # (Cout, N, OH, OW)
    w, b = params[4]
    patches, oh, ow = _im2col_cf(x)
    y = _fused_final(patches, w.astype(jnp.bfloat16), b) # (1, N*OH*OW) f32
    y = y.reshape(1, n, oh, ow)
    return jnp.transpose(y, (1, 0, 2, 3))                # (N, 1, OH, OW)


# ----------------------------------------------------------------------------
# Deterministic parameter init (mirrors PyTorch Conv2d default uniform init,
# BatchNorm gamma=1 / beta=0). Weights stored flattened as (Cout, Cin*KS*KS)
# in (ci, kh, kw) order == torch_weight.reshape(Cout, -1).
# ----------------------------------------------------------------------------
def init_params(key, img_dim=3, hidden=16):
    dims = [img_dim, hidden, hidden * 2, hidden * 4, hidden * 8, 1]
    params = []
    for li in range(5):
        cin, cout = dims[li], dims[li + 1]
        key, kw, kb = jax.random.split(key, 3)
        bound = 1.0 / float(cin * KS * KS) ** 0.5
        w = jax.random.uniform(kw, (cout, KS * KS * cin), jnp.float32,
                               -bound, bound)
        b = jax.random.uniform(kb, (cout, 1), jnp.float32, -bound, bound)
        if li < 4:
            params.append((w, b,
                           jnp.ones((cout, 1), jnp.float32),
                           jnp.zeros((cout, 1), jnp.float32)))
        else:
            params.append((w, b))
    return params


# Pure-JAX f32 reference (same math, no Pallas, no bf16) for a sanity check.
def reference_forward(x_nchw, params):
    n = x_nchw.shape[0]
    x = jnp.transpose(x_nchw, (1, 0, 2, 3)).astype(jnp.float32)
    for (w, b, g, be) in params[:4]:
        p, oh, ow = _im2col_cf(x)
        y = w @ p + b
        mean = jnp.mean(y, axis=1, keepdims=True)
        var = jnp.mean((y - mean) ** 2, axis=1, keepdims=True)
        z = (y - mean) * jax.lax.rsqrt(var + BN_EPS) * g + be
        z = jnp.where(z >= 0, z, LRELU_SLOPE * z)
        x = z.reshape(-1, n, oh, ow)
    w, b = params[4]
    p, oh, ow = _im2col_cf(x)
    y = jax.nn.sigmoid(w @ p + b).reshape(1, n, oh, ow)
    return jnp.transpose(y, (1, 0, 2, 3))


if __name__ == "__main__":
    key = jax.random.PRNGKey(0)
    kx, kp = jax.random.split(key)
    # Small shapes: batch=2, img_dim=3, 32x32 input, hidden_layer=16.
    # Five stride-2 convs: 32 -> 16 -> 8 -> 4 -> 2 -> 1, output (2, 1, 1, 1).
    x = jax.random.normal(kx, (2, 3, 32, 32), jnp.float32)
    params = init_params(kp, img_dim=3, hidden=16)

    out = jax.block_until_ready(discriminator_forward(x, params))
    assert out.shape == (2, 1, 1, 1), out.shape

    ref = reference_forward(x, params)
    err = float(jnp.max(jnp.abs(out - ref)))
    assert err < 2e-2, f"mismatch vs pure-JAX reference: {err}"

    print("KERNEL_OK")
</pallas_src>

<mosaic_0001>
module attributes {stable_mosaic.version = 11 : i64} {
  func.func @_block_kernel(%arg0: i32, %arg1: memref<48x512xbf16, #tpu.memory_space<vmem>>, %arg2: memref<16x48xbf16, #tpu.memory_space<vmem>>, %arg3: memref<16x1xf32, #tpu.memory_space<vmem>>, %arg4: memref<16x1xf32, #tpu.memory_space<vmem>>, %arg5: memref<16x1xf32, #tpu.memory_space<vmem>>, %arg6: memref<16x512xbf16, #tpu.memory_space<vmem>>) attributes {dimension_semantics = [#tpu.dimension_semantics<arbitrary>], iteration_bounds = array<i64: 1>, scalar_prefetch = 0 : i64, scratch_operands = 0 : i64, tpu.core_type = #tpu.core_type<tc>, window_params = [{pipeline_mode = #tpu.pipeline_mode<synchronous>, transform_indices = @transform_0, window_bounds = array<i64: 48, 512>}, {pipeline_mode = #tpu.pipeline_mode<synchronous>, transform_indices = @transform_1, window_bounds = array<i64: 16, 48>}, {pipeline_mode = #tpu.pipeline_mode<synchronous>, transform_indices = @transform_2, window_bounds = array<i64: 16, 1>}, {pipeline_mode = #tpu.pipeline_mode<synchronous>, transform_indices = @transform_3, window_bounds = array<i64: 16, 1>}, {pipeline_mode = #tpu.pipeline_mode<synchronous>, transform_indices = @transform_4, window_bounds = array<i64: 16, 1>}, {pipeline_mode = #tpu.pipeline_mode<synchronous>, transform_indices = @transform_5, window_bounds = array<i64: 16, 512>}]} {
    %c0 = arith.constant 0 : index
    %c0_0 = arith.constant 0 : index
    %0 = vector.load %arg2[%c0, %c0_0] : memref<16x48xbf16, #tpu.memory_space<vmem>>, vector<16x48xbf16>
    %c0_1 = arith.constant 0 : index
    %c0_2 = arith.constant 0 : index
    %1 = vector.load %arg1[%c0_1, %c0_2] : memref<48x512xbf16, #tpu.memory_space<vmem>>, vector<48x512xbf16>
    %cst = arith.constant dense<0.000000e+00> : vector<16x512xf32>
    %2 = tpu.matmul %0, %1, %cst {dimension_numbers = #tpu.dot_dimension_numbers<[1], [0], [0], [1], [0, 0, 1, 1], [], []>} : vector<16x48xbf16>, vector<48x512xbf16>, vector<16x512xf32> -> vector<16x512xf32>
    %c0_3 = arith.constant 0 : index
    %c0_4 = arith.constant 0 : index
    %3 = vector.load %arg3[%c0_3, %c0_4] : memref<16x1xf32, #tpu.memory_space<vmem>>, vector<16x1xf32>
    %4 = vector.broadcast %3 : vector<16x1xf32> to vector<16x512xf32>
    %5 = arith.addf %2, %4 : vector<16x512xf32>
    %cst_5 = arith.constant dense<0.000000e+00> : vector<16xf32>
    %6 = vector.multi_reduction <add>, %5, %cst_5 [1] : vector<16x512xf32> to vector<16xf32>
    %7 = vector.shape_cast %6 : vector<16xf32> to vector<16x1xf32>
    %cst_6 = arith.constant 0.001953125 : f32
    %8 = vector.broadcast %cst_6 : f32 to vector<16x1xf32>
    %9 = arith.mulf %7, %8 : vector<16x1xf32>
    %10 = vector.broadcast %9 : vector<16x1xf32> to vector<16x512xf32>
    %11 = arith.subf %5, %10 : vector<16x512xf32>
    %12 = arith.mulf %11, %11 : vector<16x512xf32>
    %cst_7 = arith.constant dense<0.000000e+00> : vector<16xf32>
    %13 = vector.multi_reduction <add>, %12, %cst_7 [1] : vector<16x512xf32> to vector<16xf32>
    %14 = vector.shape_cast %13 : vector<16xf32> to vector<16x1xf32>
    %cst_8 = arith.constant 0.001953125 : f32
    %15 = vector.broadcast %cst_8 : f32 to vector<16x1xf32>
    %16 = arith.mulf %14, %15 : vector<16x1xf32>
    %c0_9 = arith.constant 0 : index
    %c0_10 = arith.constant 0 : index
    %17 = vector.load %arg4[%c0_9, %c0_10] : memref<16x1xf32, #tpu.memory_space<vmem>>, vector<16x1xf32>
    %cst_11 = arith.constant 9.99999974E-6 : f32
    %18 = vector.broadcast %cst_11 : f32 to vector<16x1xf32>
    %19 = arith.addf %16, %18 : vector<16x1xf32>
    %20 = math.rsqrt %19 : vector<16x1xf32>
    %21 = arith.mulf %17, %20 : vector<16x1xf32>
    %22 = vector.broadcast %21 : vector<16x1xf32> to vector<16x512xf32>
    %23 = arith.mulf %11, %22 : vector<16x512xf32>
    %c0_12 = arith.constant 0 : index
    %c0_13 = arith.constant 0 : index
    %24 = vector.load %arg5[%c0_12, %c0_13] : memref<16x1xf32, #tpu.memory_space<vmem>>, vector<16x1xf32>
    %25 = vector.broadcast %24 : vector<16x1xf32> to vector<16x512xf32>
    %26 = arith.addf %23, %25 : vector<16x512xf32>
    %cst_14 = arith.constant 0.000000e+00 : f32
    %27 = vector.broadcast %cst_14 : f32 to vector<16x512xf32>
    %28 = arith.cmpf oge, %26, %27 : vector<16x512xf32>
    %cst_15 = arith.constant 2.000000e-01 : f32
    %29 = vector.broadcast %cst_15 : f32 to vector<16x512xf32>
    %30 = arith.mulf %29, %26 : vector<16x512xf32>
    %31 = arith.select %28, %26, %30 : vector<16x512xi1>, vector<16x512xf32>
    %32 = arith.truncf %31 : vector<16x512xf32> to vector<16x512xbf16>
    %c0_16 = arith.constant 0 : index
    %c0_17 = arith.constant 0 : index
    %33 = vector.load %arg6[%c0_16, %c0_17] : memref<16x512xbf16, #tpu.memory_space<vmem>>, vector<16x512xbf16>
    tpu.vector_store %arg6[%c0_16, %c0_17], %32 {strides = array<i32>} : memref<16x512xbf16, #tpu.memory_space<vmem>>, vector<16x512xbf16>,
    return
  }
  func.func @transform_0(%arg0: i32) -> (i32, i32) {
    %c0_i32 = arith.constant 0 : i32
    %c0_i32_0 = arith.constant 0 : i32
    %c0_i32_1 = arith.constant 0 : i32
    return %c0_i32, %c0_i32_0 : i32, i32
  }
  func.func @transform_1(%arg0: i32) -> (i32, i32) {
    %c0_i32 = arith.constant 0 : i32
    %c0_i32_0 = arith.constant 0 : i32
    %c0_i32_1 = arith.constant 0 : i32
    return %c0_i32, %c0_i32_0 : i32, i32
  }
  func.func @transform_2(%arg0: i32) -> (i32, i32) {
    %c0_i32 = arith.constant 0 : i32
    %c0_i32_0 = arith.constant 0 : i32
    %c0_i32_1 = arith.constant 0 : i32
    return %c0_i32, %c0_i32_0 : i32, i32
  }
  func.func @transform_3(%arg0: i32) -> (i32, i32) {
    %c0_i32 = arith.constant 0 : i32
    %c0_i32_0 = arith.constant 0 : i32
    %c0_i32_1 = arith.constant 0 : i32
    return %c0_i32, %c0_i32_0 : i32, i32
  }
  func.func @transform_4(%arg0: i32) -> (i32, i32) {
    %c0_i32 = arith.constant 0 : i32
    %c0_i32_0 = arith.constant 0 : i32
    %c0_i32_1 = arith.constant 0 : i32
    return %c0_i32, %c0_i32_0 : i32, i32
  }
  func.func @transform_5(%arg0: i32) -> (i32, i32) {
    %c0_i32 = arith.constant 0 : i32
    %c0_i32_0 = arith.constant 0 : i32
    %c0_i32_1 = arith.constant 0 : i32
    return %c0_i32, %c0_i32_0 : i32, i32
  }
}

module attributes {stable_mosaic.version = 11 : i64} {
  func.func @_block_kernel(%arg0: i32, %arg1: memref<256x128xbf16, #tpu.memory_space<vmem>>, %arg2: memref<32x256xbf16, #tpu.memory_space<vmem>>, %arg3: memref<32x1xf32, #tpu.memory_space<vmem>>, %arg4: memref<32x1xf32, #tpu.memory_space<vmem>>, %arg5: memref<32x1xf32, #tpu.memory_space<vmem>>, %arg6: memref<32x128xbf16, #tpu.memory_space<vmem>>) attributes {dimension_semantics = [#tpu.dimension_semantics<arbitrary>], iteration_bounds = array<i64: 1>, scalar_prefetch = 0 : i64, scratch_operands = 0 : i64, tpu.core_type = #tpu.core_type<tc>, window_params = [{pipeline_mode = #tpu.pipeline_mode<synchronous>, transform_indices = @transform_0, window_bounds = array<i64: 256, 128>}, {pipeline_mode = #tpu.pipeline_mode<synchronous>, transform_indices = @transform_1, window_bounds = array<i64: 32, 256>}, {pipeline_mode = #tpu.pipeline_mode<synchronous>, transform_indices = @transform_2, window_bounds = array<i64: 32, 1>}, {pipeline_mode = #tpu.pipeline_mode<synchronous>, transform_indices = @transform_3, window_bounds = array<i64: 32, 1>}, {pipeline_mode = #tpu.pipeline_mode<synchronous>, transform_indices = @transform_4, window_bounds = array<i64: 32, 1>}, {pipeline_mode = #tpu.pipeline_mode<synchronous>, transform_indices = @transform_5, window_bounds = array<i64: 32, 128>}]} {
    %c0 = arith.constant 0 : index
    %c0_0 = arith.constant 0 : index
    %0 = vector.load %arg2[%c0, %c0_0] : memref<32x256xbf16, #tpu.memory_space<vmem>>, vector<32x256xbf16>
    %c0_1 = arith.constant 0 : index
    %c0_2 = arith.constant 0 : index
    %1 = vector.load %arg1[%c0_1, %c0_2] : memref<256x128xbf16, #tpu.memory_space<vmem>>, vector<256x128xbf16>
    %cst = arith.constant dense<0.000000e+00> : vector<32x128xf32>
    %2 = tpu.matmul %0, %1, %cst {dimension_numbers = #tpu.dot_dimension_numbers<[1], [0], [0], [1], [0, 0, 1, 1], [], []>} : vector<32x256xbf16>, vector<256x128xbf16>, vector<32x128xf32> -> vector<32x128xf32>
    %c0_3 = arith.constant 0 : index
    %c0_4 = arith.constant 0 : index
    %3 = vector.load %arg3[%c0_3, %c0_4] : memref<32x1xf32, #tpu.memory_space<vmem>>, vector<32x1xf32>
    %4 = vector.broadcast %3 : vector<32x1xf32> to vector<32x128xf32>
    %5 = arith.addf %2, %4 : vector<32x128xf32>
    %cst_5 = arith.constant dense<0.000000e+00> : vector<32xf32>
    %6 = vector.multi_reduction <add>, %5, %cst_5 [1] : vector<32x128xf32> to vector<32xf32>
    %7 = vector.shape_cast %6 : vector<32xf32> to vector<32x1xf32>
    %cst_6 = arith.constant 7.812500e-03 : f32
    %8 = vector.broadcast %cst_6 : f32 to vector<32x1xf32>
    %9 = arith.mulf %7, %8 : vector<32x1xf32>
    %10 = vector.broadcast %9 : vector<32x1xf32> to vector<32x128xf32>
    %11 = arith.subf %5, %10 : vector<32x128xf32>
    %12 = arith.mulf %11, %11 : vector<32x128xf32>
    %cst_7 = arith.constant dense<0.000000e+00> : vector<32xf32>
    %13 = vector.multi_reduction <add>, %12, %cst_7 [1] : vector<32x128xf32> to vector<32xf32>
    %14 = vector.shape_cast %13 : vector<32xf32> to vector<32x1xf32>
    %cst_8 = arith.constant 7.812500e-03 : f32
    %15 = vector.broadcast %cst_8 : f32 to vector<32x1xf32>
    %16 = arith.mulf %14, %15 : vector<32x1xf32>
    %c0_9 = arith.constant 0 : index
    %c0_10 = arith.constant 0 : index
    %17 = vector.load %arg4[%c0_9, %c0_10] : memref<32x1xf32, #tpu.memory_space<vmem>>, vector<32x1xf32>
    %cst_11 = arith.constant 9.99999974E-6 : f32
    %18 = vector.broadcast %cst_11 : f32 to vector<32x1xf32>
    %19 = arith.addf %16, %18 : vector<32x1xf32>
    %20 = math.rsqrt %19 : vector<32x1xf32>
    %21 = arith.mulf %17, %20 : vector<32x1xf32>
    %22 = vector.broadcast %21 : vector<32x1xf32> to vector<32x128xf32>
    %23 = arith.mulf %11, %22 : vector<32x128xf32>
    %c0_12 = arith.constant 0 : index
    %c0_13 = arith.constant 0 : index
    %24 = vector.load %arg5[%c0_12, %c0_13] : memref<32x1xf32, #tpu.memory_space<vmem>>, vector<32x1xf32>
    %25 = vector.broadcast %24 : vector<32x1xf32> to vector<32x128xf32>
    %26 = arith.addf %23, %25 : vector<32x128xf32>
    %cst_14 = arith.constant 0.000000e+00 : f32
    %27 = vector.broadcast %cst_14 : f32 to vector<32x128xf32>
    %28 = arith.cmpf oge, %26, %27 : vector<32x128xf32>
    %cst_15 = arith.constant 2.000000e-01 : f32
    %29 = vector.broadcast %cst_15 : f32 to vector<32x128xf32>
    %30 = arith.mulf %29, %26 : vector<32x128xf32>
    %31 = arith.select %28, %26, %30 : vector<32x128xi1>, vector<32x128xf32>
    %32 = arith.truncf %31 : vector<32x128xf32> to vector<32x128xbf16>
    %c0_16 = arith.constant 0 : index
    %c0_17 = arith.constant 0 : index
    %33 = vector.load %arg6[%c0_16, %c0_17] : memref<32x128xbf16, #tpu.memory_space<vmem>>, vector<32x128xbf16>
    tpu.vector_store %arg6[%c0_16, %c0_17], %32 {strides = array<i32>} : memref<32x128xbf16, #tpu.memory_space<vmem>>, vector<32x128xbf16>,
    return
  }
  func.func @transform_0(%arg0: i32) -> (i32, i32) {
    %c0_i32 = arith.constant 0 : i32
    %c0_i32_0 = arith.constant 0 : i32
    %c0_i32_1 = arith.constant 0 : i32
    return %c0_i32, %c0_i32_0 : i32, i32
  }
  func.func @transform_1(%arg0: i32) -> (i32, i32) {
    %c0_i32 = arith.constant 0 : i32
    %c0_i32_0 = arith.constant 0 : i32
    %c0_i32_1 = arith.constant 0 : i32
    return %c0_i32, %c0_i32_0 : i32, i32
  }
  func.func @transform_2(%arg0: i32) -> (i32, i32) {
    %c0_i32 = arith.constant 0 : i32
    %c0_i32_0 = arith.constant 0 : i32
    %c0_i32_1 = arith.constant 0 : i32
    return %c0_i32, %c0_i32_0 : i32, i32
  }
  func.func @transform_3(%arg0: i32) -> (i32, i32) {
    %c0_i32 = arith.constant 0 : i32
    %c0_i32_0 = arith.constant 0 : i32
    %c0_i32_1 = arith.constant 0 : i32
    return %c0_i32, %c0_i32_0 : i32, i32
  }
  func.func @transform_4(%arg0: i32) -> (i32, i32) {
    %c0_i32 = arith.constant 0 : i32
    %c0_i32_0 = arith.constant 0 : i32
    %c0_i32_1 = arith.constant 0 : i32
    return %c0_i32, %c0_i32_0 : i32, i32
  }
  func.func @transform_5(%arg0: i32) -> (i32, i32) {
    %c0_i32 = arith.constant 0 : i32
    %c0_i32_0 = arith.constant 0 : i32
    %c0_i32_1 = arith.constant 0 : i32
    return %c0_i32, %c0_i32_0 : i32, i32
  }
}

module attributes {stable_mosaic.version = 11 : i64} {
  func.func @_block_kernel(%arg0: i32, %arg1: memref<512x32xbf16, #tpu.memory_space<vmem>>, %arg2: memref<64x512xbf16, #tpu.memory_space<vmem>>, %arg3: memref<64x1xf32, #tpu.memory_space<vmem>>, %arg4: memref<64x1xf32, #tpu.memory_space<vmem>>, %arg5: memref<64x1xf32, #tpu.memory_space<vmem>>, %arg6: memref<64x32xbf16, #tpu.memory_space<vmem>>) attributes {dimension_semantics = [#tpu.dimension_semantics<arbitrary>], iteration_bounds = array<i64: 1>, scalar_prefetch = 0 : i64, scratch_operands = 0 : i64, tpu.core_type = #tpu.core_type<tc>, window_params = [{pipeline_mode = #tpu.pipeline_mode<synchronous>, transform_indices = @transform_0, window_bounds = array<i64: 512, 32>}, {pipeline_mode = #tpu.pipeline_mode<synchronous>, transform_indices = @transform_1, window_bounds = array<i64: 64, 512>}, {pipeline_mode = #tpu.pipeline_mode<synchronous>, transform_indices = @transform_2, window_bounds = array<i64: 64, 1>}, {pipeline_mode = #tpu.pipeline_mode<synchronous>, transform_indices = @transform_3, window_bounds = array<i64: 64, 1>}, {pipeline_mode = #tpu.pipeline_mode<synchronous>, transform_indices = @transform_4, window_bounds = array<i64: 64, 1>}, {pipeline_mode = #tpu.pipeline_mode<synchronous>, transform_indices = @transform_5, window_bounds = array<i64: 64, 32>}]} {
    %c0 = arith.constant 0 : index
    %c0_0 = arith.constant 0 : index
    %0 = vector.load %arg2[%c0, %c0_0] : memref<64x512xbf16, #tpu.memory_space<vmem>>, vector<64x512xbf16>
    %c0_1 = arith.constant 0 : index
    %c0_2 = arith.constant 0 : index
    %1 = vector.load %arg1[%c0_1, %c0_2] : memref<512x32xbf16, #tpu.memory_space<vmem>>, vector<512x32xbf16>
    %cst = arith.constant dense<0.000000e+00> : vector<64x32xf32>
    %2 = tpu.matmul %0, %1, %cst {dimension_numbers = #tpu.dot_dimension_numbers<[1], [0], [0], [1], [0, 0, 1, 1], [], []>} : vector<64x512xbf16>, vector<512x32xbf16>, vector<64x32xf32> -> vector<64x32xf32>
    %c0_3 = arith.constant 0 : index
    %c0_4 = arith.constant 0 : index
    %3 = vector.load %arg3[%c0_3, %c0_4] : memref<64x1xf32, #tpu.memory_space<vmem>>, vector<64x1xf32>
    %4 = vector.broadcast %3 : vector<64x1xf32> to vector<64x32xf32>
    %5 = arith.addf %2, %4 : vector<64x32xf32>
    %cst_5 = arith.constant dense<0.000000e+00> : vector<64xf32>
    %6 = vector.multi_reduction <add>, %5, %cst_5 [1] : vector<64x32xf32> to vector<64xf32>
    %7 = vector.shape_cast %6 : vector<64xf32> to vector<64x1xf32>
    %cst_6 = arith.constant 3.125000e-02 : f32
    %8 = vector.broadcast %cst_6 : f32 to vector<64x1xf32>
    %9 = arith.mulf %7, %8 : vector<64x1xf32>
    %10 = vector.broadcast %9 : vector<64x1xf32> to vector<64x32xf32>
    %11 = arith.subf %5, %10 : vector<64x32xf32>
    %12 = arith.mulf %11, %11 : vector<64x32xf32>
    %cst_7 = arith.constant dense<0.000000e+00> : vector<64xf32>
    %13 = vector.multi_reduction <add>, %12, %cst_7 [1] : vector<64x32xf32> to vector<64xf32>
    %14 = vector.shape_cast %13 : vector<64xf32> to vector<64x1xf32>
    %cst_8 = arith.constant 3.125000e-02 : f32
    %15 = vector.broadcast %cst_8 : f32 to vector<64x1xf32>
    %16 = arith.mulf %14, %15 : vector<64x1xf32>
    %c0_9 = arith.constant 0 : index
    %c0_10 = arith.constant 0 : index
    %17 = vector.load %arg4[%c0_9, %c0_10] : memref<64x1xf32, #tpu.memory_space<vmem>>, vector<64x1xf32>
    %cst_11 = arith.constant 9.99999974E-6 : f32
    %18 = vector.broadcast %cst_11 : f32 to vector<64x1xf32>
    %19 = arith.addf %16, %18 : vector<64x1xf32>
    %20 = math.rsqrt %19 : vector<64x1xf32>
    %21 = arith.mulf %17, %20 : vector<64x1xf32>
    %22 = vector.broadcast %21 : vector<64x1xf32> to vector<64x32xf32>
    %23 = arith.mulf %11, %22 : vector<64x32xf32>
    %c0_12 = arith.constant 0 : index
    %c0_13 = arith.constant 0 : index
    %24 = vector.load %arg5[%c0_12, %c0_13] : memref<64x1xf32, #tpu.memory_space<vmem>>, vector<64x1xf32>
    %25 = vector.broadcast %24 : vector<64x1xf32> to vector<64x32xf32>
    %26 = arith.addf %23, %25 : vector<64x32xf32>
    %cst_14 = arith.constant 0.000000e+00 : f32
    %27 = vector.broadcast %cst_14 : f32 to vector<64x32xf32>
    %28 = arith.cmpf oge, %26, %27 : vector<64x32xf32>
    %cst_15 = arith.constant 2.000000e-01 : f32
    %29 = vector.broadcast %cst_15 : f32 to vector<64x32xf32>
    %30 = arith.mulf %29, %26 : vector<64x32xf32>
    %31 = arith.select %28, %26, %30 : vector<64x32xi1>, vector<64x32xf32>
    %32 = arith.truncf %31 : vector<64x32xf32> to vector<64x32xbf16>
    %c0_16 = arith.constant 0 : index
    %c0_17 = arith.constant 0 : index
    %33 = vector.load %arg6[%c0_16, %c0_17] : memref<64x32xbf16, #tpu.memory_space<vmem>>, vector<64x32xbf16>
    tpu.vector_store %arg6[%c0_16, %c0_17], %32 {strides = array<i32>} : memref<64x32xbf16, #tpu.memory_space<vmem>>, vector<64x32xbf16>,
    return
  }
  func.func @transform_0(%arg0: i32) -> (i32, i32) {
    %c0_i32 = arith.constant 0 : i32
    %c0_i32_0 = arith.constant 0 : i32
    %c0_i32_1 = arith.constant 0 : i32
    return %c0_i32, %c0_i32_0 : i32, i32
  }
  func.func @transform_1(%arg0: i32) -> (i32, i32) {
    %c0_i32 = arith.constant 0 : i32
    %c0_i32_0 = arith.constant 0 : i32
    %c0_i32_1 = arith.constant 0 : i32
    return %c0_i32, %c0_i32_0 : i32, i32
  }
  func.func @transform_2(%arg0: i32) -> (i32, i32) {
    %c0_i32 = arith.constant 0 : i32
    %c0_i32_0 = arith.constant 0 : i32
    %c0_i32_1 = arith.constant 0 : i32
    return %c0_i32, %c0_i32_0 : i32, i32
  }
  func.func @transform_3(%arg0: i32) -> (i32, i32) {
    %c0_i32 = arith.constant 0 : i32
    %c0_i32_0 = arith.constant 0 : i32
    %c0_i32_1 = arith.constant 0 : i32
    return %c0_i32, %c0_i32_0 : i32, i32
  }
  func.func @transform_4(%arg0: i32) -> (i32, i32) {
    %c0_i32 = arith.constant 0 : i32
    %c0_i32_0 = arith.constant 0 : i32
    %c0_i32_1 = arith.constant 0 : i32
    return %c0_i32, %c0_i32_0 : i32, i32
  }
  func.func @transform_5(%arg0: i32) -> (i32, i32) {
    %c0_i32 = arith.constant 0 : i32
    %c0_i32_0 = arith.constant 0 : i32
    %c0_i32_1 = arith.constant 0 : i32
    return %c0_i32, %c0_i32_0 : i32, i32
  }
}

module attributes {stable_mosaic.version = 11 : i64} {
  func.func @_block_kernel(%arg0: i32, %arg1: memref<1024x8xbf16, #tpu.memory_space<vmem>>, %arg2: memref<128x1024xbf16, #tpu.memory_space<vmem>>, %arg3: memref<128x1xf32, #tpu.memory_space<vmem>>, %arg4: memref<128x1xf32, #tpu.memory_space<vmem>>, %arg5: memref<128x1xf32, #tpu.memory_space<vmem>>, %arg6: memref<128x8xbf16, #tpu.memory_space<vmem>>) attributes {dimension_semantics = [#tpu.dimension_semantics<arbitrary>], iteration_bounds = array<i64: 1>, scalar_prefetch = 0 : i64, scratch_operands = 0 : i64, tpu.core_type = #tpu.core_type<tc>, window_params = [{pipeline_mode = #tpu.pipeline_mode<synchronous>, transform_indices = @transform_0, window_bounds = array<i64: 1024, 8>}, {pipeline_mode = #tpu.pipeline_mode<synchronous>, transform_indices = @transform_1, window_bounds = array<i64: 128, 1024>}, {pipeline_mode = #tpu.pipeline_mode<synchronous>, transform_indices = @transform_2, window_bounds = array<i64: 128, 1>}, {pipeline_mode = #tpu.pipeline_mode<synchronous>, transform_indices = @transform_3, window_bounds = array<i64: 128, 1>}, {pipeline_mode = #tpu.pipeline_mode<synchronous>, transform_indices = @transform_4, window_bounds = array<i64: 128, 1>}, {pipeline_mode = #tpu.pipeline_mode<synchronous>, transform_indices = @transform_5, window_bounds = array<i64: 128, 8>}]} {
    %c0 = arith.constant 0 : index
    %c0_0 = arith.constant 0 : index
    %0 = vector.load %arg2[%c0, %c0_0] : memref<128x1024xbf16, #tpu.memory_space<vmem>>, vector<128x1024xbf16>
    %c0_1 = arith.constant 0 : index
    %c0_2 = arith.constant 0 : index
    %1 = vector.load %arg1[%c0_1, %c0_2] : memref<1024x8xbf16, #tpu.memory_space<vmem>>, vector<1024x8xbf16>
    %cst = arith.constant dense<0.000000e+00> : vector<128x8xf32>
    %2 = tpu.matmul %0, %1, %cst {dimension_numbers = #tpu.dot_dimension_numbers<[1], [0], [0], [1], [0, 0, 1, 1], [], []>} : vector<128x1024xbf16>, vector<1024x8xbf16>, vector<128x8xf32> -> vector<128x8xf32>
    %c0_3 = arith.constant 0 : index
    %c0_4 = arith.constant 0 : index
    %3 = vector.load %arg3[%c0_3, %c0_4] : memref<128x1xf32, #tpu.memory_space<vmem>>, vector<128x1xf32>
    %4 = vector.broadcast %3 : vector<128x1xf32> to vector<128x8xf32>
    %5 = arith.addf %2, %4 : vector<128x8xf32>
    %cst_5 = arith.constant dense<0.000000e+00> : vector<128xf32>
    %6 = vector.multi_reduction <add>, %5, %cst_5 [1] : vector<128x8xf32> to vector<128xf32>
    %7 = vector.shape_cast %6 : vector<128xf32> to vector<128x1xf32>
    %cst_6 = arith.constant 1.250000e-01 : f32
    %8 = vector.broadcast %cst_6 : f32 to vector<128x1xf32>
    %9 = arith.mulf %7, %8 : vector<128x1xf32>
    %10 = vector.broadcast %9 : vector<128x1xf32> to vector<128x8xf32>
    %11 = arith.subf %5, %10 : vector<128x8xf32>
    %12 = arith.mulf %11, %11 : vector<128x8xf32>
    %cst_7 = arith.constant dense<0.000000e+00> : vector<128xf32>
    %13 = vector.multi_reduction <add>, %12, %cst_7 [1] : vector<128x8xf32> to vector<128xf32>
    %14 = vector.shape_cast %13 : vector<128xf32> to vector<128x1xf32>
    %cst_8 = arith.constant 1.250000e-01 : f32
    %15 = vector.broadcast %cst_8 : f32 to vector<128x1xf32>
    %16 = arith.mulf %14, %15 : vector<128x1xf32>
    %c0_9 = arith.constant 0 : index
    %c0_10 = arith.constant 0 : index
    %17 = vector.load %arg4[%c0_9, %c0_10] : memref<128x1xf32, #tpu.memory_space<vmem>>, vector<128x1xf32>
    %cst_11 = arith.constant 9.99999974E-6 : f32
    %18 = vector.broadcast %cst_11 : f32 to vector<128x1xf32>
    %19 = arith.addf %16, %18 : vector<128x1xf32>
    %20 = math.rsqrt %19 : vector<128x1xf32>
    %21 = arith.mulf %17, %20 : vector<128x1xf32>
    %22 = vector.broadcast %21 : vector<128x1xf32> to vector<128x8xf32>
    %23 = arith.mulf %11, %22 : vector<128x8xf32>
    %c0_12 = arith.constant 0 : index
    %c0_13 = arith.constant 0 : index
    %24 = vector.load %arg5[%c0_12, %c0_13] : memref<128x1xf32, #tpu.memory_space<vmem>>, vector<128x1xf32>
    %25 = vector.broadcast %24 : vector<128x1xf32> to vector<128x8xf32>
    %26 = arith.addf %23, %25 : vector<128x8xf32>
    %cst_14 = arith.constant 0.000000e+00 : f32
    %27 = vector.broadcast %cst_14 : f32 to vector<128x8xf32>
    %28 = arith.cmpf oge, %26, %27 : vector<128x8xf32>
    %cst_15 = arith.constant 2.000000e-01 : f32
    %29 = vector.broadcast %cst_15 : f32 to vector<128x8xf32>
    %30 = arith.mulf %29, %26 : vector<128x8xf32>
    %31 = arith.select %28, %26, %30 : vector<128x8xi1>, vector<128x8xf32>
    %32 = arith.truncf %31 : vector<128x8xf32> to vector<128x8xbf16>
    %c0_16 = arith.constant 0 : index
    %c0_17 = arith.constant 0 : index
    %33 = vector.load %arg6[%c0_16, %c0_17] : memref<128x8xbf16, #tpu.memory_space<vmem>>, vector<128x8xbf16>
    tpu.vector_store %arg6[%c0_16, %c0_17], %32 {strides = array<i32>} : memref<128x8xbf16, #tpu.memory_space<vmem>>, vector<128x8xbf16>,
    return
  }
  func.func @transform_0(%arg0: i32) -> (i32, i32) {
    %c0_i32 = arith.constant 0 : i32
    %c0_i32_0 = arith.constant 0 : i32
    %c0_i32_1 = arith.constant 0 : i32
    return %c0_i32, %c0_i32_0 : i32, i32
  }
  func.func @transform_1(%arg0: i32) -> (i32, i32) {
    %c0_i32 = arith.constant 0 : i32
    %c0_i32_0 = arith.constant 0 : i32
    %c0_i32_1 = arith.constant 0 : i32
    return %c0_i32, %c0_i32_0 : i32, i32
  }
  func.func @transform_2(%arg0: i32) -> (i32, i32) {
    %c0_i32 = arith.constant 0 : i32
    %c0_i32_0 = arith.constant 0 : i32
    %c0_i32_1 = arith.constant 0 : i32
    return %c0_i32, %c0_i32_0 : i32, i32
  }
  func.func @transform_3(%arg0: i32) -> (i32, i32) {
    %c0_i32 = arith.constant 0 : i32
    %c0_i32_0 = arith.constant 0 : i32
    %c0_i32_1 = arith.constant 0 : i32
    return %c0_i32, %c0_i32_0 : i32, i32
  }
  func.func @transform_4(%arg0: i32) -> (i32, i32) {
    %c0_i32 = arith.constant 0 : i32
    %c0_i32_0 = arith.constant 0 : i32
    %c0_i32_1 = arith.constant 0 : i32
    return %c0_i32, %c0_i32_0 : i32, i32
  }
  func.func @transform_5(%arg0: i32) -> (i32, i32) {
    %c0_i32 = arith.constant 0 : i32
    %c0_i32_0 = arith.constant 0 : i32
    %c0_i32_1 = arith.constant 0 : i32
    return %c0_i32, %c0_i32_0 : i32, i32
  }
}

module attributes {stable_mosaic.version = 11 : i64} {
  func.func @_final_kernel(%arg0: i32, %arg1: memref<2048x2xbf16, #tpu.memory_space<vmem>>, %arg2: memref<1x2048xbf16, #tpu.memory_space<vmem>>, %arg3: memref<1x1xf32, #tpu.memory_space<vmem>>, %arg4: memref<1x2xf32, #tpu.memory_space<vmem>>) attributes {dimension_semantics = [#tpu.dimension_semantics<arbitrary>], iteration_bounds = array<i64: 1>, scalar_prefetch = 0 : i64, scratch_operands = 0 : i64, tpu.core_type = #tpu.core_type<tc>, window_params = [{pipeline_mode = #tpu.pipeline_mode<synchronous>, transform_indices = @transform_0, window_bounds = array<i64: 2048, 2>}, {pipeline_mode = #tpu.pipeline_mode<synchronous>, transform_indices = @transform_1, window_bounds = array<i64: 1, 2048>}, {pipeline_mode = #tpu.pipeline_mode<synchronous>, transform_indices = @transform_2, window_bounds = array<i64: 1, 1>}, {pipeline_mode = #tpu.pipeline_mode<synchronous>, transform_indices = @transform_3, window_bounds = array<i64: 1, 2>}]} {
    %c0 = arith.constant 0 : index
    %c0_0 = arith.constant 0 : index
    %0 = vector.load %arg2[%c0, %c0_0] : memref<1x2048xbf16, #tpu.memory_space<vmem>>, vector<1x2048xbf16>
    %c0_1 = arith.constant 0 : index
    %c0_2 = arith.constant 0 : index
    %1 = vector.load %arg1[%c0_1, %c0_2] : memref<2048x2xbf16, #tpu.memory_space<vmem>>, vector<2048x2xbf16>
    %cst = arith.constant dense<0.000000e+00> : vector<1x2xf32>
    %2 = tpu.matmul %0, %1, %cst {dimension_numbers = #tpu.dot_dimension_numbers<[1], [0], [0], [1], [0, 0, 1, 1], [], []>} : vector<1x2048xbf16>, vector<2048x2xbf16>, vector<1x2xf32> -> vector<1x2xf32>
    %c0_3 = arith.constant 0 : index
    %c0_4 = arith.constant 0 : index
    %3 = vector.load %arg3[%c0_3, %c0_4] : memref<1x1xf32, #tpu.memory_space<vmem>>, vector<1x1xf32>
    %4 = vector.broadcast %3 : vector<1x1xf32> to vector<1x2xf32>
    %5 = arith.addf %2, %4 : vector<1x2xf32>
    %cst_5 = arith.constant 0.000000e+00 : f32
    %6 = vector.broadcast %cst_5 : f32 to vector<1x2xf32>
    %7 = arith.subf %6, %5 : vector<1x2xf32>
    %8 = math.exp %7 : vector<1x2xf32>
    %cst_6 = arith.constant 1.000000e+00 : f32
    %9 = vector.broadcast %cst_6 : f32 to vector<1x2xf32>
    %10 = arith.addf %9, %8 : vector<1x2xf32>
    %11 = tpu.reciprocal %10 {approx = true} : vector<1x2xf32> -> vector<1x2xf32>
    %c0_7 = arith.constant 0 : index
    %c0_8 = arith.constant 0 : index
    %12 = vector.load %arg4[%c0_7, %c0_8] : memref<1x2xf32, #tpu.memory_space<vmem>>, vector<1x2xf32>
    tpu.vector_store %arg4[%c0_7, %c0_8], %11 {strides = array<i32>} : memref<1x2xf32, #tpu.memory_space<vmem>>, vector<1x2xf32>,
    return
  }
  func.func @transform_0(%arg0: i32) -> (i32, i32) {
    %c0_i32 = arith.constant 0 : i32
    %c0_i32_0 = arith.constant 0 : i32
    %c0_i32_1 = arith.constant 0 : i32
    return %c0_i32, %c0_i32_0 : i32, i32
  }
  func.func @transform_1(%arg0: i32) -> (i32, i32) {
    %c0_i32 = arith.constant 0 : i32
    %c0_i32_0 = arith.constant 0 : i32
    %c0_i32_1 = arith.constant 0 : i32
    return %c0_i32, %c0_i32_0 : i32, i32
  }
  func.func @transform_2(%arg0: i32) -> (i32, i32) {
    %c0_i32 = arith.constant 0 : i32
    %c0_i32_0 = arith.constant 0 : i32
    %c0_i32_1 = arith.constant 0 : i32
    return %c0_i32, %c0_i32_0 : i32, i32
  }
  func.func @transform_3(%arg0: i32) -> (i32, i32) {
    %c0_i32 = arith.constant 0 : i32
    %c0_i32_0 = arith.constant 0 : i32
    %c0_i32_1 = arith.constant 0 : i32
    return %c0_i32, %c0_i32_0 : i32, i32
  }
}

</mosaic_0001>

<llo_original>
// kernel: discriminator_forward.5
$region0: #{discriminator_forward.5}
  #allocation0 [shape = 'u32[]', space=smem, size = 0x4, offset = 0x4, fixed_abs, tag = 'smem constant byte address 0x4 - core index']
  #allocation1 [shape = 'u32[144,128]{1,0:T(1,128)}', space=vmem, size = 0x12000, scoped, tag = 'internal scratch']
  %s0 = inlined_call_operand.vmem [shape: bf16[48,512], index: 0, kind: input, shape index: {}]
  %s1 = inlined_call_operand.vmem [shape: bf16[16,48], index: 1, kind: input, shape index: {}]
  %s2 = inlined_call_operand.vmem [shape: f32[16,1], index: 2, kind: input, shape index: {}]
  %s3 = inlined_call_operand.vmem [shape: f32[16,1], index: 3, kind: input, shape index: {}]
  %s4 = inlined_call_operand.vmem [shape: f32[16,1], index: 4, kind: input, shape index: {}]
  %s5 = inlined_call_operand.vmem [shape: bf16[16,512], index: 5, kind: output, shape index: {}]
  %s6 = sld [smem:[#allocation0]]
  $region30: #{discriminator_forward.5} parent=0
    _
  %s8 = ssub.s32 1, %s6
  %s9 = scalar_select 0, %s8, %s6
  // Predicated region
  $region2: #{discriminator_forward.5} parent=0 // pred_check
    _
  $region3: #{discriminator_forward.5} parent=0 // pred_check_branch
    %11 = sbr.rel (0) target = $region5
  $region4: #{discriminator_forward.5} parent=0 // pred_region
    _
  $region5: #{discriminator_forward.5} parent=0 // pred_fallthru
    _
  // Predicated region
  $region6: #{discriminator_forward.5} parent=0 // pred_check
    _
  $region7: #{discriminator_forward.5} parent=0 // pred_check_branch
    %13 = sbr.rel (0) target = $region9
  $region8: #{discriminator_forward.5} parent=0 // pred_region
    _
  $region9: #{discriminator_forward.5} parent=0 // pred_fallthru
    _
  // Predicated region
  $region10: #{discriminator_forward.5} parent=0 // pred_check
    _
  $region11: #{discriminator_forward.5} parent=0 // pred_check_branch
    %15 = sbr.rel (0) target = $region13
  $region12: #{discriminator_forward.5} parent=0 // pred_region
    _
  $region13: #{discriminator_forward.5} parent=0 // pred_fallthru
    _
  // Predicated region
  $region14: #{discriminator_forward.5} parent=0 // pred_check
    _
  $region15: #{discriminator_forward.5} parent=0 // pred_check_branch
    %17 = sbr.rel (0) target = $region17
  $region16: #{discriminator_forward.5} parent=0 // pred_region
    _
  $region17: #{discriminator_forward.5} parent=0 // pred_fallthru
    _
  // Predicated region
  $region18: #{discriminator_forward.5} parent=0 // pred_check
    _
  $region19: #{discriminator_forward.5} parent=0 // pred_check_branch
    %19 = sbr.rel (0) target = $region21
  $region20: #{discriminator_forward.5} parent=0 // pred_region
    _
  $region21: #{discriminator_forward.5} parent=0 // pred_fallthru
    _
  %v21 = vld [vmem:[%s1] sm:$0xf]
  %v22 = vld [vmem:[%s1 + $0x4] sm:$0xf]
  %v23 = vld [vmem:[%s0] sm:$0xff]
  %v24 = vld [vmem:[%s0 + $0x8] sm:$0xff]
  %v25 = vld [vmem:[%s0 + $0x10] sm:$0xff]
  %v26 = vld [vmem:[%s0 + $0x18] sm:$0xff]
  %v27 = vld [vmem:[%s0 + $0x20] sm:$0xff]
  %v28 = vld [vmem:[%s0 + $0x28] sm:$0xff]
  %v29 = vld [vmem:[%s0 + $0x30] sm:$0xff]
  %v30 = vld [vmem:[%s0 + $0x38] sm:$0xff]
  %v31 = vld [vmem:[%s0 + $0x40] sm:$0xff]
  %v32 = vld [vmem:[%s0 + $0x48] sm:$0xff]
  %v33 = vld [vmem:[%s0 + $0x50] sm:$0xff]
  %v34 = vld [vmem:[%s0 + $0x58] sm:$0xff]
  %v35 = vld [vmem:[%s2] sm:$0xff]
  %v36 = vld [vmem:[%s2 + $0x8] sm:$0xff]
  %38 = vset.pattern.permute.xlu0 0
  %39 = vperm.xlu0 %38, %v35
  %v40 = vpop.permute.xlu0 %39
  %43 = vset.pattern.permute.xlu0 0
  %44 = vperm.xlu0 %43, %v36
  %v45 = vpop.permute.xlu0 %44
  %v49 = vunpack.c.l.b16 %v21
  %v50 = vunpack.c.l.b16 %v22
  %v51 = vpack.c.b16 %v50, %v49
  %v64 = vunpack.c.l.b16 %v23
  %v65 = vunpack.c.h.b16 %v23
  %v66 = vunpack.c.l.b16 %v24
  %v67 = vunpack.c.h.b16 %v24
  %v68 = vunpack.c.l.b16 %v25
  %v69 = vunpack.c.h.b16 %v25
  %v70 = vunpack.c.l.b16 %v26
  %v71 = vunpack.c.h.b16 %v26
  %v72 = vunpack.c.l.b16 %v27
  %v73 = vunpack.c.h.b16 %v27
  %v74 = vunpack.c.l.b16 %v28
  %v75 = vunpack.c.h.b16 %v28
  %v76 = vunpack.c.l.b16 %v29
  %v77 = vunpack.c.h.b16 %v29
  %v78 = vunpack.c.l.b16 %v30
  %v79 = vunpack.c.h.b16 %v30
  %v80 = vunpack.c.l.b16 %v31
  %v81 = vunpack.c.h.b16 %v31
  %v82 = vunpack.c.l.b16 %v32
  %v83 = vunpack.c.h.b16 %v32
  %v84 = vunpack.c.l.b16 %v33
  %v85 = vunpack.c.h.b16 %v33
  %v86 = vunpack.c.l.b16 %v34
  %v87 = vunpack.c.h.b16 %v34
  %v88 = vpack.c.b16 %v68, %v64
  %v89 = vpack.c.b16 %v69, %v65
  %v90 = vpack.c.b16 %v70, %v66
  %v91 = vpack.c.b16 %v71, %v67
  %v92 = vpack.c.b16 %v76, %v72
  %v93 = vpack.c.b16 %v77, %v73
  %v94 = vpack.c.b16 %v78, %v74
  %v95 = vpack.c.b16 %v79, %v75
  %v96 = vpack.c.b16 %v84, %v80
  %v97 = vpack.c.b16 %v85, %v81
  %v98 = vpack.c.b16 %v86, %v82
  %v99 = vpack.c.b16 %v87, %v83
  %vm112 = vcmask 392192
  %v114 = vsel %vm112, %v51, 0
  %116 = vmatprep.subr.bf16.mxu0 0
  %117 = vmatpush1.bf16.msra.mxu0 0
  %118 = vmatprep.subr.bf16.mxu0 0
  %119 = vmatpush1.bf16.msra.mxu0 0
  %120 = vmatprep.subr.bf16.mxu0 0
  %121 = vmatpush1.bf16.msra.mxu0 0
  %122 = vmatprep.subr.bf16.mxu0 0
  %123 = vmatpush1.bf16.msra.mxu0 0
  %124 = vmatprep.subr.bf16.mxu0 0
  %125 = vmatpush1.bf16.msra.mxu0 0
  %126 = vmatprep.subr.bf16.mxu0 %v97
  %127 = vmatpush1.bf16.msra.mxu0 %v96
  %128 = vmatprep.subr.bf16.mxu0 %v93
  %129 = vmatpush1.bf16.msra.mxu0 %v92
  %130 = vmatprep.subr.bf16.mxu0 %v89
  %131 = vmatpush1.bf16.msra.mxu0 %v88
  %132 = vmatprep.subr.bf16.mxu0 0
  %133 = vmatpush2.bf16.msra.mxu0 0
  %134 = vmatprep.subr.bf16.mxu0 0
  %135 = vmatpush2.bf16.msra.mxu0 0
  %136 = vmatprep.subr.bf16.mxu0 0
  %137 = vmatpush2.bf16.msra.mxu0 0
  %138 = vmatprep.subr.bf16.mxu0 0
  %139 = vmatpush2.bf16.msra.mxu0 0
  %140 = vmatprep.subr.bf16.mxu0 0
  %141 = vmatpush2.bf16.msra.mxu0 0
  %142 = vmatprep.subr.bf16.mxu0 0
  %143 = vmatpush2.bf16.msra.mxu0 0
  %144 = vmatprep.subr.bf16.mxu0 0
  %145 = vmatpush2.bf16.msra.mxu0 0
  %146 = vmatprep.subr.bf16.mxu0 0
  %147 = vmatpush2.bf16.msra.mxu0 0
  %148 = vmatprep.mubr.bf16.mxu0 0
  %149 = vmatmul.mubr.bf16.gmra.mxu0 %v114
  %v150 = vpop.f32.mrf.mxu0
  %v151 = vadd.f32 %v40, %v150
  %v152 = vpop.f32.mrf.mxu0
  %v153 = vadd.f32 %v40, %v152
  %v154 = vpop.f32.mrf.mxu0
  %v155 = vadd.f32 %v45, %v154
  %v156 = vpop.f32.mrf.mxu0
  %v157 = vadd.f32 %v45, %v156
  %158 = vdwg.mxu0
  %159 = vmatprep.subr.bf16.mxu0 0
  %160 = vmatpush1.bf16.msra.mxu0 0
  %161 = vmatprep.subr.bf16.mxu0 0
  %162 = vmatpush1.bf16.msra.mxu0 0
  %163 = vmatprep.subr.bf16.mxu0 0
  %164 = vmatpush1.bf16.msra.mxu0 0
  %165 = vmatprep.subr.bf16.mxu0 0
  %166 = vmatpush1.bf16.msra.mxu0 0
  %167 = vmatprep.subr.bf16.mxu0 0
  %168 = vmatpush1.bf16.msra.mxu0 0
  %169 = vmatprep.subr.bf16.mxu0 %v99
  %170 = vmatpush1.bf16.msra.mxu0 %v98
  %171 = vmatprep.subr.bf16.mxu0 %v95
  %172 = vmatpush1.bf16.msra.mxu0 %v94
  %173 = vmatprep.subr.bf16.mxu0 %v91
  %174 = vmatpush1.bf16.msra.mxu0 %v90
  %175 = vmatprep.subr.bf16.mxu0 0
  %176 = vmatpush2.bf16.msra.mxu0 0
  %177 = vmatprep.subr.bf16.mxu0 0
  %178 = vmatpush2.bf16.msra.mxu0 0
  %179 = vmatprep.subr.bf16.mxu0 0
  %180 = vmatpush2.bf16.msra.mxu0 0
  %181 = vmatprep.subr.bf16.mxu0 0
  %182 = vmatpush2.bf16.msra.mxu0 0
  %183 = vmatprep.subr.bf16.mxu0 0
  %184 = vmatpush2.bf16.msra.mxu0 0
  %185 = vmatprep.subr.bf16.mxu0 0
  %186 = vmatpush2.bf16.msra.mxu0 0
  %187 = vmatprep.subr.bf16.mxu0 0
  %188 = vmatpush2.bf16.msra.mxu0 0
  %189 = vmatprep.subr.bf16.mxu0 0
  %190 = vmatpush2.bf16.msra.mxu0 0
  %191 = vmatprep.mubr.bf16.mxu0 0
  %192 = vmatmul.mubr.bf16.gmra.mxu0 %v114
  %v193 = vpop.f32.mrf.mxu0
  %v194 = vadd.f32 %v40, %v193
  %v195 = vpop.f32.mrf.mxu0
  %v196 = vadd.f32 %v40, %v195
  %v197 = vpop.f32.mrf.mxu0
  %v198 = vadd.f32 %v45, %v197
  %v199 = vpop.f32.mrf.mxu0
  %v200 = vadd.f32 %v45, %v199
  %201 = vdwg.mxu0
  %v202 = vadd.f32 %v151, %v153
  %v203 = vadd.f32 %v202, %v194
  %v204 = vadd.f32 %v203, %v196
  %205 = vadd.xlane.f32.xlu0 %v204
  %v206 = vpop.xlane.xlu0 %205
  %v207 = vadd.f32 %v155, %v157
  %v208 = vadd.f32 %v207, %v198
  %v209 = vadd.f32 %v208, %v200
  %210 = vadd.xlane.f32.xlu0 %v209
  %v211 = vpop.xlane.xlu0 %210
  %v212 = vmul.f32 %v206, 0.001953125
  %v213 = vmul.f32 %v211, 0.001953125
  %v214 = vsub.f32 %v151, %v212
  %v215 = vsub.f32 %v153, %v212
  %v216 = vsub.f32 %v194, %v212
  %v217 = vsub.f32 %v196, %v212
  %v218 = vsub.f32 %v155, %v213
  %v219 = vsub.f32 %v157, %v213
  %v220 = vsub.f32 %v198, %v213
  %v221 = vsub.f32 %v200, %v213
  %v222 = vmul.f32 %v214, %v214
  %v223 = vmul.f32 %v215, %v215
  %v224 = vmul.f32 %v216, %v216
  %v225 = vmul.f32 %v217, %v217
  %v226 = vmul.f32 %v218, %v218
  %v227 = vmul.f32 %v219, %v219
  %v228 = vmul.f32 %v220, %v220
  %v229 = vmul.f32 %v221, %v221
  %v230 = vadd.f32 %v222, %v223
  %v231 = vadd.f32 %v230, %v224
  %v232 = vadd.f32 %v231, %v225
  %233 = vadd.xlane.f32.xlu0 %v232
  %v234 = vpop.xlane.xlu0 %233
  %v235 = vadd.f32 %v226, %v227
  %v236 = vadd.f32 %v235, %v228
  %v237 = vadd.f32 %v236, %v229
  %238 = vadd.xlane.f32.xlu0 %v237
  %v239 = vpop.xlane.xlu0 %238
  %v240 = vmul.f32 %v234, 0.001953125
  %v241 = vmul.f32 %v239, 0.001953125
  %v242 = vld [vmem:[%s3] sm:$0xff]
  %v243 = vld [vmem:[%s3 + $0x8] sm:$0xff]
  %v244 = vadd.f32 %v240, 1e-05
  %v245 = vadd.f32 %v241, 1e-05
  %v246 = vrsqrt.pop %v244
  %v247 = vrsqrt.pop %v245
  %v248 = vmul.f32 %v242, %v246
  %v249 = vmul.f32 %v243, %v247
  %251 = vset.pattern.permute.xlu0 0
  %252 = vperm.xlu0 %251, %v248
  %v253 = vpop.permute.xlu0 %252
  %256 = vset.pattern.permute.xlu0 0
  %257 = vperm.xlu0 %256, %v249
  %v258 = vpop.permute.xlu0 %257
  %v260 = vmul.f32 %v214, %v253
  %v261 = vmul.f32 %v215, %v253
  %v262 = vmul.f32 %v216, %v253
  %v263 = vmul.f32 %v217, %v253
  %v264 = vmul.f32 %v218, %v258
  %v265 = vmul.f32 %v219, %v258
  %v266 = vmul.f32 %v220, %v258
  %v267 = vmul.f32 %v221, %v258
  %v268 = vld [vmem:[%s4] sm:$0xff]
  %v269 = vld [vmem:[%s4 + $0x8] sm:$0xff]
  %271 = vset.pattern.permute.xlu0 0
  %272 = vperm.xlu0 %271, %v268
  %v273 = vpop.permute.xlu0 %272
  %276 = vset.pattern.permute.xlu0 0
  %277 = vperm.xlu0 %276, %v269
  %v278 = vpop.permute.xlu0 %277
  %v280 = vadd.f32 %v260, %v273
  %v281 = vadd.f32 %v261, %v273
  %v282 = vadd.f32 %v262, %v273
  %v283 = vadd.f32 %v263, %v273
  %v284 = vadd.f32 %v264, %v278
  %v285 = vadd.f32 %v265, %v278
  %v286 = vadd.f32 %v266, %v278
  %v287 = vadd.f32 %v267, %v278
  %vm288 = vcmp.ge.f32.partialorder %v280, 0.0
  %vm289 = vcmp.ge.f32.partialorder %v281, 0.0
  %vm290 = vcmp.ge.f32.partialorder %v282, 0.0
  %vm291 = vcmp.ge.f32.partialorder %v283, 0.0
  %vm292 = vcmp.ge.f32.partialorder %v284, 0.0
  %vm293 = vcmp.ge.f32.partialorder %v285, 0.0
  %vm294 = vcmp.ge.f32.partialorder %v286, 0.0
  %vm295 = vcmp.ge.f32.partialorder %v287, 0.0
  %v296 = vmul.f32 %v280, 0.2
  %v297 = vmul.f32 %v281, 0.2
  %v298 = vmul.f32 %v282, 0.2
  %v299 = vmul.f32 %v283, 0.2
  %v300 = vmul.f32 %v284, 0.2
  %v301 = vmul.f32 %v285, 0.2
  %v302 = vmul.f32 %v286, 0.2
  %v303 = vmul.f32 %v287, 0.2
  %v304 = vsel %vm288, %v280, %v296
  %v305 = vsel %vm289, %v281, %v297
  %v306 = vsel %vm290, %v282, %v298
  %v307 = vsel %vm291, %v283, %v299
  %v308 = vsel %vm292, %v284, %v300
  %v309 = vsel %vm293, %v285, %v301
  %v310 = vsel %vm294, %v286, %v302
  %v311 = vsel %vm295, %v287, %v303
  %v312 = vpack.c.bf16 %v308, %v304
  %v313 = vpack.c.bf16 %v309, %v305
  %v314 = vpack.c.bf16 %v310, %v306
  %v315 = vpack.c.bf16 %v311, %v307
  %v320 = vunpack.c.l.b16 %v312
  %v321 = vunpack.c.l.b16 %v313
  %v322 = vunpack.c.l.b16 %v314
  %v323 = vunpack.c.l.b16 %v315
  %v324 = vunpack.c.h.b16 %v312
  %v325 = vunpack.c.h.b16 %v313
  %v326 = vunpack.c.h.b16 %v314
  %v327 = vunpack.c.h.b16 %v315
  %v328 = vpack.c.b16 %v321, %v320
  %v329 = vpack.c.b16 %v323, %v322
  %v330 = vpack.c.b16 %v325, %v324
  %v331 = vpack.c.b16 %v327, %v326
  %336 = vst [vmem:[%s5] sm:$0xff] %v328
  %337 = vst [vmem:[%s5 + $0x8] sm:$0xff] %v329
  %338 = vst [vmem:[%s5 + $0x10] sm:$0xff] %v330
  %339 = vst [vmem:[%s5 + $0x18] sm:$0xff] %v331
  // Predicated region
  $region22: #{discriminator_forward.5} parent=0 // pred_check
    _
  $region23: #{discriminator_forward.5} parent=0 // pred_check_branch
    %341 = sbr.rel (0) target = $region25
  $region24: #{discriminator_forward.5} parent=0 // pred_region
    _
  $region25: #{discriminator_forward.5} parent=0 // pred_fallthru
    _
  // Predicated region
  $region26: #{discriminator_forward.5} parent=0 // pred_check
    _
  $region27: #{discriminator_forward.5} parent=0 // pred_check_branch
    %343 = sbr.rel (0) target = $region29
  $region28: #{discriminator_forward.5} parent=0 // pred_region
    _
  $region29: #{discriminator_forward.5} parent=0 // pred_fallthru
    _

// kernel: discriminator_forward.6
$region0: #{discriminator_forward.6}
  #allocation0 [shape = 'u32[]', space=smem, size = 0x4, offset = 0x4, fixed_abs, tag = 'smem constant byte address 0x4 - core index']
  #allocation1 [shape = 'u32[144,128]{1,0:T(1,128)}', space=vmem, size = 0x12000, scoped, tag = 'internal scratch']
  %s0 = inlined_call_operand.vmem [shape: bf16[256,128], index: 0, kind: input, shape index: {}]
  %s1 = inlined_call_operand.vmem [shape: bf16[32,256], index: 1, kind: input, shape index: {}]
  %s2 = inlined_call_operand.vmem [shape: f32[32,1], index: 2, kind: input, shape index: {}]
  %s3 = inlined_call_operand.vmem [shape: f32[32,1], index: 3, kind: input, shape index: {}]
  %s4 = inlined_call_operand.vmem [shape: f32[32,1], index: 4, kind: input, shape index: {}]
  %s5 = inlined_call_operand.vmem [shape: bf16[32,128], index: 5, kind: output, shape index: {}]
  %s6 = sld [smem:[#allocation0]]
  $region30: #{discriminator_forward.6} parent=0
    _
  %s8 = ssub.s32 1, %s6
  %s9 = scalar_select 0, %s8, %s6
  // Predicated region
  $region2: #{discriminator_forward.6} parent=0 // pred_check
    _
  $region3: #{discriminator_forward.6} parent=0 // pred_check_branch
    %11 = sbr.rel (0) target = $region5
  $region4: #{discriminator_forward.6} parent=0 // pred_region
    _
  $region5: #{discriminator_forward.6} parent=0 // pred_fallthru
    _
  // Predicated region
  $region6: #{discriminator_forward.6} parent=0 // pred_check
    _
  $region7: #{discriminator_forward.6} parent=0 // pred_check_branch
    %13 = sbr.rel (0) target = $region9
  $region8: #{discriminator_forward.6} parent=0 // pred_region
    _
  $region9: #{discriminator_forward.6} parent=0 // pred_fallthru
    _
  // Predicated region
  $region10: #{discriminator_forward.6} parent=0 // pred_check
    _
  $region11: #{discriminator_forward.6} parent=0 // pred_check_branch
    %15 = sbr.rel (0) target = $region13
  $region12: #{discriminator_forward.6} parent=0 // pred_region
    _
  $region13: #{discriminator_forward.6} parent=0 // pred_fallthru
    _
  // Predicated region
  $region14: #{discriminator_forward.6} parent=0 // pred_check
    _
  $region15: #{discriminator_forward.6} parent=0 // pred_check_branch
    %17 = sbr.rel (0) target = $region17
  $region16: #{discriminator_forward.6} parent=0 // pred_region
    _
  $region17: #{discriminator_forward.6} parent=0 // pred_fallthru
    _
  // Predicated region
  $region18: #{discriminator_forward.6} parent=0 // pred_check
    _
  $region19: #{discriminator_forward.6} parent=0 // pred_check_branch
    %19 = sbr.rel (0) target = $region21
  $region20: #{discriminator_forward.6} parent=0 // pred_region
    _
  $region21: #{discriminator_forward.6} parent=0 // pred_fallthru
    _
  %v21 = vld [vmem:[%s1] sm:$0xff]
  %v22 = vld [vmem:[%s1 + $0x8] sm:$0xff]
  %v23 = vld [vmem:[%s1 + $0x10] sm:$0xff]
  %v24 = vld [vmem:[%s1 + $0x18] sm:$0xff]
  %v25 = vld [vmem:[%s0] sm:$0xf]
  %v26 = vld [vmem:[%s0 + $0x4] sm:$0xf]
  %v27 = vld [vmem:[%s0 + $0x8] sm:$0xf]
  %v28 = vld [vmem:[%s0 + $0xc] sm:$0xf]
  %v29 = vld [vmem:[%s0 + $0x10] sm:$0xf]
  %v30 = vld [vmem:[%s0 + $0x14] sm:$0xf]
  %v31 = vld [vmem:[%s0 + $0x18] sm:$0xf]
  %v32 = vld [vmem:[%s0 + $0x1c] sm:$0xf]
  %v33 = vld [vmem:[%s0 + $0x20] sm:$0xf]
  %v34 = vld [vmem:[%s0 + $0x24] sm:$0xf]
  %v35 = vld [vmem:[%s0 + $0x28] sm:$0xf]
  %v36 = vld [vmem:[%s0 + $0x2c] sm:$0xf]
  %v37 = vld [vmem:[%s0 + $0x30] sm:$0xf]
  %v38 = vld [vmem:[%s0 + $0x34] sm:$0xf]
  %v39 = vld [vmem:[%s0 + $0x38] sm:$0xf]
  %v40 = vld [vmem:[%s0 + $0x3c] sm:$0xf]
  %v41 = vld [vmem:[%s0 + $0x40] sm:$0xf]
  %v42 = vld [vmem:[%s0 + $0x44] sm:$0xf]
  %v43 = vld [vmem:[%s0 + $0x48] sm:$0xf]
  %v44 = vld [vmem:[%s0 + $0x4c] sm:$0xf]
  %v45 = vld [vmem:[%s0 + $0x50] sm:$0xf]
  %v46 = vld [vmem:[%s0 + $0x54] sm:$0xf]
  %v47 = vld [vmem:[%s0 + $0x58] sm:$0xf]
  %v48 = vld [vmem:[%s0 + $0x5c] sm:$0xf]
  %v49 = vld [vmem:[%s0 + $0x60] sm:$0xf]
  %v50 = vld [vmem:[%s0 + $0x64] sm:$0xf]
  %v51 = vld [vmem:[%s0 + $0x68] sm:$0xf]
  %v52 = vld [vmem:[%s0 + $0x6c] sm:$0xf]
  %v53 = vld [vmem:[%s0 + $0x70] sm:$0xf]
  %v54 = vld [vmem:[%s0 + $0x74] sm:$0xf]
  %v55 = vld [vmem:[%s0 + $0x78] sm:$0xf]
  %v56 = vld [vmem:[%s0 + $0x7c] sm:$0xf]
  %v57 = vld [vmem:[%s2] sm:$0xff]
  %v58 = vld [vmem:[%s2 + $0x8] sm:$0xff]
  %v59 = vld [vmem:[%s2 + $0x10] sm:$0xff]
  %v60 = vld [vmem:[%s2 + $0x18] sm:$0xff]
  %62 = vset.pattern.permute.xlu0 0
  %63 = vperm.xlu0 %62, %v57
  %v64 = vpop.permute.xlu0 %63
  %67 = vset.pattern.permute.xlu0 0
  %68 = vperm.xlu0 %67, %v58
  %v69 = vpop.permute.xlu0 %68
  %72 = vset.pattern.permute.xlu0 0
  %73 = vperm.xlu0 %72, %v59
  %v74 = vpop.permute.xlu0 %73
  %77 = vset.pattern.permute.xlu0 0
  %78 = vperm.xlu0 %77, %v60
  %v79 = vpop.permute.xlu0 %78
  %v85 = vunpack.c.l.b16 %v21
  %v86 = vunpack.c.h.b16 %v21
  %v87 = vunpack.c.l.b16 %v22
  %v88 = vunpack.c.h.b16 %v22
  %v89 = vunpack.c.l.b16 %v23
  %v90 = vunpack.c.h.b16 %v23
  %v91 = vunpack.c.l.b16 %v24
  %v92 = vunpack.c.h.b16 %v24
  %v93 = vpack.c.b16 %v87, %v85
  %v94 = vpack.c.b16 %v88, %v86
  %v95 = vpack.c.b16 %v91, %v89
  %v96 = vpack.c.b16 %v92, %v90
  %v133 = vunpack.c.l.b16 %v25
  %v134 = vunpack.c.l.b16 %v26
  %v135 = vunpack.c.l.b16 %v27
  %v136 = vunpack.c.l.b16 %v28
  %v137 = vunpack.c.l.b16 %v29
  %v138 = vunpack.c.l.b16 %v30
  %v139 = vunpack.c.l.b16 %v31
  %v140 = vunpack.c.l.b16 %v32
  %v141 = vunpack.c.l.b16 %v33
  %v142 = vunpack.c.l.b16 %v34
  %v143 = vunpack.c.l.b16 %v35
  %v144 = vunpack.c.l.b16 %v36
  %v145 = vunpack.c.l.b16 %v37
  %v146 = vunpack.c.l.b16 %v38
  %v147 = vunpack.c.l.b16 %v39
  %v148 = vunpack.c.l.b16 %v40
  %v149 = vunpack.c.l.b16 %v41
  %v150 = vunpack.c.l.b16 %v42
  %v151 = vunpack.c.l.b16 %v43
  %v152 = vunpack.c.l.b16 %v44
  %v153 = vunpack.c.l.b16 %v45
  %v154 = vunpack.c.l.b16 %v46
  %v155 = vunpack.c.l.b16 %v47
  %v156 = vunpack.c.l.b16 %v48
  %v157 = vunpack.c.l.b16 %v49
  %v158 = vunpack.c.l.b16 %v50
  %v159 = vunpack.c.l.b16 %v51
  %v160 = vunpack.c.l.b16 %v52
  %v161 = vunpack.c.l.b16 %v53
  %v162 = vunpack.c.l.b16 %v54
  %v163 = vunpack.c.l.b16 %v55
  %v164 = vunpack.c.l.b16 %v56
  %v165 = vpack.c.b16 %v134, %v133
  %v166 = vpack.c.b16 %v136, %v135
  %v167 = vpack.c.b16 %v138, %v137
  %v168 = vpack.c.b16 %v140, %v139
  %v169 = vpack.c.b16 %v142, %v141
  %v170 = vpack.c.b16 %v144, %v143
  %v171 = vpack.c.b16 %v146, %v145
  %v172 = vpack.c.b16 %v148, %v147
  %v173 = vpack.c.b16 %v150, %v149
  %v174 = vpack.c.b16 %v152, %v151
  %v175 = vpack.c.b16 %v154, %v153
  %v176 = vpack.c.b16 %v156, %v155
  %v177 = vpack.c.b16 %v158, %v157
  %v178 = vpack.c.b16 %v160, %v159
  %v179 = vpack.c.b16 %v162, %v161
  %v180 = vpack.c.b16 %v164, %v163
  %197 = vmatprep.subr.bf16.mxu0 0
  %198 = vmatpush1.bf16.msra.mxu0 %v172
  %199 = vmatprep.subr.bf16.mxu0 0
  %200 = vmatpush1.bf16.msra.mxu0 %v171
  %201 = vmatprep.subr.bf16.mxu0 0
  %202 = vmatpush1.bf16.msra.mxu0 %v170
  %203 = vmatprep.subr.bf16.mxu0 0
  %204 = vmatpush1.bf16.msra.mxu0 %v169
  %205 = vmatprep.subr.bf16.mxu0 0
  %206 = vmatpush1.bf16.msra.mxu0 %v168
  %207 = vmatprep.subr.bf16.mxu0 0
  %208 = vmatpush1.bf16.msra.mxu0 %v167
  %209 = vmatprep.subr.bf16.mxu0 0
  %210 = vmatpush1.bf16.msra.mxu0 %v166
  %211 = vmatprep.subr.bf16.mxu0 0
  %212 = vmatpush1.bf16.msra.mxu0 %v165
  %213 = vmatprep.subr.bf16.mxu0 0
  %214 = vmatpush2.bf16.msra.mxu0 %v180
  %215 = vmatprep.subr.bf16.mxu0 0
  %216 = vmatpush2.bf16.msra.mxu0 %v179
  %217 = vmatprep.subr.bf16.mxu0 0
  %218 = vmatpush2.bf16.msra.mxu0 %v178
  %219 = vmatprep.subr.bf16.mxu0 0
  %220 = vmatpush2.bf16.msra.mxu0 %v177
  %221 = vmatprep.subr.bf16.mxu0 0
  %222 = vmatpush2.bf16.msra.mxu0 %v176
  %223 = vmatprep.subr.bf16.mxu0 0
  %224 = vmatpush2.bf16.msra.mxu0 %v175
  %225 = vmatprep.subr.bf16.mxu0 0
  %226 = vmatpush2.bf16.msra.mxu0 %v174
  %227 = vmatprep.subr.bf16.mxu0 0
  %228 = vmatpush2.bf16.msra.mxu0 %v173
  %229 = vmatprep.mubr.bf16.mxu0 %v94
  %230 = vmatmul.mubr.bf16.gmra.mxu0 %v93
  %v231 = vpop.f32.mrf.mxu0
  %v232 = vadd.f32 %v64, %v231
  %v233 = vpop.f32.mrf.mxu0
  %v234 = vpop.f32.mrf.mxu0
  %v235 = vadd.f32 %v69, %v234
  %v236 = vpop.f32.mrf.mxu0
  %237 = vmatprep.mubr.bf16.mxu0 %v96
  %238 = vmatmul.mubr.bf16.gmra.mxu0 %v95
  %v239 = vpop.f32.mrf.mxu0
  %v240 = vadd.f32 %v74, %v239
  %v241 = vpop.f32.mrf.mxu0
  %v242 = vpop.f32.mrf.mxu0
  %v243 = vadd.f32 %v79, %v242
  %v244 = vpop.f32.mrf.mxu0
  %245 = vdwg.mxu0
  %246 = vadd.xlane.f32.xlu0 %v232
  %v247 = vpop.xlane.xlu0 %246
  %248 = vadd.xlane.f32.xlu0 %v235
  %v249 = vpop.xlane.xlu0 %248
  %250 = vadd.xlane.f32.xlu0 %v240
  %v251 = vpop.xlane.xlu0 %250
  %252 = vadd.xlane.f32.xlu0 %v243
  %v253 = vpop.xlane.xlu0 %252
  %v254 = vmul.f32 %v247, 0.0078125
  %v255 = vmul.f32 %v249, 0.0078125
  %v256 = vmul.f32 %v251, 0.0078125
  %v257 = vmul.f32 %v253, 0.0078125
  %v258 = vsub.f32 %v232, %v254
  %v259 = vsub.f32 %v235, %v255
  %v260 = vsub.f32 %v240, %v256
  %v261 = vsub.f32 %v243, %v257
  %v262 = vmul.f32 %v258, %v258
  %v263 = vmul.f32 %v259, %v259
  %v264 = vmul.f32 %v260, %v260
  %v265 = vmul.f32 %v261, %v261
  %266 = vadd.xlane.f32.xlu0 %v262
  %v267 = vpop.xlane.xlu0 %266
  %268 = vadd.xlane.f32.xlu0 %v263
  %v269 = vpop.xlane.xlu0 %268
  %270 = vadd.xlane.f32.xlu0 %v264
  %v271 = vpop.xlane.xlu0 %270
  %272 = vadd.xlane.f32.xlu0 %v265
  %v273 = vpop.xlane.xlu0 %272
  %v274 = vmul.f32 %v267, 0.0078125
  %v275 = vmul.f32 %v269, 0.0078125
  %v276 = vmul.f32 %v271, 0.0078125
  %v277 = vmul.f32 %v273, 0.0078125
  %v278 = vld [vmem:[%s3] sm:$0xff]
  %v279 = vld [vmem:[%s3 + $0x8] sm:$0xff]
  %v280 = vld [vmem:[%s3 + $0x10] sm:$0xff]
  %v281 = vld [vmem:[%s3 + $0x18] sm:$0xff]
  %v282 = vadd.f32 %v274, 1e-05
  %v283 = vadd.f32 %v275, 1e-05
  %v284 = vadd.f32 %v276, 1e-05
  %v285 = vadd.f32 %v277, 1e-05
  %v286 = vrsqrt.pop %v282
  %v287 = vrsqrt.pop %v283
  %v288 = vrsqrt.pop %v284
  %v289 = vrsqrt.pop %v285
  %v290 = vmul.f32 %v278, %v286
  %v291 = vmul.f32 %v279, %v287
  %v292 = vmul.f32 %v280, %v288
  %v293 = vmul.f32 %v281, %v289
  %295 = vset.pattern.permute.xlu0 0
  %296 = vperm.xlu0 %295, %v290
  %v297 = vpop.permute.xlu0 %296
  %300 = vset.pattern.permute.xlu0 0
  %301 = vperm.xlu0 %300, %v291
  %v302 = vpop.permute.xlu0 %301
  %305 = vset.pattern.permute.xlu0 0
  %306 = vperm.xlu0 %305, %v292
  %v307 = vpop.permute.xlu0 %306
  %310 = vset.pattern.permute.xlu0 0
  %311 = vperm.xlu0 %310, %v293
  %v312 = vpop.permute.xlu0 %311
  %v314 = vmul.f32 %v258, %v297
  %v315 = vmul.f32 %v259, %v302
  %v316 = vmul.f32 %v260, %v307
  %v317 = vmul.f32 %v261, %v312
  %v318 = vld [vmem:[%s4] sm:$0xff]
  %v319 = vld [vmem:[%s4 + $0x8] sm:$0xff]
  %v320 = vld [vmem:[%s4 + $0x10] sm:$0xff]
  %v321 = vld [vmem:[%s4 + $0x18] sm:$0xff]
  %323 = vset.pattern.permute.xlu0 0
  %324 = vperm.xlu0 %323, %v318
  %v325 = vpop.permute.xlu0 %324
  %328 = vset.pattern.permute.xlu0 0
  %329 = vperm.xlu0 %328, %v319
  %v330 = vpop.permute.xlu0 %329
  %333 = vset.pattern.permute.xlu0 0
  %334 = vperm.xlu0 %333, %v320
  %v335 = vpop.permute.xlu0 %334
  %338 = vset.pattern.permute.xlu0 0
  %339 = vperm.xlu0 %338, %v321
  %v340 = vpop.permute.xlu0 %339
  %v342 = vadd.f32 %v314, %v325
  %v343 = vadd.f32 %v315, %v330
  %v344 = vadd.f32 %v316, %v335
  %v345 = vadd.f32 %v317, %v340
  %vm346 = vcmp.ge.f32.partialorder %v342, 0.0
  %vm347 = vcmp.ge.f32.partialorder %v343, 0.0
  %vm348 = vcmp.ge.f32.partialorder %v344, 0.0
  %vm349 = vcmp.ge.f32.partialorder %v345, 0.0
  %v350 = vmul.f32 %v342, 0.2
  %v351 = vmul.f32 %v343, 0.2
  %v352 = vmul.f32 %v344, 0.2
  %v353 = vmul.f32 %v345, 0.2
  %v354 = vsel %vm346, %v342, %v350
  %v355 = vsel %vm347, %v343, %v351
  %v356 = vsel %vm348, %v344, %v352
  %v357 = vsel %vm349, %v345, %v353
  %v358 = vpack.c.bf16 %v355, %v354
  %v359 = vpack.c.bf16 %v357, %v356
  %v362 = vunpack.c.l.b16 %v358
  %v363 = vunpack.c.h.b16 %v358
  %v364 = vunpack.c.l.b16 %v359
  %v365 = vunpack.c.h.b16 %v359
  %v366 = vpack.c.b16 %v362, %v362
  %v367 = vpack.c.b16 %v363, %v363
  %v368 = vpack.c.b16 %v364, %v364
  %v369 = vpack.c.b16 %v365, %v365
  %374 = vst [vmem:[%s5] sm:$0xf] %v366
  %375 = vst [vmem:[%s5 + $0x4] sm:$0xf] %v367
  %376 = vst [vmem:[%s5 + $0x8] sm:$0xf] %v368
  %377 = vst [vmem:[%s5 + $0xc] sm:$0xf] %v369
  // Predicated region
  $region22: #{discriminator_forward.6} parent=0 // pred_check
    _
  $region23: #{discriminator_forward.6} parent=0 // pred_check_branch
    %379 = sbr.rel (0) target = $region25
  $region24: #{discriminator_forward.6} parent=0 // pred_region
    _
  $region25: #{discriminator_forward.6} parent=0 // pred_fallthru
    _
  // Predicated region
  $region26: #{discriminator_forward.6} parent=0 // pred_check
    _
  $region27: #{discriminator_forward.6} parent=0 // pred_check_branch
    %381 = sbr.rel (0) target = $region29
  $region28: #{discriminator_forward.6} parent=0 // pred_region
    _
  $region29: #{discriminator_forward.6} parent=0 // pred_fallthru
    _

// kernel: discriminator_forward.7
$region0: #{discriminator_forward.7}
  #allocation0 [shape = 'u32[]', space=smem, size = 0x4, offset = 0x4, fixed_abs, tag = 'smem constant byte address 0x4 - core index']
  #allocation1 [shape = 'u32[144,128]{1,0:T(1,128)}', space=vmem, size = 0x12000, scoped, tag = 'internal scratch']
  %s0 = inlined_call_operand.vmem [shape: bf16[512,32], index: 0, kind: input, shape index: {}]
  %s1 = inlined_call_operand.vmem [shape: bf16[64,512], index: 1, kind: input, shape index: {}]
  %s2 = inlined_call_operand.vmem [shape: f32[64,1], index: 2, kind: input, shape index: {}]
  %s3 = inlined_call_operand.vmem [shape: f32[64,1], index: 3, kind: input, shape index: {}]
  %s4 = inlined_call_operand.vmem [shape: f32[64,1], index: 4, kind: input, shape index: {}]
  %s5 = inlined_call_operand.vmem [shape: bf16[64,32], index: 5, kind: output, shape index: {}]
  %s6 = sld [smem:[#allocation0]]
  $region30: #{discriminator_forward.7} parent=0
    _
  %s8 = ssub.s32 1, %s6
  %s9 = scalar_select 0, %s8, %s6
  // Predicated region
  $region2: #{discriminator_forward.7} parent=0 // pred_check
    _
  $region3: #{discriminator_forward.7} parent=0 // pred_check_branch
    %11 = sbr.rel (0) target = $region5
  $region4: #{discriminator_forward.7} parent=0 // pred_region
    _
  $region5: #{discriminator_forward.7} parent=0 // pred_fallthru
    _
  // Predicated region
  $region6: #{discriminator_forward.7} parent=0 // pred_check
    _
  $region7: #{discriminator_forward.7} parent=0 // pred_check_branch
    %13 = sbr.rel (0) target = $region9
  $region8: #{discriminator_forward.7} parent=0 // pred_region
    _
  $region9: #{discriminator_forward.7} parent=0 // pred_fallthru
    _
  // Predicated region
  $region10: #{discriminator_forward.7} parent=0 // pred_check
    _
  $region11: #{discriminator_forward.7} parent=0 // pred_check_branch
    %15 = sbr.rel (0) target = $region13
  $region12: #{discriminator_forward.7} parent=0 // pred_region
    _
  $region13: #{discriminator_forward.7} parent=0 // pred_fallthru
    _
  // Predicated region
  $region14: #{discriminator_forward.7} parent=0 // pred_check
    _
  $region15: #{discriminator_forward.7} parent=0 // pred_check_branch
    %17 = sbr.rel (0) target = $region17
  $region16: #{discriminator_forward.7} parent=0 // pred_region
    _
  $region17: #{discriminator_forward.7} parent=0 // pred_fallthru
    _
  // Predicated region
  $region18: #{discriminator_forward.7} parent=0 // pred_check
    _
  $region19: #{discriminator_forward.7} parent=0 // pred_check_branch
    %19 = sbr.rel (0) target = $region21
  $region20: #{discriminator_forward.7} parent=0 // pred_region
    _
  $region21: #{discriminator_forward.7} parent=0 // pred_fallthru
    _
  %v21 = vld [vmem:[%s1] sm:$0xff]
  %v22 = vld [vmem:[%s1 + $0x8] sm:$0xff]
  %v23 = vld [vmem:[%s1 + $0x10] sm:$0xff]
  %v24 = vld [vmem:[%s1 + $0x18] sm:$0xff]
  %v25 = vld [vmem:[%s1 + $0x20] sm:$0xff]
  %v26 = vld [vmem:[%s1 + $0x28] sm:$0xff]
  %v27 = vld [vmem:[%s1 + $0x30] sm:$0xff]
  %v28 = vld [vmem:[%s1 + $0x38] sm:$0xff]
  %v29 = vld [vmem:[%s1 + $0x40] sm:$0xff]
  %v30 = vld [vmem:[%s1 + $0x48] sm:$0xff]
  %v31 = vld [vmem:[%s1 + $0x50] sm:$0xff]
  %v32 = vld [vmem:[%s1 + $0x58] sm:$0xff]
  %v33 = vld [vmem:[%s1 + $0x60] sm:$0xff]
  %v34 = vld [vmem:[%s1 + $0x68] sm:$0xff]
  %v35 = vld [vmem:[%s1 + $0x70] sm:$0xff]
  %v36 = vld [vmem:[%s1 + $0x78] sm:$0xff]
  %v37 = vld [vmem:[%s0] sm:$0xf]
  %v38 = vld [vmem:[%s0 + $0x4] sm:$0xf]
  %v39 = vld [vmem:[%s0 + $0x8] sm:$0xf]
  %v40 = vld [vmem:[%s0 + $0xc] sm:$0xf]
  %v41 = vld [vmem:[%s0 + $0x10] sm:$0xf]
  %v42 = vld [vmem:[%s0 + $0x14] sm:$0xf]
  %v43 = vld [vmem:[%s0 + $0x18] sm:$0xf]
  %v44 = vld [vmem:[%s0 + $0x1c] sm:$0xf]
  %v45 = vld [vmem:[%s0 + $0x20] sm:$0xf]
  %v46 = vld [vmem:[%s0 + $0x24] sm:$0xf]
  %v47 = vld [vmem:[%s0 + $0x28] sm:$0xf]
  %v48 = vld [vmem:[%s0 + $0x2c] sm:$0xf]
  %v49 = vld [vmem:[%s0 + $0x30] sm:$0xf]
  %v50 = vld [vmem:[%s0 + $0x34] sm:$0xf]
  %v51 = vld [vmem:[%s0 + $0x38] sm:$0xf]
  %v52 = vld [vmem:[%s0 + $0x3c] sm:$0xf]
  %v53 = vld [vmem:[%s0 + $0x40] sm:$0xf]
  %v54 = vld [vmem:[%s0 + $0x44] sm:$0xf]
  %v55 = vld [vmem:[%s0 + $0x48] sm:$0xf]
  %v56 = vld [vmem:[%s0 + $0x4c] sm:$0xf]
  %v57 = vld [vmem:[%s0 + $0x50] sm:$0xf]
  %v58 = vld [vmem:[%s0 + $0x54] sm:$0xf]
  %v59 = vld [vmem:[%s0 + $0x58] sm:$0xf]
  %v60 = vld [vmem:[%s0 + $0x5c] sm:$0xf]
  %v61 = vld [vmem:[%s0 + $0x60] sm:$0xf]
  %v62 = vld [vmem:[%s0 + $0x64] sm:$0xf]
  %v63 = vld [vmem:[%s0 + $0x68] sm:$0xf]
  %v64 = vld [vmem:[%s0 + $0x6c] sm:$0xf]
  %v65 = vld [vmem:[%s0 + $0x70] sm:$0xf]
  %v66 = vld [vmem:[%s0 + $0x74] sm:$0xf]
  %v67 = vld [vmem:[%s0 + $0x78] sm:$0xf]
  %v68 = vld [vmem:[%s0 + $0x7c] sm:$0xf]
  %v69 = vld [vmem:[%s0 + $0x80] sm:$0xf]
  %v70 = vld [vmem:[%s0 + $0x84] sm:$0xf]
  %v71 = vld [vmem:[%s0 + $0x88] sm:$0xf]
  %v72 = vld [vmem:[%s0 + $0x8c] sm:$0xf]
  %v73 = vld [vmem:[%s0 + $0x90] sm:$0xf]
  %v74 = vld [vmem:[%s0 + $0x94] sm:$0xf]
  %v75 = vld [vmem:[%s0 + $0x98] sm:$0xf]
  %v76 = vld [vmem:[%s0 + $0x9c] sm:$0xf]
  %v77 = vld [vmem:[%s0 + $0xa0] sm:$0xf]
  %v78 = vld [vmem:[%s0 + $0xa4] sm:$0xf]
  %v79 = vld [vmem:[%s0 + $0xa8] sm:$0xf]
  %v80 = vld [vmem:[%s0 + $0xac] sm:$0xf]
  %v81 = vld [vmem:[%s0 + $0xb0] sm:$0xf]
  %v82 = vld [vmem:[%s0 + $0xb4] sm:$0xf]
  %v83 = vld [vmem:[%s0 + $0xb8] sm:$0xf]
  %v84 = vld [vmem:[%s0 + $0xbc] sm:$0xf]
  %v85 = vld [vmem:[%s0 + $0xc0] sm:$0xf]
  %v86 = vld [vmem:[%s0 + $0xc4] sm:$0xf]
  %v87 = vld [vmem:[%s0 + $0xc8] sm:$0xf]
  %v88 = vld [vmem:[%s0 + $0xcc] sm:$0xf]
  %v89 = vld [vmem:[%s0 + $0xd0] sm:$0xf]
  %v90 = vld [vmem:[%s0 + $0xd4] sm:$0xf]
  %v91 = vld [vmem:[%s0 + $0xd8] sm:$0xf]
  %v92 = vld [vmem:[%s0 + $0xdc] sm:$0xf]
  %v93 = vld [vmem:[%s0 + $0xe0] sm:$0xf]
  %v94 = vld [vmem:[%s0 + $0xe4] sm:$0xf]
  %v95 = vld [vmem:[%s0 + $0xe8] sm:$0xf]
  %v96 = vld [vmem:[%s0 + $0xec] sm:$0xf]
  %v97 = vld [vmem:[%s0 + $0xf0] sm:$0xf]
  %v98 = vld [vmem:[%s0 + $0xf4] sm:$0xf]
  %v99 = vld [vmem:[%s0 + $0xf8] sm:$0xf]
  %v100 = vld [vmem:[%s0 + $0xfc] sm:$0xf]
  %v101 = vld [vmem:[%s2] sm:$0xff]
  %v102 = vld [vmem:[%s2 + $0x8] sm:$0xff]
  %v103 = vld [vmem:[%s2 + $0x10] sm:$0xff]
  %v104 = vld [vmem:[%s2 + $0x18] sm:$0xff]
  %v105 = vld [vmem:[%s2 + $0x20] sm:$0xff]
  %v106 = vld [vmem:[%s2 + $0x28] sm:$0xff]
  %v107 = vld [vmem:[%s2 + $0x30] sm:$0xff]
  %v108 = vld [vmem:[%s2 + $0x38] sm:$0xff]
  %110 = vset.pattern.permute.xlu0 0
  %111 = vperm.xlu0 %110, %v101
  %v112 = vpop.permute.xlu0 %111
  %115 = vset.pattern.permute.xlu0 0
  %116 = vperm.xlu0 %115, %v102
  %v117 = vpop.permute.xlu0 %116
  %120 = vset.pattern.permute.xlu0 0
  %121 = vperm.xlu0 %120, %v103
  %v122 = vpop.permute.xlu0 %121
  %125 = vset.pattern.permute.xlu0 0
  %126 = vperm.xlu0 %125, %v104
  %v127 = vpop.permute.xlu0 %126
  %130 = vset.pattern.permute.xlu0 0
  %131 = vperm.xlu0 %130, %v105
  %v132 = vpop.permute.xlu0 %131
  %135 = vset.pattern.permute.xlu0 0
  %136 = vperm.xlu0 %135, %v106
  %v137 = vpop.permute.xlu0 %136
  %140 = vset.pattern.permute.xlu0 0
  %141 = vperm.xlu0 %140, %v107
  %v142 = vpop.permute.xlu0 %141
  %145 = vset.pattern.permute.xlu0 0
  %146 = vperm.xlu0 %145, %v108
  %v147 = vpop.permute.xlu0 %146
  %v165 = vunpack.c.l.b16 %v21
  %v166 = vunpack.c.h.b16 %v21
  %v167 = vunpack.c.l.b16 %v22
  %v168 = vunpack.c.h.b16 %v22
  %v169 = vunpack.c.l.b16 %v23
  %v170 = vunpack.c.h.b16 %v23
  %v171 = vunpack.c.l.b16 %v24
  %v172 = vunpack.c.h.b16 %v24
  %v173 = vunpack.c.l.b16 %v25
  %v174 = vunpack.c.h.b16 %v25
  %v175 = vunpack.c.l.b16 %v26
  %v176 = vunpack.c.h.b16 %v26
  %v177 = vunpack.c.l.b16 %v27
  %v178 = vunpack.c.h.b16 %v27
  %v179 = vunpack.c.l.b16 %v28
  %v180 = vunpack.c.h.b16 %v28
  %v181 = vunpack.c.l.b16 %v29
  %v182 = vunpack.c.h.b16 %v29
  %v183 = vunpack.c.l.b16 %v30
  %v184 = vunpack.c.h.b16 %v30
  %v185 = vunpack.c.l.b16 %v31
  %v186 = vunpack.c.h.b16 %v31
  %v187 = vunpack.c.l.b16 %v32
  %v188 = vunpack.c.h.b16 %v32
  %v189 = vunpack.c.l.b16 %v33
  %v190 = vunpack.c.h.b16 %v33
  %v191 = vunpack.c.l.b16 %v34
  %v192 = vunpack.c.h.b16 %v34
  %v193 = vunpack.c.l.b16 %v35
  %v194 = vunpack.c.h.b16 %v35
  %v195 = vunpack.c.l.b16 %v36
  %v196 = vunpack.c.h.b16 %v36
  %v197 = vpack.c.b16 %v169, %v165
  %v198 = vpack.c.b16 %v170, %v166
  %v199 = vpack.c.b16 %v171, %v167
  %v200 = vpack.c.b16 %v172, %v168
  %v201 = vpack.c.b16 %v177, %v173
  %v202 = vpack.c.b16 %v178, %v174
  %v203 = vpack.c.b16 %v179, %v175
  %v204 = vpack.c.b16 %v180, %v176
  %v205 = vpack.c.b16 %v185, %v181
  %v206 = vpack.c.b16 %v186, %v182
  %v207 = vpack.c.b16 %v187, %v183
  %v208 = vpack.c.b16 %v188, %v184
  %v209 = vpack.c.b16 %v193, %v189
  %v210 = vpack.c.b16 %v194, %v190
  %v211 = vpack.c.b16 %v195, %v191
  %v212 = vpack.c.b16 %v196, %v192
  %v293 = vunpack.c.l.b16 %v37
  %v294 = vunpack.c.l.b16 %v38
  %v295 = vunpack.c.l.b16 %v39
  %v296 = vunpack.c.l.b16 %v40
  %v297 = vunpack.c.l.b16 %v41
  %v298 = vunpack.c.l.b16 %v42
  %v299 = vunpack.c.l.b16 %v43
  %v300 = vunpack.c.l.b16 %v44
  %v301 = vunpack.c.l.b16 %v45
  %v302 = vunpack.c.l.b16 %v46
  %v303 = vunpack.c.l.b16 %v47
  %v304 = vunpack.c.l.b16 %v48
  %v305 = vunpack.c.l.b16 %v49
  %v306 = vunpack.c.l.b16 %v50
  %v307 = vunpack.c.l.b16 %v51
  %v308 = vunpack.c.l.b16 %v52
  %v309 = vunpack.c.l.b16 %v53
  %v310 = vunpack.c.l.b16 %v54
  %v311 = vunpack.c.l.b16 %v55
  %v312 = vunpack.c.l.b16 %v56
  %v313 = vunpack.c.l.b16 %v57
  %v314 = vunpack.c.l.b16 %v58
  %v315 = vunpack.c.l.b16 %v59
  %v316 = vunpack.c.l.b16 %v60
  %v317 = vunpack.c.l.b16 %v61
  %v318 = vunpack.c.l.b16 %v62
  %v319 = vunpack.c.l.b16 %v63
  %v320 = vunpack.c.l.b16 %v64
  %v321 = vunpack.c.l.b16 %v65
  %v322 = vunpack.c.l.b16 %v66
  %v323 = vunpack.c.l.b16 %v67
  %v324 = vunpack.c.l.b16 %v68
  %v325 = vunpack.c.l.b16 %v69
  %v326 = vunpack.c.l.b16 %v70
  %v327 = vunpack.c.l.b16 %v71
  %v328 = vunpack.c.l.b16 %v72
  %v329 = vunpack.c.l.b16 %v73
  %v330 = vunpack.c.l.b16 %v74
  %v331 = vunpack.c.l.b16 %v75
  %v332 = vunpack.c.l.b16 %v76
  %v333 = vunpack.c.l.b16 %v77
  %v334 = vunpack.c.l.b16 %v78
  %v335 = vunpack.c.l.b16 %v79
  %v336 = vunpack.c.l.b16 %v80
  %v337 = vunpack.c.l.b16 %v81
  %v338 = vunpack.c.l.b16 %v82
  %v339 = vunpack.c.l.b16 %v83
  %v340 = vunpack.c.l.b16 %v84
  %v341 = vunpack.c.l.b16 %v85
  %v342 = vunpack.c.l.b16 %v86
  %v343 = vunpack.c.l.b16 %v87
  %v344 = vunpack.c.l.b16 %v88
  %v345 = vunpack.c.l.b16 %v89
  %v346 = vunpack.c.l.b16 %v90
  %v347 = vunpack.c.l.b16 %v91
  %v348 = vunpack.c.l.b16 %v92
  %v349 = vunpack.c.l.b16 %v93
  %v350 = vunpack.c.l.b16 %v94
  %v351 = vunpack.c.l.b16 %v95
  %v352 = vunpack.c.l.b16 %v96
  %v353 = vunpack.c.l.b16 %v97
  %v354 = vunpack.c.l.b16 %v98
  %v355 = vunpack.c.l.b16 %v99
  %v356 = vunpack.c.l.b16 %v100
  %v357 = vpack.c.b16 %v294, %v293
  %v358 = vpack.c.b16 %v296, %v295
  %v359 = vpack.c.b16 %v298, %v297
  %v360 = vpack.c.b16 %v300, %v299
  %v361 = vpack.c.b16 %v302, %v301
  %v362 = vpack.c.b16 %v304, %v303
  %v363 = vpack.c.b16 %v306, %v305
  %v364 = vpack.c.b16 %v308, %v307
  %v365 = vpack.c.b16 %v310, %v309
  %v366 = vpack.c.b16 %v312, %v311
  %v367 = vpack.c.b16 %v314, %v313
  %v368 = vpack.c.b16 %v316, %v315
  %v369 = vpack.c.b16 %v318, %v317
  %v370 = vpack.c.b16 %v320, %v319
  %v371 = vpack.c.b16 %v322, %v321
  %v372 = vpack.c.b16 %v324, %v323
  %v373 = vpack.c.b16 %v326, %v325
  %v374 = vpack.c.b16 %v328, %v327
  %v375 = vpack.c.b16 %v330, %v329
  %v376 = vpack.c.b16 %v332, %v331
  %v377 = vpack.c.b16 %v334, %v333
  %v378 = vpack.c.b16 %v336, %v335
  %v379 = vpack.c.b16 %v338, %v337
  %v380 = vpack.c.b16 %v340, %v339
  %v381 = vpack.c.b16 %v342, %v341
  %v382 = vpack.c.b16 %v344, %v343
  %v383 = vpack.c.b16 %v346, %v345
  %v384 = vpack.c.b16 %v348, %v347
  %v385 = vpack.c.b16 %v350, %v349
  %v386 = vpack.c.b16 %v352, %v351
  %v387 = vpack.c.b16 %v354, %v353
  %v388 = vpack.c.b16 %v356, %v355
  %421 = vmatprep.subr.bf16.mxu0 0
  %422 = vmatpush1.bf16.msra.mxu0 %v364
  %423 = vmatprep.subr.bf16.mxu0 0
  %424 = vmatpush1.bf16.msra.mxu0 %v363
  %425 = vmatprep.subr.bf16.mxu0 0
  %426 = vmatpush1.bf16.msra.mxu0 %v362
  %427 = vmatprep.subr.bf16.mxu0 0
  %428 = vmatpush1.bf16.msra.mxu0 %v361
  %429 = vmatprep.subr.bf16.mxu0 0
  %430 = vmatpush1.bf16.msra.mxu0 %v360
  %431 = vmatprep.subr.bf16.mxu0 0
  %432 = vmatpush1.bf16.msra.mxu0 %v359
  %433 = vmatprep.subr.bf16.mxu0 0
  %434 = vmatpush1.bf16.msra.mxu0 %v358
  %435 = vmatprep.subr.bf16.mxu0 0
  %436 = vmatpush1.bf16.msra.mxu0 %v357
  %437 = vmatprep.subr.bf16.mxu0 0
  %438 = vmatpush2.bf16.msra.mxu0 %v372
  %439 = vmatprep.subr.bf16.mxu0 0
  %440 = vmatpush2.bf16.msra.mxu0 %v371
  %441 = vmatprep.subr.bf16.mxu0 0
  %442 = vmatpush2.bf16.msra.mxu0 %v370
  %443 = vmatprep.subr.bf16.mxu0 0
  %444 = vmatpush2.bf16.msra.mxu0 %v369
  %445 = vmatprep.subr.bf16.mxu0 0
  %446 = vmatpush2.bf16.msra.mxu0 %v368
  %447 = vmatprep.subr.bf16.mxu0 0
  %448 = vmatpush2.bf16.msra.mxu0 %v367
  %449 = vmatprep.subr.bf16.mxu0 0
  %450 = vmatpush2.bf16.msra.mxu0 %v366
  %451 = vmatprep.subr.bf16.mxu0 0
  %452 = vmatpush2.bf16.msra.mxu0 %v365
  %453 = vmatprep.mubr.bf16.mxu0 %v198
  %454 = vmatmul.mubr.bf16.gmra.mxu0 %v197
  %v455 = vpop.f32.mrf.mxu0
  %v456 = vadd.f32 %v112, %v455
  %v457 = vpop.f32.mrf.mxu0
  %v458 = vpop.f32.mrf.mxu0
  %v459 = vadd.f32 %v117, %v458
  %v460 = vpop.f32.mrf.mxu0
  %461 = vmatprep.mubr.bf16.mxu0 %v202
  %462 = vmatmul.mubr.bf16.gmra.mxu0 %v201
  %v463 = vpop.f32.mrf.mxu0
  %v464 = vadd.f32 %v122, %v463
  %v465 = vpop.f32.mrf.mxu0
  %v466 = vpop.f32.mrf.mxu0
  %v467 = vadd.f32 %v127, %v466
  %v468 = vpop.f32.mrf.mxu0
  %469 = vmatprep.mubr.bf16.mxu0 %v206
  %470 = vmatmul.mubr.bf16.gmra.mxu0 %v205
  %v471 = vpop.f32.mrf.mxu0
  %v472 = vadd.f32 %v132, %v471
  %v473 = vpop.f32.mrf.mxu0
  %v474 = vpop.f32.mrf.mxu0
  %v475 = vadd.f32 %v137, %v474
  %v476 = vpop.f32.mrf.mxu0
  %477 = vmatprep.mubr.bf16.mxu0 %v210
  %478 = vmatmul.mubr.bf16.gmra.mxu0 %v209
  %v479 = vpop.f32.mrf.mxu0
  %v480 = vadd.f32 %v142, %v479
  %v481 = vpop.f32.mrf.mxu0
  %v482 = vpop.f32.mrf.mxu0
  %v483 = vadd.f32 %v147, %v482
  %v484 = vpop.f32.mrf.mxu0
  %485 = vdwg.mxu0
  %486 = vmatprep.subr.bf16.mxu0 0
  %487 = vmatpush1.bf16.msra.mxu0 %v380
  %488 = vmatprep.subr.bf16.mxu0 0
  %489 = vmatpush1.bf16.msra.mxu0 %v379
  %490 = vmatprep.subr.bf16.mxu0 0
  %491 = vmatpush1.bf16.msra.mxu0 %v378
  %492 = vmatprep.subr.bf16.mxu0 0
  %493 = vmatpush1.bf16.msra.mxu0 %v377
  %494 = vmatprep.subr.bf16.mxu0 0
  %495 = vmatpush1.bf16.msra.mxu0 %v376
  %496 = vmatprep.subr.bf16.mxu0 0
  %497 = vmatpush1.bf16.msra.mxu0 %v375
  %498 = vmatprep.subr.bf16.mxu0 0
  %499 = vmatpush1.bf16.msra.mxu0 %v374
  %500 = vmatprep.subr.bf16.mxu0 0
  %501 = vmatpush1.bf16.msra.mxu0 %v373
  %502 = vmatprep.subr.bf16.mxu0 0
  %503 = vmatpush2.bf16.msra.mxu0 %v388
  %504 = vmatprep.subr.bf16.mxu0 0
  %505 = vmatpush2.bf16.msra.mxu0 %v387
  %506 = vmatprep.subr.bf16.mxu0 0
  %507 = vmatpush2.bf16.msra.mxu0 %v386
  %508 = vmatprep.subr.bf16.mxu0 0
  %509 = vmatpush2.bf16.msra.mxu0 %v385
  %510 = vmatprep.subr.bf16.mxu0 0
  %511 = vmatpush2.bf16.msra.mxu0 %v384
  %512 = vmatprep.subr.bf16.mxu0 0
  %513 = vmatpush2.bf16.msra.mxu0 %v383
  %514 = vmatprep.subr.bf16.mxu0 0
  %515 = vmatpush2.bf16.msra.mxu0 %v382
  %516 = vmatprep.subr.bf16.mxu0 0
  %517 = vmatpush2.bf16.msra.mxu0 %v381
  %518 = vmatprep.mubr.bf16.mxu0 %v200
  %519 = vmatmul.mubr.bf16.gmra.mxu0 %v199
  %v520 = vpop.f32.mrf.mxu0
  %v521 = vadd.f32 %v456, %v520
  %v522 = vpop.f32.mrf.mxu0
  %v523 = vpop.f32.mrf.mxu0
  %v524 = vadd.f32 %v459, %v523
  %v525 = vpop.f32.mrf.mxu0
  %526 = vmatprep.mubr.bf16.mxu0 %v204
  %527 = vmatmul.mubr.bf16.gmra.mxu0 %v203
  %v528 = vpop.f32.mrf.mxu0
  %v529 = vadd.f32 %v464, %v528
  %v530 = vpop.f32.mrf.mxu0
  %v531 = vpop.f32.mrf.mxu0
  %v532 = vadd.f32 %v467, %v531
  %v533 = vpop.f32.mrf.mxu0
  %534 = vmatprep.mubr.bf16.mxu0 %v208
  %535 = vmatmul.mubr.bf16.gmra.mxu0 %v207
  %v536 = vpop.f32.mrf.mxu0
  %v537 = vadd.f32 %v472, %v536
  %v538 = vpop.f32.mrf.mxu0
  %v539 = vpop.f32.mrf.mxu0
  %v540 = vadd.f32 %v475, %v539
  %v541 = vpop.f32.mrf.mxu0
  %542 = vmatprep.mubr.bf16.mxu0 %v212
  %543 = vmatmul.mubr.bf16.gmra.mxu0 %v211
  %v544 = vpop.f32.mrf.mxu0
  %v545 = vadd.f32 %v480, %v544
  %v546 = vpop.f32.mrf.mxu0
  %v547 = vpop.f32.mrf.mxu0
  %v548 = vadd.f32 %v483, %v547
  %v549 = vpop.f32.mrf.mxu0
  %550 = vdwg.mxu0
  %vm551 = vcmask 261120
  %v552 = vsel %vm551, %v521, 0.0
  %553 = vadd.xlane.f32.xlu0 %v552
  %v554 = vpop.xlane.xlu0 %553
  %v555 = vsel %vm551, %v524, 0.0
  %556 = vadd.xlane.f32.xlu0 %v555
  %v557 = vpop.xlane.xlu0 %556
  %v558 = vsel %vm551, %v529, 0.0
  %559 = vadd.xlane.f32.xlu0 %v558
  %v560 = vpop.xlane.xlu0 %559
  %v561 = vsel %vm551, %v532, 0.0
  %562 = vadd.xlane.f32.xlu0 %v561
  %v563 = vpop.xlane.xlu0 %562
  %v564 = vsel %vm551, %v537, 0.0
  %565 = vadd.xlane.f32.xlu0 %v564
  %v566 = vpop.xlane.xlu0 %565
  %v567 = vsel %vm551, %v540, 0.0
  %568 = vadd.xlane.f32.xlu0 %v567
  %v569 = vpop.xlane.xlu0 %568
  %v570 = vsel %vm551, %v545, 0.0
  %571 = vadd.xlane.f32.xlu0 %v570
  %v572 = vpop.xlane.xlu0 %571
  %v573 = vsel %vm551, %v548, 0.0
  %574 = vadd.xlane.f32.xlu0 %v573
  %v575 = vpop.xlane.xlu0 %574
  %v576 = vmul.f32 %v554, 0.03125
  %v577 = vmul.f32 %v557, 0.03125
  %v578 = vmul.f32 %v560, 0.03125
  %v579 = vmul.f32 %v563, 0.03125
  %v580 = vmul.f32 %v566, 0.03125
  %v581 = vmul.f32 %v569, 0.03125
  %v582 = vmul.f32 %v572, 0.03125
  %v583 = vmul.f32 %v575, 0.03125
  %v584 = vsub.f32 %v521, %v576
  %v585 = vsub.f32 %v524, %v577
  %v586 = vsub.f32 %v529, %v578
  %v587 = vsub.f32 %v532, %v579
  %v588 = vsub.f32 %v537, %v580
  %v589 = vsub.f32 %v540, %v581
  %v590 = vsub.f32 %v545, %v582
  %v591 = vsub.f32 %v548, %v583
  %v592 = vmul.f32 %v584, %v584
  %v593 = vmul.f32 %v585, %v585
  %v594 = vmul.f32 %v586, %v586
  %v595 = vmul.f32 %v587, %v587
  %v596 = vmul.f32 %v588, %v588
  %v597 = vmul.f32 %v589, %v589
  %v598 = vmul.f32 %v590, %v590
  %v599 = vmul.f32 %v591, %v591
  %v600 = vsel %vm551, %v592, 0.0
  %601 = vadd.xlane.f32.xlu0 %v600
  %v602 = vpop.xlane.xlu0 %601
  %v603 = vsel %vm551, %v593, 0.0
  %604 = vadd.xlane.f32.xlu0 %v603
  %v605 = vpop.xlane.xlu0 %604
  %v606 = vsel %vm551, %v594, 0.0
  %607 = vadd.xlane.f32.xlu0 %v606
  %v608 = vpop.xlane.xlu0 %607
  %v609 = vsel %vm551, %v595, 0.0
  %610 = vadd.xlane.f32.xlu0 %v609
  %v611 = vpop.xlane.xlu0 %610
  %v612 = vsel %vm551, %v596, 0.0
  %613 = vadd.xlane.f32.xlu0 %v612
  %v614 = vpop.xlane.xlu0 %613
  %v615 = vsel %vm551, %v597, 0.0
  %616 = vadd.xlane.f32.xlu0 %v615
  %v617 = vpop.xlane.xlu0 %616
  %v618 = vsel %vm551, %v598, 0.0
  %619 = vadd.xlane.f32.xlu0 %v618
  %v620 = vpop.xlane.xlu0 %619
  %v621 = vsel %vm551, %v599, 0.0
  %622 = vadd.xlane.f32.xlu0 %v621
  %v623 = vpop.xlane.xlu0 %622
  %v624 = vmul.f32 %v602, 0.03125
  %v625 = vmul.f32 %v605, 0.03125
  %v626 = vmul.f32 %v608, 0.03125
  %v627 = vmul.f32 %v611, 0.03125
  %v628 = vmul.f32 %v614, 0.03125
  %v629 = vmul.f32 %v617, 0.03125
  %v630 = vmul.f32 %v620, 0.03125
  %v631 = vmul.f32 %v623, 0.03125
  %v632 = vld [vmem:[%s3] sm:$0xff]
  %v633 = vld [vmem:[%s3 + $0x8] sm:$0xff]
  %v634 = vld [vmem:[%s3 + $0x10] sm:$0xff]
  %v635 = vld [vmem:[%s3 + $0x18] sm:$0xff]
  %v636 = vld [vmem:[%s3 + $0x20] sm:$0xff]
  %v637 = vld [vmem:[%s3 + $0x28] sm:$0xff]
  %v638 = vld [vmem:[%s3 + $0x30] sm:$0xff]
  %v639 = vld [vmem:[%s3 + $0x38] sm:$0xff]
  %v640 = vadd.f32 %v624, 1e-05
  %v641 = vadd.f32 %v625, 1e-05
  %v642 = vadd.f32 %v626, 1e-05
  %v643 = vadd.f32 %v627, 1e-05
  %v644 = vadd.f32 %v628, 1e-05
  %v645 = vadd.f32 %v629, 1e-05
  %v646 = vadd.f32 %v630, 1e-05
  %v647 = vadd.f32 %v631, 1e-05
  %v648 = vrsqrt.pop %v640
  %v649 = vrsqrt.pop %v641
  %v650 = vrsqrt.pop %v642
  %v651 = vrsqrt.pop %v643
  %v652 = vrsqrt.pop %v644
  %v653 = vrsqrt.pop %v645
  %v654 = vrsqrt.pop %v646
  %v655 = vrsqrt.pop %v647
  %v656 = vmul.f32 %v632, %v648
  %v657 = vmul.f32 %v633, %v649
  %v658 = vmul.f32 %v634, %v650
  %v659 = vmul.f32 %v635, %v651
  %v660 = vmul.f32 %v636, %v652
  %v661 = vmul.f32 %v637, %v653
  %v662 = vmul.f32 %v638, %v654
  %v663 = vmul.f32 %v639, %v655
  %665 = vset.pattern.permute.xlu0 0
  %666 = vperm.xlu0 %665, %v656
  %v667 = vpop.permute.xlu0 %666
  %670 = vset.pattern.permute.xlu0 0
  %671 = vperm.xlu0 %670, %v657
  %v672 = vpop.permute.xlu0 %671
  %675 = vset.pattern.permute.xlu0 0
  %676 = vperm.xlu0 %675, %v658
  %v677 = vpop.permute.xlu0 %676
  %680 = vset.pattern.permute.xlu0 0
  %681 = vperm.xlu0 %680, %v659
  %v682 = vpop.permute.xlu0 %681
  %685 = vset.pattern.permute.xlu0 0
  %686 = vperm.xlu0 %685, %v660
  %v687 = vpop.permute.xlu0 %686
  %690 = vset.pattern.permute.xlu0 0
  %691 = vperm.xlu0 %690, %v661
  %v692 = vpop.permute.xlu0 %691
  %695 = vset.pattern.permute.xlu0 0
  %696 = vperm.xlu0 %695, %v662
  %v697 = vpop.permute.xlu0 %696
  %700 = vset.pattern.permute.xlu0 0
  %701 = vperm.xlu0 %700, %v663
  %v702 = vpop.permute.xlu0 %701
  %v704 = vmul.f32 %v584, %v667
  %v705 = vmul.f32 %v585, %v672
  %v706 = vmul.f32 %v586, %v677
  %v707 = vmul.f32 %v587, %v682
  %v708 = vmul.f32 %v588, %v687
  %v709 = vmul.f32 %v589, %v692
  %v710 = vmul.f32 %v590, %v697
  %v711 = vmul.f32 %v591, %v702
  %v712 = vld [vmem:[%s4] sm:$0xff]
  %v713 = vld [vmem:[%s4 + $0x8] sm:$0xff]
  %v714 = vld [vmem:[%s4 + $0x10] sm:$0xff]
  %v715 = vld [vmem:[%s4 + $0x18] sm:$0xff]
  %v716 = vld [vmem:[%s4 + $0x20] sm:$0xff]
  %v717 = vld [vmem:[%s4 + $0x28] sm:$0xff]
  %v718 = vld [vmem:[%s4 + $0x30] sm:$0xff]
  %v719 = vld [vmem:[%s4 + $0x38] sm:$0xff]
  %721 = vset.pattern.permute.xlu0 0
  %722 = vperm.xlu0 %721, %v712
  %v723 = vpop.permute.xlu0 %722
  %726 = vset.pattern.permute.xlu0 0
  %727 = vperm.xlu0 %726, %v713
  %v728 = vpop.permute.xlu0 %727
  %731 = vset.pattern.permute.xlu0 0
  %732 = vperm.xlu0 %731, %v714
  %v733 = vpop.permute.xlu0 %732
  %736 = vset.pattern.permute.xlu0 0
  %737 = vperm.xlu0 %736, %v715
  %v738 = vpop.permute.xlu0 %737
  %741 = vset.pattern.permute.xlu0 0
  %742 = vperm.xlu0 %741, %v716
  %v743 = vpop.permute.xlu0 %742
  %746 = vset.pattern.permute.xlu0 0
  %747 = vperm.xlu0 %746, %v717
  %v748 = vpop.permute.xlu0 %747
  %751 = vset.pattern.permute.xlu0 0
  %752 = vperm.xlu0 %751, %v718
  %v753 = vpop.permute.xlu0 %752
  %756 = vset.pattern.permute.xlu0 0
  %757 = vperm.xlu0 %756, %v719
  %v758 = vpop.permute.xlu0 %757
  %v760 = vadd.f32 %v704, %v723
  %v761 = vadd.f32 %v705, %v728
  %v762 = vadd.f32 %v706, %v733
  %v763 = vadd.f32 %v707, %v738
  %v764 = vadd.f32 %v708, %v743
  %v765 = vadd.f32 %v709, %v748
  %v766 = vadd.f32 %v710, %v753
  %v767 = vadd.f32 %v711, %v758
  %vm768 = vcmp.ge.f32.partialorder %v760, 0.0
  %vm769 = vcmp.ge.f32.partialorder %v761, 0.0
  %vm770 = vcmp.ge.f32.partialorder %v762, 0.0
  %vm771 = vcmp.ge.f32.partialorder %v763, 0.0
  %vm772 = vcmp.ge.f32.partialorder %v764, 0.0
  %vm773 = vcmp.ge.f32.partialorder %v765, 0.0
  %vm774 = vcmp.ge.f32.partialorder %v766, 0.0
  %vm775 = vcmp.ge.f32.partialorder %v767, 0.0
  %v776 = vmul.f32 %v760, 0.2
  %v777 = vmul.f32 %v761, 0.2
  %v778 = vmul.f32 %v762, 0.2
  %v779 = vmul.f32 %v763, 0.2
  %v780 = vmul.f32 %v764, 0.2
  %v781 = vmul.f32 %v765, 0.2
  %v782 = vmul.f32 %v766, 0.2
  %v783 = vmul.f32 %v767, 0.2
  %v784 = vsel %vm768, %v760, %v776
  %v785 = vsel %vm769, %v761, %v777
  %v786 = vsel %vm770, %v762, %v778
  %v787 = vsel %vm771, %v763, %v779
  %v788 = vsel %vm772, %v764, %v780
  %v789 = vsel %vm773, %v765, %v781
  %v790 = vsel %vm774, %v766, %v782
  %v791 = vsel %vm775, %v767, %v783
  %v792 = vpack.c.bf16 %v785, %v784
  %v793 = vpack.c.bf16 %v787, %v786
  %v794 = vpack.c.bf16 %v789, %v788
  %v795 = vpack.c.bf16 %v791, %v790
  %v800 = vunpack.c.l.b16 %v792
  %v801 = vunpack.c.h.b16 %v792
  %v802 = vunpack.c.l.b16 %v793
  %v803 = vunpack.c.h.b16 %v793
  %v804 = vunpack.c.l.b16 %v794
  %v805 = vunpack.c.h.b16 %v794
  %v806 = vunpack.c.l.b16 %v795
  %v807 = vunpack.c.h.b16 %v795
  %v808 = vpack.c.b16 %v800, %v800
  %v809 = vpack.c.b16 %v801, %v801
  %v810 = vpack.c.b16 %v802, %v802
  %v811 = vpack.c.b16 %v803, %v803
  %v812 = vpack.c.b16 %v804, %v804
  %v813 = vpack.c.b16 %v805, %v805
  %v814 = vpack.c.b16 %v806, %v806
  %v815 = vpack.c.b16 %v807, %v807
  %vm824 = vcmask 257024
  %825 = vst.msk [vmem:[%s5] sm:$0xf] %vm824, %v808
  %826 = vst.msk [vmem:[%s5 + $0x4] sm:$0xf] %vm824, %v809
  %827 = vst.msk [vmem:[%s5 + $0x8] sm:$0xf] %vm824, %v810
  %828 = vst.msk [vmem:[%s5 + $0xc] sm:$0xf] %vm824, %v811
  %829 = vst.msk [vmem:[%s5 + $0x10] sm:$0xf] %vm824, %v812
  %830 = vst.msk [vmem:[%s5 + $0x14] sm:$0xf] %vm824, %v813
  %831 = vst.msk [vmem:[%s5 + $0x18] sm:$0xf] %vm824, %v814
  %832 = vst.msk [vmem:[%s5 + $0x1c] sm:$0xf] %vm824, %v815
  // Predicated region
  $region22: #{discriminator_forward.7} parent=0 // pred_check
    _
  $region23: #{discriminator_forward.7} parent=0 // pred_check_branch
    %834 = sbr.rel (0) target = $region25
  $region24: #{discriminator_forward.7} parent=0 // pred_region
    _
  $region25: #{discriminator_forward.7} parent=0 // pred_fallthru
    _
  // Predicated region
  $region26: #{discriminator_forward.7} parent=0 // pred_check
    _
  $region27: #{discriminator_forward.7} parent=0 // pred_check_branch
    %836 = sbr.rel (0) target = $region29
  $region28: #{discriminator_forward.7} parent=0 // pred_region
    _
  $region29: #{discriminator_forward.7} parent=0 // pred_fallthru
    _

// kernel: discriminator_forward.8
$region0: #{discriminator_forward.8}
  #allocation0 [shape = 'u32[]', space=smem, size = 0x4, offset = 0x4, fixed_abs, tag = 'smem constant byte address 0x4 - core index']
  #allocation1 [shape = 'u32[144,128]{1,0:T(1,128)}', space=vmem, size = 0x12000, scoped, tag = 'internal scratch']
  %s0 = inlined_call_operand.vmem [shape: bf16[1024,8], index: 0, kind: input, shape index: {}]
  %s1 = inlined_call_operand.vmem [shape: bf16[128,1024], index: 1, kind: input, shape index: {}]
  %s2 = inlined_call_operand.vmem [shape: f32[128,1], index: 2, kind: input, shape index: {}]
  %s3 = inlined_call_operand.vmem [shape: f32[128,1], index: 3, kind: input, shape index: {}]
  %s4 = inlined_call_operand.vmem [shape: f32[128,1], index: 4, kind: input, shape index: {}]
  %s5 = inlined_call_operand.vmem [shape: bf16[128,8], index: 5, kind: output, shape index: {}]
  %s6 = sld [smem:[#allocation0]]
  $region30: #{discriminator_forward.8} parent=0
    _
  %s8 = ssub.s32 1, %s6
  %s9 = scalar_select 0, %s8, %s6
  // Predicated region
  $region2: #{discriminator_forward.8} parent=0 // pred_check
    _
  $region3: #{discriminator_forward.8} parent=0 // pred_check_branch
    %11 = sbr.rel (0) target = $region5
  $region4: #{discriminator_forward.8} parent=0 // pred_region
    _
  $region5: #{discriminator_forward.8} parent=0 // pred_fallthru
    _
  // Predicated region
  $region6: #{discriminator_forward.8} parent=0 // pred_check
    _
  $region7: #{discriminator_forward.8} parent=0 // pred_check_branch
    %13 = sbr.rel (0) target = $region9
  $region8: #{discriminator_forward.8} parent=0 // pred_region
    _
  $region9: #{discriminator_forward.8} parent=0 // pred_fallthru
    _
  // Predicated region
  $region10: #{discriminator_forward.8} parent=0 // pred_check
    _
  $region11: #{discriminator_forward.8} parent=0 // pred_check_branch
    %15 = sbr.rel (0) target = $region13
  $region12: #{discriminator_forward.8} parent=0 // pred_region
    _
  $region13: #{discriminator_forward.8} parent=0 // pred_fallthru
    _
  // Predicated region
  $region14: #{discriminator_forward.8} parent=0 // pred_check
    _
  $region15: #{discriminator_forward.8} parent=0 // pred_check_branch
    %17 = sbr.rel (0) target = $region17
  $region16: #{discriminator_forward.8} parent=0 // pred_region
    _
  $region17: #{discriminator_forward.8} parent=0 // pred_fallthru
    _
  // Predicated region
  $region18: #{discriminator_forward.8} parent=0 // pred_check
    _
  $region19: #{discriminator_forward.8} parent=0 // pred_check_branch
    %19 = sbr.rel (0) target = $region21
  $region20: #{discriminator_forward.8} parent=0 // pred_region
    _
  $region21: #{discriminator_forward.8} parent=0 // pred_fallthru
    _
  %v21 = vld [vmem:[%s1] sm:$0xff]
  %v22 = vld [vmem:[%s1 + $0x8] sm:$0xff]
  %v23 = vld [vmem:[%s1 + $0x10] sm:$0xff]
  %v24 = vld [vmem:[%s1 + $0x18] sm:$0xff]
  %v25 = vld [vmem:[%s1 + $0x20] sm:$0xff]
  %v26 = vld [vmem:[%s1 + $0x28] sm:$0xff]
  %v27 = vld [vmem:[%s1 + $0x30] sm:$0xff]
  %v28 = vld [vmem:[%s1 + $0x38] sm:$0xff]
  %v29 = vld [vmem:[%s1 + $0x40] sm:$0xff]
  %v30 = vld [vmem:[%s1 + $0x48] sm:$0xff]
  %v31 = vld [vmem:[%s1 + $0x50] sm:$0xff]
  %v32 = vld [vmem:[%s1 + $0x58] sm:$0xff]
  %v33 = vld [vmem:[%s1 + $0x60] sm:$0xff]
  %v34 = vld [vmem:[%s1 + $0x68] sm:$0xff]
  %v35 = vld [vmem:[%s1 + $0x70] sm:$0xff]
  %v36 = vld [vmem:[%s1 + $0x78] sm:$0xff]
  %v37 = vld [vmem:[%s1 + $0x80] sm:$0xff]
  %v38 = vld [vmem:[%s1 + $0x88] sm:$0xff]
  %v39 = vld [vmem:[%s1 + $0x90] sm:$0xff]
  %v40 = vld [vmem:[%s1 + $0x98] sm:$0xff]
  %v41 = vld [vmem:[%s1 + $0xa0] sm:$0xff]
  %v42 = vld [vmem:[%s1 + $0xa8] sm:$0xff]
  %v43 = vld [vmem:[%s1 + $0xb0] sm:$0xff]
  %v44 = vld [vmem:[%s1 + $0xb8] sm:$0xff]
  %v45 = vld [vmem:[%s1 + $0xc0] sm:$0xff]
  %v46 = vld [vmem:[%s1 + $0xc8] sm:$0xff]
  %v47 = vld [vmem:[%s1 + $0xd0] sm:$0xff]
  %v48 = vld [vmem:[%s1 + $0xd8] sm:$0xff]
  %v49 = vld [vmem:[%s1 + $0xe0] sm:$0xff]
  %v50 = vld [vmem:[%s1 + $0xe8] sm:$0xff]
  %v51 = vld [vmem:[%s1 + $0xf0] sm:$0xff]
  %v52 = vld [vmem:[%s1 + $0xf8] sm:$0xff]
  %v53 = vld [vmem:[%s1 + $0x100] sm:$0xff]
  %v54 = vld [vmem:[%s1 + $0x108] sm:$0xff]
  %v55 = vld [vmem:[%s1 + $0x110] sm:$0xff]
  %v56 = vld [vmem:[%s1 + $0x118] sm:$0xff]
  %v57 = vld [vmem:[%s1 + $0x120] sm:$0xff]
  %v58 = vld [vmem:[%s1 + $0x128] sm:$0xff]
  %v59 = vld [vmem:[%s1 + $0x130] sm:$0xff]
  %v60 = vld [vmem:[%s1 + $0x138] sm:$0xff]
  %v61 = vld [vmem:[%s1 + $0x140] sm:$0xff]
  %v62 = vld [vmem:[%s1 + $0x148] sm:$0xff]
  %v63 = vld [vmem:[%s1 + $0x150] sm:$0xff]
  %v64 = vld [vmem:[%s1 + $0x158] sm:$0xff]
  %v65 = vld [vmem:[%s1 + $0x160] sm:$0xff]
  %v66 = vld [vmem:[%s1 + $0x168] sm:$0xff]
  %v67 = vld [vmem:[%s1 + $0x170] sm:$0xff]
  %v68 = vld [vmem:[%s1 + $0x178] sm:$0xff]
  %v69 = vld [vmem:[%s1 + $0x180] sm:$0xff]
  %v70 = vld [vmem:[%s1 + $0x188] sm:$0xff]
  %v71 = vld [vmem:[%s1 + $0x190] sm:$0xff]
  %v72 = vld [vmem:[%s1 + $0x198] sm:$0xff]
  %v73 = vld [vmem:[%s1 + $0x1a0] sm:$0xff]
  %v74 = vld [vmem:[%s1 + $0x1a8] sm:$0xff]
  %v75 = vld [vmem:[%s1 + $0x1b0] sm:$0xff]
  %v76 = vld [vmem:[%s1 + $0x1b8] sm:$0xff]
  %v77 = vld [vmem:[%s1 + $0x1c0] sm:$0xff]
  %v78 = vld [vmem:[%s1 + $0x1c8] sm:$0xff]
  %v79 = vld [vmem:[%s1 + $0x1d0] sm:$0xff]
  %v80 = vld [vmem:[%s1 + $0x1d8] sm:$0xff]
  %v81 = vld [vmem:[%s1 + $0x1e0] sm:$0xff]
  %v82 = vld [vmem:[%s1 + $0x1e8] sm:$0xff]
  %v83 = vld [vmem:[%s1 + $0x1f0] sm:$0xff]
  %v84 = vld [vmem:[%s1 + $0x1f8] sm:$0xff]
  %v85 = vld [vmem:[%s0] sm:$0xf]
  %v86 = vld [vmem:[%s0 + $0x4] sm:$0xf]
  %v87 = vld [vmem:[%s0 + $0x8] sm:$0xf]
  %v88 = vld [vmem:[%s0 + $0xc] sm:$0xf]
  %v89 = vld [vmem:[%s0 + $0x10] sm:$0xf]
  %v90 = vld [vmem:[%s0 + $0x14] sm:$0xf]
  %v91 = vld [vmem:[%s0 + $0x18] sm:$0xf]
  %v92 = vld [vmem:[%s0 + $0x1c] sm:$0xf]
  %v93 = vld [vmem:[%s0 + $0x20] sm:$0xf]
  %v94 = vld [vmem:[%s0 + $0x24] sm:$0xf]
  %v95 = vld [vmem:[%s0 + $0x28] sm:$0xf]
  %v96 = vld [vmem:[%s0 + $0x2c] sm:$0xf]
  %v97 = vld [vmem:[%s0 + $0x30] sm:$0xf]
  %v98 = vld [vmem:[%s0 + $0x34] sm:$0xf]
  %v99 = vld [vmem:[%s0 + $0x38] sm:$0xf]
  %v100 = vld [vmem:[%s0 + $0x3c] sm:$0xf]
  %v101 = vld [vmem:[%s0 + $0x40] sm:$0xf]
  %v102 = vld [vmem:[%s0 + $0x44] sm:$0xf]
  %v103 = vld [vmem:[%s0 + $0x48] sm:$0xf]
  %v104 = vld [vmem:[%s0 + $0x4c] sm:$0xf]
  %v105 = vld [vmem:[%s0 + $0x50] sm:$0xf]
  %v106 = vld [vmem:[%s0 + $0x54] sm:$0xf]
  %v107 = vld [vmem:[%s0 + $0x58] sm:$0xf]
  %v108 = vld [vmem:[%s0 + $0x5c] sm:$0xf]
  %v109 = vld [vmem:[%s0 + $0x60] sm:$0xf]
  %v110 = vld [vmem:[%s0 + $0x64] sm:$0xf]
  %v111 = vld [vmem:[%s0 + $0x68] sm:$0xf]
  %v112 = vld [vmem:[%s0 + $0x6c] sm:$0xf]
  %v113 = vld [vmem:[%s0 + $0x70] sm:$0xf]
  %v114 = vld [vmem:[%s0 + $0x74] sm:$0xf]
  %v115 = vld [vmem:[%s0 + $0x78] sm:$0xf]
  %v116 = vld [vmem:[%s0 + $0x7c] sm:$0xf]
  %v117 = vld [vmem:[%s0 + $0x80] sm:$0xf]
  %v118 = vld [vmem:[%s0 + $0x84] sm:$0xf]
  %v119 = vld [vmem:[%s0 + $0x88] sm:$0xf]
  %v120 = vld [vmem:[%s0 + $0x8c] sm:$0xf]
  %v121 = vld [vmem:[%s0 + $0x90] sm:$0xf]
  %v122 = vld [vmem:[%s0 + $0x94] sm:$0xf]
  %v123 = vld [vmem:[%s0 + $0x98] sm:$0xf]
  %v124 = vld [vmem:[%s0 + $0x9c] sm:$0xf]
  %v125 = vld [vmem:[%s0 + $0xa0] sm:$0xf]
  %v126 = vld [vmem:[%s0 + $0xa4] sm:$0xf]
  %v127 = vld [vmem:[%s0 + $0xa8] sm:$0xf]
  %v128 = vld [vmem:[%s0 + $0xac] sm:$0xf]
  %v129 = vld [vmem:[%s0 + $0xb0] sm:$0xf]
  %v130 = vld [vmem:[%s0 + $0xb4] sm:$0xf]
  %v131 = vld [vmem:[%s0 + $0xb8] sm:$0xf]
  %v132 = vld [vmem:[%s0 + $0xbc] sm:$0xf]
  %v133 = vld [vmem:[%s0 + $0xc0] sm:$0xf]
  %v134 = vld [vmem:[%s0 + $0xc4] sm:$0xf]
  %v135 = vld [vmem:[%s0 + $0xc8] sm:$0xf]
  %v136 = vld [vmem:[%s0 + $0xcc] sm:$0xf]
  %v137 = vld [vmem:[%s0 + $0xd0] sm:$0xf]
  %v138 = vld [vmem:[%s0 + $0xd4] sm:$0xf]
  %v139 = vld [vmem:[%s0 + $0xd8] sm:$0xf]
  %v140 = vld [vmem:[%s0 + $0xdc] sm:$0xf]
  %v141 = vld [vmem:[%s0 + $0xe0] sm:$0xf]
  %v142 = vld [vmem:[%s0 + $0xe4] sm:$0xf]
  %v143 = vld [vmem:[%s0 + $0xe8] sm:$0xf]
  %v144 = vld [vmem:[%s0 + $0xec] sm:$0xf]
  %v145 = vld [vmem:[%s0 + $0xf0] sm:$0xf]
  %v146 = vld [vmem:[%s0 + $0xf4] sm:$0xf]
  %v147 = vld [vmem:[%s0 + $0xf8] sm:$0xf]
  %v148 = vld [vmem:[%s0 + $0xfc] sm:$0xf]
  %v149 = vld [vmem:[%s0 + $0x100] sm:$0xf]
  %v150 = vld [vmem:[%s0 + $0x104] sm:$0xf]
  %v151 = vld [vmem:[%s0 + $0x108] sm:$0xf]
  %v152 = vld [vmem:[%s0 + $0x10c] sm:$0xf]
  %v153 = vld [vmem:[%s0 + $0x110] sm:$0xf]
  %v154 = vld [vmem:[%s0 + $0x114] sm:$0xf]
  %v155 = vld [vmem:[%s0 + $0x118] sm:$0xf]
  %v156 = vld [vmem:[%s0 + $0x11c] sm:$0xf]
  %v157 = vld [vmem:[%s0 + $0x120] sm:$0xf]
  %v158 = vld [vmem:[%s0 + $0x124] sm:$0xf]
  %v159 = vld [vmem:[%s0 + $0x128] sm:$0xf]
  %v160 = vld [vmem:[%s0 + $0x12c] sm:$0xf]
  %v161 = vld [vmem:[%s0 + $0x130] sm:$0xf]
  %v162 = vld [vmem:[%s0 + $0x134] sm:$0xf]
  %v163 = vld [vmem:[%s0 + $0x138] sm:$0xf]
  %v164 = vld [vmem:[%s0 + $0x13c] sm:$0xf]
  %v165 = vld [vmem:[%s0 + $0x140] sm:$0xf]
  %v166 = vld [vmem:[%s0 + $0x144] sm:$0xf]
  %v167 = vld [vmem:[%s0 + $0x148] sm:$0xf]
  %v168 = vld [vmem:[%s0 + $0x14c] sm:$0xf]
  %v169 = vld [vmem:[%s0 + $0x150] sm:$0xf]
  %v170 = vld [vmem:[%s0 + $0x154] sm:$0xf]
  %v171 = vld [vmem:[%s0 + $0x158] sm:$0xf]
  %v172 = vld [vmem:[%s0 + $0x15c] sm:$0xf]
  %v173 = vld [vmem:[%s0 + $0x160] sm:$0xf]
  %v174 = vld [vmem:[%s0 + $0x164] sm:$0xf]
  %v175 = vld [vmem:[%s0 + $0x168] sm:$0xf]
  %v176 = vld [vmem:[%s0 + $0x16c] sm:$0xf]
  %v177 = vld [vmem:[%s0 + $0x170] sm:$0xf]
  %v178 = vld [vmem:[%s0 + $0x174] sm:$0xf]
  %v179 = vld [vmem:[%s0 + $0x178] sm:$0xf]
  %v180 = vld [vmem:[%s0 + $0x17c] sm:$0xf]
  %v181 = vld [vmem:[%s0 + $0x180] sm:$0xf]
  %v182 = vld [vmem:[%s0 + $0x184] sm:$0xf]
  %v183 = vld [vmem:[%s0 + $0x188] sm:$0xf]
  %v184 = vld [vmem:[%s0 + $0x18c] sm:$0xf]
  %v185 = vld [vmem:[%s0 + $0x190] sm:$0xf]
  %v186 = vld [vmem:[%s0 + $0x194] sm:$0xf]
  %v187 = vld [vmem:[%s0 + $0x198] sm:$0xf]
  %v188 = vld [vmem:[%s0 + $0x19c] sm:$0xf]
  %v189 = vld [vmem:[%s0 + $0x1a0] sm:$0xf]
  %v190 = vld [vmem:[%s0 + $0x1a4] sm:$0xf]
  %v191 = vld [vmem:[%s0 + $0x1a8] sm:$0xf]
  %v192 = vld [vmem:[%s0 + $0x1ac] sm:$0xf]
  %v193 = vld [vmem:[%s0 + $0x1b0] sm:$0xf]
  %v194 = vld [vmem:[%s0 + $0x1b4] sm:$0xf]
  %v195 = vld [vmem:[%s0 + $0x1b8] sm:$0xf]
  %v196 = vld [vmem:[%s0 + $0x1bc] sm:$0xf]
  %v197 = vld [vmem:[%s0 + $0x1c0] sm:$0xf]
  %v198 = vld [vmem:[%s0 + $0x1c4] sm:$0xf]
  %v199 = vld [vmem:[%s0 + $0x1c8] sm:$0xf]
  %v200 = vld [vmem:[%s0 + $0x1cc] sm:$0xf]
  %v201 = vld [vmem:[%s0 + $0x1d0] sm:$0xf]
  %v202 = vld [vmem:[%s0 + $0x1d4] sm:$0xf]
  %v203 = vld [vmem:[%s0 + $0x1d8] sm:$0xf]
  %v204 = vld [vmem:[%s0 + $0x1dc] sm:$0xf]
  %v205 = vld [vmem:[%s0 + $0x1e0] sm:$0xf]
  %v206 = vld [vmem:[%s0 + $0x1e4] sm:$0xf]
  %v207 = vld [vmem:[%s0 + $0x1e8] sm:$0xf]
  %v208 = vld [vmem:[%s0 + $0x1ec] sm:$0xf]
  %v209 = vld [vmem:[%s0 + $0x1f0] sm:$0xf]
  %v210 = vld [vmem:[%s0 + $0x1f4] sm:$0xf]
  %v211 = vld [vmem:[%s0 + $0x1f8] sm:$0xf]
  %v212 = vld [vmem:[%s0 + $0x1fc] sm:$0xf]
  %v213 = vld [vmem:[%s2] sm:$0xff]
  %v214 = vld [vmem:[%s2 + $0x8] sm:$0xff]
  %v215 = vld [vmem:[%s2 + $0x10] sm:$0xff]
  %v216 = vld [vmem:[%s2 + $0x18] sm:$0xff]
  %v217 = vld [vmem:[%s2 + $0x20] sm:$0xff]
  %v218 = vld [vmem:[%s2 + $0x28] sm:$0xff]
  %v219 = vld [vmem:[%s2 + $0x30] sm:$0xff]
  %v220 = vld [vmem:[%s2 + $0x38] sm:$0xff]
  %v221 = vld [vmem:[%s2 + $0x40] sm:$0xff]
  %v222 = vld [vmem:[%s2 + $0x48] sm:$0xff]
  %v223 = vld [vmem:[%s2 + $0x50] sm:$0xff]
  %v224 = vld [vmem:[%s2 + $0x58] sm:$0xff]
  %v225 = vld [vmem:[%s2 + $0x60] sm:$0xff]
  %v226 = vld [vmem:[%s2 + $0x68] sm:$0xff]
  %v227 = vld [vmem:[%s2 + $0x70] sm:$0xff]
  %v228 = vld [vmem:[%s2 + $0x78] sm:$0xff]
  %230 = vset.pattern.permute.xlu0 0
  %231 = vperm.xlu0 %230, %v213
  %v232 = vpop.permute.xlu0 %231
  %235 = vset.pattern.permute.xlu0 0
  %236 = vperm.xlu0 %235, %v214
  %v237 = vpop.permute.xlu0 %236
  %240 = vset.pattern.permute.xlu0 0
  %241 = vperm.xlu0 %240, %v215
  %v242 = vpop.permute.xlu0 %241
  %245 = vset.pattern.permute.xlu0 0
  %246 = vperm.xlu0 %245, %v216
  %v247 = vpop.permute.xlu0 %246
  %250 = vset.pattern.permute.xlu0 0
  %251 = vperm.xlu0 %250, %v217
  %v252 = vpop.permute.xlu0 %251
  %255 = vset.pattern.permute.xlu0 0
  %256 = vperm.xlu0 %255, %v218
  %v257 = vpop.permute.xlu0 %256
  %260 = vset.pattern.permute.xlu0 0
  %261 = vperm.xlu0 %260, %v219
  %v262 = vpop.permute.xlu0 %261
  %265 = vset.pattern.permute.xlu0 0
  %266 = vperm.xlu0 %265, %v220
  %v267 = vpop.permute.xlu0 %266
  %270 = vset.pattern.permute.xlu0 0
  %271 = vperm.xlu0 %270, %v221
  %v272 = vpop.permute.xlu0 %271
  %275 = vset.pattern.permute.xlu0 0
  %276 = vperm.xlu0 %275, %v222
  %v277 = vpop.permute.xlu0 %276
  %280 = vset.pattern.permute.xlu0 0
  %281 = vperm.xlu0 %280, %v223
  %v282 = vpop.permute.xlu0 %281
  %285 = vset.pattern.permute.xlu0 0
  %286 = vperm.xlu0 %285, %v224
  %v287 = vpop.permute.xlu0 %286
  %290 = vset.pattern.permute.xlu0 0
  %291 = vperm.xlu0 %290, %v225
  %v292 = vpop.permute.xlu0 %291
  %295 = vset.pattern.permute.xlu0 0
  %296 = vperm.xlu0 %295, %v226
  %v297 = vpop.permute.xlu0 %296
  %300 = vset.pattern.permute.xlu0 0
  %301 = vperm.xlu0 %300, %v227
  %v302 = vpop.permute.xlu0 %301
  %305 = vset.pattern.permute.xlu0 0
  %306 = vperm.xlu0 %305, %v228
  %v307 = vpop.permute.xlu0 %306
  %v373 = vunpack.c.l.b16 %v21
  %v374 = vunpack.c.h.b16 %v21
  %v375 = vunpack.c.l.b16 %v22
  %v376 = vunpack.c.h.b16 %v22
  %v377 = vunpack.c.l.b16 %v23
  %v378 = vunpack.c.h.b16 %v23
  %v379 = vunpack.c.l.b16 %v24
  %v380 = vunpack.c.h.b16 %v24
  %v381 = vunpack.c.l.b16 %v25
  %v382 = vunpack.c.h.b16 %v25
  %v383 = vunpack.c.l.b16 %v26
  %v384 = vunpack.c.h.b16 %v26
  %v385 = vunpack.c.l.b16 %v27
  %v386 = vunpack.c.h.b16 %v27
  %v387 = vunpack.c.l.b16 %v28
  %v388 = vunpack.c.h.b16 %v28
  %v389 = vunpack.c.l.b16 %v29
  %v390 = vunpack.c.h.b16 %v29
  %v391 = vunpack.c.l.b16 %v30
  %v392 = vunpack.c.h.b16 %v30
  %v393 = vunpack.c.l.b16 %v31
  %v394 = vunpack.c.h.b16 %v31
  %v395 = vunpack.c.l.b16 %v32
  %v396 = vunpack.c.h.b16 %v32
  %v397 = vunpack.c.l.b16 %v33
  %v398 = vunpack.c.h.b16 %v33
  %v399 = vunpack.c.l.b16 %v34
  %v400 = vunpack.c.h.b16 %v34
  %v401 = vunpack.c.l.b16 %v35
  %v402 = vunpack.c.h.b16 %v35
  %v403 = vunpack.c.l.b16 %v36
  %v404 = vunpack.c.h.b16 %v36
  %v405 = vunpack.c.l.b16 %v37
  %v406 = vunpack.c.h.b16 %v37
  %v407 = vunpack.c.l.b16 %v38
  %v408 = vunpack.c.h.b16 %v38
  %v409 = vunpack.c.l.b16 %v39
  %v410 = vunpack.c.h.b16 %v39
  %v411 = vunpack.c.l.b16 %v40
  %v412 = vunpack.c.h.b16 %v40
  %v413 = vunpack.c.l.b16 %v41
  %v414 = vunpack.c.h.b16 %v41
  %v415 = vunpack.c.l.b16 %v42
  %v416 = vunpack.c.h.b16 %v42
  %v417 = vunpack.c.l.b16 %v43
  %v418 = vunpack.c.h.b16 %v43
  %v419 = vunpack.c.l.b16 %v44
  %v420 = vunpack.c.h.b16 %v44
  %v421 = vunpack.c.l.b16 %v45
  %v422 = vunpack.c.h.b16 %v45
  %v423 = vunpack.c.l.b16 %v46
  %v424 = vunpack.c.h.b16 %v46
  %v425 = vunpack.c.l.b16 %v47
  %v426 = vunpack.c.h.b16 %v47
  %v427 = vunpack.c.l.b16 %v48
  %v428 = vunpack.c.h.b16 %v48
  %v429 = vunpack.c.l.b16 %v49
  %v430 = vunpack.c.h.b16 %v49
  %v431 = vunpack.c.l.b16 %v50
  %v432 = vunpack.c.h.b16 %v50
  %v433 = vunpack.c.l.b16 %v51
  %v434 = vunpack.c.h.b16 %v51
  %v435 = vunpack.c.l.b16 %v52
  %v436 = vunpack.c.h.b16 %v52
  %v437 = vunpack.c.l.b16 %v53
  %v438 = vunpack.c.h.b16 %v53
  %v439 = vunpack.c.l.b16 %v54
  %v440 = vunpack.c.h.b16 %v54
  %v441 = vunpack.c.l.b16 %v55
  %v442 = vunpack.c.h.b16 %v55
  %v443 = vunpack.c.l.b16 %v56
  %v444 = vunpack.c.h.b16 %v56
  %v445 = vunpack.c.l.b16 %v57
  %v446 = vunpack.c.h.b16 %v57
  %v447 = vunpack.c.l.b16 %v58
  %v448 = vunpack.c.h.b16 %v58
  %v449 = vunpack.c.l.b16 %v59
  %v450 = vunpack.c.h.b16 %v59
  %v451 = vunpack.c.l.b16 %v60
  %v452 = vunpack.c.h.b16 %v60
  %v453 = vunpack.c.l.b16 %v61
  %v454 = vunpack.c.h.b16 %v61
  %v455 = vunpack.c.l.b16 %v62
  %v456 = vunpack.c.h.b16 %v62
  %v457 = vunpack.c.l.b16 %v63
  %v458 = vunpack.c.h.b16 %v63
  %v459 = vunpack.c.l.b16 %v64
  %v460 = vunpack.c.h.b16 %v64
  %v461 = vunpack.c.l.b16 %v65
  %v462 = vunpack.c.h.b16 %v65
  %v463 = vunpack.c.l.b16 %v66
  %v464 = vunpack.c.h.b16 %v66
  %v465 = vunpack.c.l.b16 %v67
  %v466 = vunpack.c.h.b16 %v67
  %v467 = vunpack.c.l.b16 %v68
  %v468 = vunpack.c.h.b16 %v68
  %v469 = vunpack.c.l.b16 %v69
  %v470 = vunpack.c.h.b16 %v69
  %v471 = vunpack.c.l.b16 %v70
  %v472 = vunpack.c.h.b16 %v70
  %v473 = vunpack.c.l.b16 %v71
  %v474 = vunpack.c.h.b16 %v71
  %v475 = vunpack.c.l.b16 %v72
  %v476 = vunpack.c.h.b16 %v72
  %v477 = vunpack.c.l.b16 %v73
  %v478 = vunpack.c.h.b16 %v73
  %v479 = vunpack.c.l.b16 %v74
  %v480 = vunpack.c.h.b16 %v74
  %v481 = vunpack.c.l.b16 %v75
  %v482 = vunpack.c.h.b16 %v75
  %v483 = vunpack.c.l.b16 %v76
  %v484 = vunpack.c.h.b16 %v76
  %v485 = vunpack.c.l.b16 %v77
  %v486 = vunpack.c.h.b16 %v77
  %v487 = vunpack.c.l.b16 %v78
  %v488 = vunpack.c.h.b16 %v78
  %v489 = vunpack.c.l.b16 %v79
  %v490 = vunpack.c.h.b16 %v79
  %v491 = vunpack.c.l.b16 %v80
  %v492 = vunpack.c.h.b16 %v80
  %v493 = vunpack.c.l.b16 %v81
  %v494 = vunpack.c.h.b16 %v81
  %v495 = vunpack.c.l.b16 %v82
  %v496 = vunpack.c.h.b16 %v82
  %v497 = vunpack.c.l.b16 %v83
  %v498 = vunpack.c.h.b16 %v83
  %v499 = vunpack.c.l.b16 %v84
  %v500 = vunpack.c.h.b16 %v84
  %v501 = vpack.c.b16 %v381, %v373
  %v502 = vpack.c.b16 %v382, %v374
  %v503 = vpack.c.b16 %v383, %v375
  %v504 = vpack.c.b16 %v384, %v376
  %v505 = vpack.c.b16 %v385, %v377
  %v506 = vpack.c.b16 %v386, %v378
  %v507 = vpack.c.b16 %v387, %v379
  %v508 = vpack.c.b16 %v388, %v380
  %v509 = vpack.c.b16 %v397, %v389
  %v510 = vpack.c.b16 %v398, %v390
  %v511 = vpack.c.b16 %v399, %v391
  %v512 = vpack.c.b16 %v400, %v392
  %v513 = vpack.c.b16 %v401, %v393
  %v514 = vpack.c.b16 %v402, %v394
  %v515 = vpack.c.b16 %v403, %v395
  %v516 = vpack.c.b16 %v404, %v396
  %v517 = vpack.c.b16 %v413, %v405
  %v518 = vpack.c.b16 %v414, %v406
  %v519 = vpack.c.b16 %v415, %v407
  %v520 = vpack.c.b16 %v416, %v408
  %v521 = vpack.c.b16 %v417, %v409
  %v522 = vpack.c.b16 %v418, %v410
  %v523 = vpack.c.b16 %v419, %v411
  %v524 = vpack.c.b16 %v420, %v412
  %v525 = vpack.c.b16 %v429, %v421
  %v526 = vpack.c.b16 %v430, %v422
  %v527 = vpack.c.b16 %v431, %v423
  %v528 = vpack.c.b16 %v432, %v424
  %v529 = vpack.c.b16 %v433, %v425
  %v530 = vpack.c.b16 %v434, %v426
  %v531 = vpack.c.b16 %v435, %v427
  %v532 = vpack.c.b16 %v436, %v428
  %v533 = vpack.c.b16 %v445, %v437
  %v534 = vpack.c.b16 %v446, %v438
  %v535 = vpack.c.b16 %v447, %v439
  %v536 = vpack.c.b16 %v448, %v440
  %v537 = vpack.c.b16 %v449, %v441
  %v538 = vpack.c.b16 %v450, %v442
  %v539 = vpack.c.b16 %v451, %v443
  %v540 = vpack.c.b16 %v452, %v444
  %v541 = vpack.c.b16 %v461, %v453
  %v542 = vpack.c.b16 %v462, %v454
  %v543 = vpack.c.b16 %v463, %v455
  %v544 = vpack.c.b16 %v464, %v456
  %v545 = vpack.c.b16 %v465, %v457
  %v546 = vpack.c.b16 %v466, %v458
  %v547 = vpack.c.b16 %v467, %v459
  %v548 = vpack.c.b16 %v468, %v460
  %v549 = vpack.c.b16 %v477, %v469
  %v550 = vpack.c.b16 %v478, %v470
  %v551 = vpack.c.b16 %v479, %v471
  %v552 = vpack.c.b16 %v480, %v472
  %v553 = vpack.c.b16 %v481, %v473
  %v554 = vpack.c.b16 %v482, %v474
  %v555 = vpack.c.b16 %v483, %v475
  %v556 = vpack.c.b16 %v484, %v476
  %v557 = vpack.c.b16 %v493, %v485
  %v558 = vpack.c.b16 %v494, %v486
  %v559 = vpack.c.b16 %v495, %v487
  %v560 = vpack.c.b16 %v496, %v488
  %v561 = vpack.c.b16 %v497, %v489
  %v562 = vpack.c.b16 %v498, %v490
  %v563 = vpack.c.b16 %v499, %v491
  %v564 = vpack.c.b16 %v500, %v492
  %v757 = vunpack.c.l.b16 %v85
  %v758 = vunpack.c.l.b16 %v86
  %v759 = vunpack.c.l.b16 %v87
  %v760 = vunpack.c.l.b16 %v88
  %v761 = vunpack.c.l.b16 %v89
  %v762 = vunpack.c.l.b16 %v90
  %v763 = vunpack.c.l.b16 %v91
  %v764 = vunpack.c.l.b16 %v92
  %v765 = vunpack.c.l.b16 %v93
  %v766 = vunpack.c.l.b16 %v94
  %v767 = vunpack.c.l.b16 %v95
  %v768 = vunpack.c.l.b16 %v96
  %v769 = vunpack.c.l.b16 %v97
  %v770 = vunpack.c.l.b16 %v98
  %v771 = vunpack.c.l.b16 %v99
  %v772 = vunpack.c.l.b16 %v100
  %v773 = vunpack.c.l.b16 %v101
  %v774 = vunpack.c.l.b16 %v102
  %v775 = vunpack.c.l.b16 %v103
  %v776 = vunpack.c.l.b16 %v104
  %v777 = vunpack.c.l.b16 %v105
  %v778 = vunpack.c.l.b16 %v106
  %v779 = vunpack.c.l.b16 %v107
  %v780 = vunpack.c.l.b16 %v108
  %v781 = vunpack.c.l.b16 %v109
  %v782 = vunpack.c.l.b16 %v110
  %v783 = vunpack.c.l.b16 %v111
  %v784 = vunpack.c.l.b16 %v112
  %v785 = vunpack.c.l.b16 %v113
  %v786 = vunpack.c.l.b16 %v114
  %v787 = vunpack.c.l.b16 %v115
  %v788 = vunpack.c.l.b16 %v116
  %v789 = vunpack.c.l.b16 %v117
  %v790 = vunpack.c.l.b16 %v118
  %v791 = vunpack.c.l.b16 %v119
  %v792 = vunpack.c.l.b16 %v120
  %v793 = vunpack.c.l.b16 %v121
  %v794 = vunpack.c.l.b16 %v122
  %v795 = vunpack.c.l.b16 %v123
  %v796 = vunpack.c.l.b16 %v124
  %v797 = vunpack.c.l.b16 %v125
  %v798 = vunpack.c.l.b16 %v126
  %v799 = vunpack.c.l.b16 %v127
  %v800 = vunpack.c.l.b16 %v128
  %v801 = vunpack.c.l.b16 %v129
  %v802 = vunpack.c.l.b16 %v130
  %v803 = vunpack.c.l.b16 %v131
  %v804 = vunpack.c.l.b16 %v132
  %v805 = vunpack.c.l.b16 %v133
  %v806 = vunpack.c.l.b16 %v134
  %v807 = vunpack.c.l.b16 %v135
  %v808 = vunpack.c.l.b16 %v136
  %v809 = vunpack.c.l.b16 %v137
  %v810 = vunpack.c.l.b16 %v138
  %v811 = vunpack.c.l.b16 %v139
  %v812 = vunpack.c.l.b16 %v140
  %v813 = vunpack.c.l.b16 %v141
  %v814 = vunpack.c.l.b16 %v142
  %v815 = vunpack.c.l.b16 %v143
  %v816 = vunpack.c.l.b16 %v144
  %v817 = vunpack.c.l.b16 %v145
  %v818 = vunpack.c.l.b16 %v146
  %v819 = vunpack.c.l.b16 %v147
  %v820 = vunpack.c.l.b16 %v148
  %v821 = vunpack.c.l.b16 %v149
  %v822 = vunpack.c.l.b16 %v150
  %v823 = vunpack.c.l.b16 %v151
  %v824 = vunpack.c.l.b16 %v152
  %v825 = vunpack.c.l.b16 %v153
  %v826 = vunpack.c.l.b16 %v154
  %v827 = vunpack.c.l.b16 %v155
  %v828 = vunpack.c.l.b16 %v156
  %v829 = vunpack.c.l.b16 %v157
  %v830 = vunpack.c.l.b16 %v158
  %v831 = vunpack.c.l.b16 %v159
  %v832 = vunpack.c.l.b16 %v160
  %v833 = vunpack.c.l.b16 %v161
  %v834 = vunpack.c.l.b16 %v162
  %v835 = vunpack.c.l.b16 %v163
  %v836 = vunpack.c.l.b16 %v164
  %v837 = vunpack.c.l.b16 %v165
  %v838 = vunpack.c.l.b16 %v166
  %v839 = vunpack.c.l.b16 %v167
  %v840 = vunpack.c.l.b16 %v168
  %v841 = vunpack.c.l.b16 %v169
  %v842 = vunpack.c.l.b16 %v170
  %v843 = vunpack.c.l.b16 %v171
  %v844 = vunpack.c.l.b16 %v172
  %v845 = vunpack.c.l.b16 %v173
  %v846 = vunpack.c.l.b16 %v174
  %v847 = vunpack.c.l.b16 %v175
  %v848 = vunpack.c.l.b16 %v176
  %v849 = vunpack.c.l.b16 %v177
  %v850 = vunpack.c.l.b16 %v178
  %v851 = vunpack.c.l.b16 %v179
  %v852 = vunpack.c.l.b16 %v180
  %v853 = vunpack.c.l.b16 %v181
  %v854 = vunpack.c.l.b16 %v182
  %v855 = vunpack.c.l.b16 %v183
  %v856 = vunpack.c.l.b16 %v184
  %v857 = vunpack.c.l.b16 %v185
  %v858 = vunpack.c.l.b16 %v186
  %v859 = vunpack.c.l.b16 %v187
  %v860 = vunpack.c.l.b16 %v188
  %v861 = vunpack.c.l.b16 %v189
  %v862 = vunpack.c.l.b16 %v190
  %v863 = vunpack.c.l.b16 %v191
  %v864 = vunpack.c.l.b16 %v192
  %v865 = vunpack.c.l.b16 %v193
  %v866 = vunpack.c.l.b16 %v194
  %v867 = vunpack.c.l.b16 %v195
  %v868 = vunpack.c.l.b16 %v196
  %v869 = vunpack.c.l.b16 %v197
  %v870 = vunpack.c.l.b16 %v198
  %v871 = vunpack.c.l.b16 %v199
  %v872 = vunpack.c.l.b16 %v200
  %v873 = vunpack.c.l.b16 %v201
  %v874 = vunpack.c.l.b16 %v202
  %v875 = vunpack.c.l.b16 %v203
  %v876 = vunpack.c.l.b16 %v204
  %v877 = vunpack.c.l.b16 %v205
  %v878 = vunpack.c.l.b16 %v206
  %v879 = vunpack.c.l.b16 %v207
  %v880 = vunpack.c.l.b16 %v208
  %v881 = vunpack.c.l.b16 %v209
  %v882 = vunpack.c.l.b16 %v210
  %v883 = vunpack.c.l.b16 %v211
  %v884 = vunpack.c.l.b16 %v212
  %v885 = vpack.c.b16 %v758, %v757
  %v886 = vpack.c.b16 %v760, %v759
  %v887 = vpack.c.b16 %v762, %v761
  %v888 = vpack.c.b16 %v764, %v763
  %v889 = vpack.c.b16 %v766, %v765
  %v890 = vpack.c.b16 %v768, %v767
  %v891 = vpack.c.b16 %v770, %v769
  %v892 = vpack.c.b16 %v772, %v771
  %v893 = vpack.c.b16 %v774, %v773
  %v894 = vpack.c.b16 %v776, %v775
  %v895 = vpack.c.b16 %v778, %v777
  %v896 = vpack.c.b16 %v780, %v779
  %v897 = vpack.c.b16 %v782, %v781
  %v898 = vpack.c.b16 %v784, %v783
  %v899 = vpack.c.b16 %v786, %v785
  %v900 = vpack.c.b16 %v788, %v787
  %v901 = vpack.c.b16 %v790, %v789
  %v902 = vpack.c.b16 %v792, %v791
  %v903 = vpack.c.b16 %v794, %v793
  %v904 = vpack.c.b16 %v796, %v795
  %v905 = vpack.c.b16 %v798, %v797
  %v906 = vpack.c.b16 %v800, %v799
  %v907 = vpack.c.b16 %v802, %v801
  %v908 = vpack.c.b16 %v804, %v803
  %v909 = vpack.c.b16 %v806, %v805
  %v910 = vpack.c.b16 %v808, %v807
  %v911 = vpack.c.b16 %v810, %v809
  %v912 = vpack.c.b16 %v812, %v811
  %v913 = vpack.c.b16 %v814, %v813
  %v914 = vpack.c.b16 %v816, %v815
  %v915 = vpack.c.b16 %v818, %v817
  %v916 = vpack.c.b16 %v820, %v819
  %v917 = vpack.c.b16 %v822, %v821
  %v918 = vpack.c.b16 %v824, %v823
  %v919 = vpack.c.b16 %v826, %v825
  %v920 = vpack.c.b16 %v828, %v827
  %v921 = vpack.c.b16 %v830, %v829
  %v922 = vpack.c.b16 %v832, %v831
  %v923 = vpack.c.b16 %v834, %v833
  %v924 = vpack.c.b16 %v836, %v835
  %v925 = vpack.c.b16 %v838, %v837
  %v926 = vpack.c.b16 %v840, %v839
  %v927 = vpack.c.b16 %v842, %v841
  %v928 = vpack.c.b16 %v844, %v843
  %v929 = vpack.c.b16 %v846, %v845
  %v930 = vpack.c.b16 %v848, %v847
  %v931 = vpack.c.b16 %v850, %v849
  %v932 = vpack.c.b16 %v852, %v851
  %v933 = vpack.c.b16 %v854, %v853
  %v934 = vpack.c.b16 %v856, %v855
  %v935 = vpack.c.b16 %v858, %v857
  %v936 = vpack.c.b16 %v860, %v859
  %v937 = vpack.c.b16 %v862, %v861
  %v938 = vpack.c.b16 %v864, %v863
  %v939 = vpack.c.b16 %v866, %v865
  %v940 = vpack.c.b16 %v868, %v867
  %v941 = vpack.c.b16 %v870, %v869
  %v942 = vpack.c.b16 %v872, %v871
  %v943 = vpack.c.b16 %v874, %v873
  %v944 = vpack.c.b16 %v876, %v875
  %v945 = vpack.c.b16 %v878, %v877
  %v946 = vpack.c.b16 %v880, %v879
  %v947 = vpack.c.b16 %v882, %v881
  %v948 = vpack.c.b16 %v884, %v883
  %1013 = vmatprep.subr.bf16.mxu0 0
  %1014 = vmatpush1.bf16.msra.mxu0 %v892
  %1015 = vmatprep.subr.bf16.mxu0 0
  %1016 = vmatpush1.bf16.msra.mxu0 %v891
  %1017 = vmatprep.subr.bf16.mxu0 0
  %1018 = vmatpush1.bf16.msra.mxu0 %v890
  %1019 = vmatprep.subr.bf16.mxu0 0
  %1020 = vmatpush1.bf16.msra.mxu0 %v889
  %1021 = vmatprep.subr.bf16.mxu0 0
  %1022 = vmatpush1.bf16.msra.mxu0 %v888
  %1023 = vmatprep.subr.bf16.mxu0 0
  %1024 = vmatpush1.bf16.msra.mxu0 %v887
  %1025 = vmatprep.subr.bf16.mxu0 0
  %1026 = vmatpush1.bf16.msra.mxu0 %v886
  %1027 = vmatprep.subr.bf16.mxu0 0
  %1028 = vmatpush1.bf16.msra.mxu0 %v885
  %1029 = vmatprep.subr.bf16.mxu0 0
  %1030 = vmatpush2.bf16.msra.mxu0 %v900
  %1031 = vmatprep.subr.bf16.mxu0 0
  %1032 = vmatpush2.bf16.msra.mxu0 %v899
  %1033 = vmatprep.subr.bf16.mxu0 0
  %1034 = vmatpush2.bf16.msra.mxu0 %v898
  %1035 = vmatprep.subr.bf16.mxu0 0
  %1036 = vmatpush2.bf16.msra.mxu0 %v897
  %1037 = vmatprep.subr.bf16.mxu0 0
  %1038 = vmatpush2.bf16.msra.mxu0 %v896
  %1039 = vmatprep.subr.bf16.mxu0 0
  %1040 = vmatpush2.bf16.msra.mxu0 %v895
  %1041 = vmatprep.subr.bf16.mxu0 0
  %1042 = vmatpush2.bf16.msra.mxu0 %v894
  %1043 = vmatprep.subr.bf16.mxu0 0
  %1044 = vmatpush2.bf16.msra.mxu0 %v893
  %1045 = vmatprep.mubr.bf16.mxu0 %v502
  %1046 = vmatmul.mubr.bf16.gmra.mxu0 %v501
  %v1047 = vpop.f32.mrf.mxu0
  %v1048 = vadd.f32 %v232, %v1047
  %v1049 = vpop.f32.mrf.mxu0
  %v1050 = vpop.f32.mrf.mxu0
  %v1051 = vadd.f32 %v237, %v1050
  %v1052 = vpop.f32.mrf.mxu0
  %1053 = vmatprep.mubr.bf16.mxu0 %v510
  %1054 = vmatmul.mubr.bf16.gmra.mxu0 %v509
  %v1055 = vpop.f32.mrf.mxu0
  %v1056 = vadd.f32 %v242, %v1055
  %v1057 = vpop.f32.mrf.mxu0
  %v1058 = vpop.f32.mrf.mxu0
  %v1059 = vadd.f32 %v247, %v1058
  %v1060 = vpop.f32.mrf.mxu0
  %1061 = vmatprep.mubr.bf16.mxu0 %v518
  %1062 = vmatmul.mubr.bf16.gmra.mxu0 %v517
  %v1063 = vpop.f32.mrf.mxu0
  %v1064 = vadd.f32 %v252, %v1063
  %v1065 = vpop.f32.mrf.mxu0
  %v1066 = vpop.f32.mrf.mxu0
  %v1067 = vadd.f32 %v257, %v1066
  %v1068 = vpop.f32.mrf.mxu0
  %1069 = vmatprep.mubr.bf16.mxu0 %v526
  %1070 = vmatmul.mubr.bf16.gmra.mxu0 %v525
  %v1071 = vpop.f32.mrf.mxu0
  %v1072 = vadd.f32 %v262, %v1071
  %v1073 = vpop.f32.mrf.mxu0
  %v1074 = vpop.f32.mrf.mxu0
  %v1075 = vadd.f32 %v267, %v1074
  %v1076 = vpop.f32.mrf.mxu0
  %1077 = vmatprep.mubr.bf16.mxu0 %v534
  %1078 = vmatmul.mubr.bf16.gmra.mxu0 %v533
  %v1079 = vpop.f32.mrf.mxu0
  %v1080 = vadd.f32 %v272, %v1079
  %v1081 = vpop.f32.mrf.mxu0
  %v1082 = vpop.f32.mrf.mxu0
  %v1083 = vadd.f32 %v277, %v1082
  %v1084 = vpop.f32.mrf.mxu0
  %1085 = vmatprep.mubr.bf16.mxu0 %v542
  %1086 = vmatmul.mubr.bf16.gmra.mxu0 %v541
  %v1087 = vpop.f32.mrf.mxu0
  %v1088 = vadd.f32 %v282, %v1087
  %v1089 = vpop.f32.mrf.mxu0
  %v1090 = vpop.f32.mrf.mxu0
  %v1091 = vadd.f32 %v287, %v1090
  %v1092 = vpop.f32.mrf.mxu0
  %1093 = vmatprep.mubr.bf16.mxu0 %v550
  %1094 = vmatmul.mubr.bf16.gmra.mxu0 %v549
  %v1095 = vpop.f32.mrf.mxu0
  %v1096 = vadd.f32 %v292, %v1095
  %v1097 = vpop.f32.mrf.mxu0
  %v1098 = vpop.f32.mrf.mxu0
  %v1099 = vadd.f32 %v297, %v1098
  %v1100 = vpop.f32.mrf.mxu0
  %1101 = vmatprep.mubr.bf16.mxu0 %v558
  %1102 = vmatmul.mubr.bf16.gmra.mxu0 %v557
  %v1103 = vpop.f32.mrf.mxu0
  %v1104 = vadd.f32 %v302, %v1103
  %v1105 = vpop.f32.mrf.mxu0
  %v1106 = vpop.f32.mrf.mxu0
  %v1107 = vadd.f32 %v307, %v1106
  %v1108 = vpop.f32.mrf.mxu0
  %1109 = vdwg.mxu0
  %1110 = vmatprep.subr.bf16.mxu0 0
  %1111 = vmatpush1.bf16.msra.mxu0 %v908
  %1112 = vmatprep.subr.bf16.mxu0 0
  %1113 = vmatpush1.bf16.msra.mxu0 %v907
  %1114 = vmatprep.subr.bf16.mxu0 0
  %1115 = vmatpush1.bf16.msra.mxu0 %v906
  %1116 = vmatprep.subr.bf16.mxu0 0
  %1117 = vmatpush1.bf16.msra.mxu0 %v905
  %1118 = vmatprep.subr.bf16.mxu0 0
  %1119 = vmatpush1.bf16.msra.mxu0 %v904
  %1120 = vmatprep.subr.bf16.mxu0 0
  %1121 = vmatpush1.bf16.msra.mxu0 %v903
  %1122 = vmatprep.subr.bf16.mxu0 0
  %1123 = vmatpush1.bf16.msra.mxu0 %v902
  %1124 = vmatprep.subr.bf16.mxu0 0
  %1125 = vmatpush1.bf16.msra.mxu0 %v901
  %1126 = vmatprep.subr.bf16.mxu0 0
  %1127 = vmatpush2.bf16.msra.mxu0 %v916
  %1128 = vmatprep.subr.bf16.mxu0 0
  %1129 = vmatpush2.bf16.msra.mxu0 %v915
  %1130 = vmatprep.subr.bf16.mxu0 0
  %1131 = vmatpush2.bf16.msra.mxu0 %v914
  %1132 = vmatprep.subr.bf16.mxu0 0
  %1133 = vmatpush2.bf16.msra.mxu0 %v913
  %1134 = vmatprep.subr.bf16.mxu0 0
  %1135 = vmatpush2.bf16.msra.mxu0 %v912
  %1136 = vmatprep.subr.bf16.mxu0 0
  %1137 = vmatpush2.bf16.msra.mxu0 %v911
  %1138 = vmatprep.subr.bf16.mxu0 0
  %1139 = vmatpush2.bf16.msra.mxu0 %v910
  %1140 = vmatprep.subr.bf16.mxu0 0
  %1141 = vmatpush2.bf16.msra.mxu0 %v909
  %1142 = vmatprep.mubr.bf16.mxu0 %v504
  %1143 = vmatmul.mubr.bf16.gmra.mxu0 %v503
  %v1144 = vpop.f32.mrf.mxu0
  %v1145 = vadd.f32 %v1048, %v1144
  %v1146 = vpop.f32.mrf.mxu0
  %v1147 = vpop.f32.mrf.mxu0
  %v1148 = vadd.f32 %v1051, %v1147
  %v1149 = vpop.f32.mrf.mxu0
  %1150 = vmatprep.mubr.bf16.mxu0 %v512
  %1151 = vmatmul.mubr.bf16.gmra.mxu0 %v511
  %v1152 = vpop.f32.mrf.mxu0
  %v1153 = vadd.f32 %v1056, %v1152
  %v1154 = vpop.f32.mrf.mxu0
  %v1155 = vpop.f32.mrf.mxu0
  %v1156 = vadd.f32 %v1059, %v1155
  %v1157 = vpop.f32.mrf.mxu0
  %1158 = vmatprep.mubr.bf16.mxu0 %v520
  %1159 = vmatmul.mubr.bf16.gmra.mxu0 %v519
  %v1160 = vpop.f32.mrf.mxu0
  %v1161 = vadd.f32 %v1064, %v1160
  %v1162 = vpop.f32.mrf.mxu0
  %v1163 = vpop.f32.mrf.mxu0
  %v1164 = vadd.f32 %v1067, %v1163
  %v1165 = vpop.f32.mrf.mxu0
  %1166 = vmatprep.mubr.bf16.mxu0 %v528
  %1167 = vmatmul.mubr.bf16.gmra.mxu0 %v527
  %v1168 = vpop.f32.mrf.mxu0
  %v1169 = vadd.f32 %v1072, %v1168
  %v1170 = vpop.f32.mrf.mxu0
  %v1171 = vpop.f32.mrf.mxu0
  %v1172 = vadd.f32 %v1075, %v1171
  %v1173 = vpop.f32.mrf.mxu0
  %1174 = vmatprep.mubr.bf16.mxu0 %v536
  %1175 = vmatmul.mubr.bf16.gmra.mxu0 %v535
  %v1176 = vpop.f32.mrf.mxu0
  %v1177 = vadd.f32 %v1080, %v1176
  %v1178 = vpop.f32.mrf.mxu0
  %v1179 = vpop.f32.mrf.mxu0
  %v1180 = vadd.f32 %v1083, %v1179
  %v1181 = vpop.f32.mrf.mxu0
  %1182 = vmatprep.mubr.bf16.mxu0 %v544
  %1183 = vmatmul.mubr.bf16.gmra.mxu0 %v543
  %v1184 = vpop.f32.mrf.mxu0
  %v1185 = vadd.f32 %v1088, %v1184
  %v1186 = vpop.f32.mrf.mxu0
  %v1187 = vpop.f32.mrf.mxu0
  %v1188 = vadd.f32 %v1091, %v1187
  %v1189 = vpop.f32.mrf.mxu0
  %1190 = vmatprep.mubr.bf16.mxu0 %v552
  %1191 = vmatmul.mubr.bf16.gmra.mxu0 %v551
  %v1192 = vpop.f32.mrf.mxu0
  %v1193 = vadd.f32 %v1096, %v1192
  %v1194 = vpop.f32.mrf.mxu0
  %v1195 = vpop.f32.mrf.mxu0
  %v1196 = vadd.f32 %v1099, %v1195
  %v1197 = vpop.f32.mrf.mxu0
  %1198 = vmatprep.mubr.bf16.mxu0 %v560
  %1199 = vmatmul.mubr.bf16.gmra.mxu0 %v559
  %v1200 = vpop.f32.mrf.mxu0
  %v1201 = vadd.f32 %v1104, %v1200
  %v1202 = vpop.f32.mrf.mxu0
  %v1203 = vpop.f32.mrf.mxu0
  %v1204 = vadd.f32 %v1107, %v1203
  %v1205 = vpop.f32.mrf.mxu0
  %1206 = vdwg.mxu0
  %1207 = vmatprep.subr.bf16.mxu0 0
  %1208 = vmatpush1.bf16.msra.mxu0 %v924
  %1209 = vmatprep.subr.bf16.mxu0 0
  %1210 = vmatpush1.bf16.msra.mxu0 %v923
  %1211 = vmatprep.subr.bf16.mxu0 0
  %1212 = vmatpush1.bf16.msra.mxu0 %v922
  %1213 = vmatprep.subr.bf16.mxu0 0
  %1214 = vmatpush1.bf16.msra.mxu0 %v921
  %1215 = vmatprep.subr.bf16.mxu0 0
  %1216 = vmatpush1.bf16.msra.mxu0 %v920
  %1217 = vmatprep.subr.bf16.mxu0 0
  %1218 = vmatpush1.bf16.msra.mxu0 %v919
  %1219 = vmatprep.subr.bf16.mxu0 0
  %1220 = vmatpush1.bf16.msra.mxu0 %v918
  %1221 = vmatprep.subr.bf16.mxu0 0
  %1222 = vmatpush1.bf16.msra.mxu0 %v917
  %1223 = vmatprep.subr.bf16.mxu0 0
  %1224 = vmatpush2.bf16.msra.mxu0 %v932
  %1225 = vmatprep.subr.bf16.mxu0 0
  %1226 = vmatpush2.bf16.msra.mxu0 %v931
  %1227 = vmatprep.subr.bf16.mxu0 0
  %1228 = vmatpush2.bf16.msra.mxu0 %v930
  %1229 = vmatprep.subr.bf16.mxu0 0
  %1230 = vmatpush2.bf16.msra.mxu0 %v929
  %1231 = vmatprep.subr.bf16.mxu0 0
  %1232 = vmatpush2.bf16.msra.mxu0 %v928
  %1233 = vmatprep.subr.bf16.mxu0 0
  %1234 = vmatpush2.bf16.msra.mxu0 %v927
  %1235 = vmatprep.subr.bf16.mxu0 0
  %1236 = vmatpush2.bf16.msra.mxu0 %v926
  %1237 = vmatprep.subr.bf16.mxu0 0
  %1238 = vmatpush2.bf16.msra.mxu0 %v925
  %1239 = vmatprep.mubr.bf16.mxu0 %v506
  %1240 = vmatmul.mubr.bf16.gmra.mxu0 %v505
  %v1241 = vpop.f32.mrf.mxu0
  %v1242 = vadd.f32 %v1145, %v1241
  %v1243 = vpop.f32.mrf.mxu0
  %v1244 = vpop.f32.mrf.mxu0
  %v1245 = vadd.f32 %v1148, %v1244
  %v1246 = vpop.f32.mrf.mxu0
  %1247 = vmatprep.mubr.bf16.mxu0 %v514
  %1248 = vmatmul.mubr.bf16.gmra.mxu0 %v513
  %v1249 = vpop.f32.mrf.mxu0
  %v1250 = vadd.f32 %v1153, %v1249
  %v1251 = vpop.f32.mrf.mxu0
  %v1252 = vpop.f32.mrf.mxu0
  %v1253 = vadd.f32 %v1156, %v1252
  %v1254 = vpop.f32.mrf.mxu0
  %1255 = vmatprep.mubr.bf16.mxu0 %v522
  %1256 = vmatmul.mubr.bf16.gmra.mxu0 %v521
  %v1257 = vpop.f32.mrf.mxu0
  %v1258 = vadd.f32 %v1161, %v1257
  %v1259 = vpop.f32.mrf.mxu0
  %v1260 = vpop.f32.mrf.mxu0
  %v1261 = vadd.f32 %v1164, %v1260
  %v1262 = vpop.f32.mrf.mxu0
  %1263 = vmatprep.mubr.bf16.mxu0 %v530
  %1264 = vmatmul.mubr.bf16.gmra.mxu0 %v529
  %v1265 = vpop.f32.mrf.mxu0
  %v1266 = vadd.f32 %v1169, %v1265
  %v1267 = vpop.f32.mrf.mxu0
  %v1268 = vpop.f32.mrf.mxu0
  %v1269 = vadd.f32 %v1172, %v1268
  %v1270 = vpop.f32.mrf.mxu0
  %1271 = vmatprep.mubr.bf16.mxu0 %v538
  %1272 = vmatmul.mubr.bf16.gmra.mxu0 %v537
  %v1273 = vpop.f32.mrf.mxu0
  %v1274 = vadd.f32 %v1177, %v1273
  %v1275 = vpop.f32.mrf.mxu0
  %v1276 = vpop.f32.mrf.mxu0
  %v1277 = vadd.f32 %v1180, %v1276
  %v1278 = vpop.f32.mrf.mxu0
  %1279 = vmatprep.mubr.bf16.mxu0 %v546
  %1280 = vmatmul.mubr.bf16.gmra.mxu0 %v545
  %v1281 = vpop.f32.mrf.mxu0
  %v1282 = vadd.f32 %v1185, %v1281
  %v1283 = vpop.f32.mrf.mxu0
  %v1284 = vpop.f32.mrf.mxu0
  %v1285 = vadd.f32 %v1188, %v1284
  %v1286 = vpop.f32.mrf.mxu0
  %1287 = vmatprep.mubr.bf16.mxu0 %v554
  %1288 = vmatmul.mubr.bf16.gmra.mxu0 %v553
  %v1289 = vpop.f32.mrf.mxu0
  %v1290 = vadd.f32 %v1193, %v1289
  %v1291 = vpop.f32.mrf.mxu0
  %v1292 = vpop.f32.mrf.mxu0
  %v1293 = vadd.f32 %v1196, %v1292
  %v1294 = vpop.f32.mrf.mxu0
  %1295 = vmatprep.mubr.bf16.mxu0 %v562
  %1296 = vmatmul.mubr.bf16.gmra.mxu0 %v561
  %v1297 = vpop.f32.mrf.mxu0
  %v1298 = vadd.f32 %v1201, %v1297
  %v1299 = vpop.f32.mrf.mxu0
  %v1300 = vpop.f32.mrf.mxu0
  %v1301 = vadd.f32 %v1204, %v1300
  %v1302 = vpop.f32.mrf.mxu0
  %1303 = vdwg.mxu0
  %1304 = vmatprep.subr.bf16.mxu0 0
  %1305 = vmatpush1.bf16.msra.mxu0 %v940
  %1306 = vmatprep.subr.bf16.mxu0 0
  %1307 = vmatpush1.bf16.msra.mxu0 %v939
  %1308 = vmatprep.subr.bf16.mxu0 0
  %1309 = vmatpush1.bf16.msra.mxu0 %v938
  %1310 = vmatprep.subr.bf16.mxu0 0
  %1311 = vmatpush1.bf16.msra.mxu0 %v937
  %1312 = vmatprep.subr.bf16.mxu0 0
  %1313 = vmatpush1.bf16.msra.mxu0 %v936
  %1314 = vmatprep.subr.bf16.mxu0 0
  %1315 = vmatpush1.bf16.msra.mxu0 %v935
  %1316 = vmatprep.subr.bf16.mxu0 0
  %1317 = vmatpush1.bf16.msra.mxu0 %v934
  %1318 = vmatprep.subr.bf16.mxu0 0
  %1319 = vmatpush1.bf16.msra.mxu0 %v933
  %1320 = vmatprep.subr.bf16.mxu0 0
  %1321 = vmatpush2.bf16.msra.mxu0 %v948
  %1322 = vmatprep.subr.bf16.mxu0 0
  %1323 = vmatpush2.bf16.msra.mxu0 %v947
  %1324 = vmatprep.subr.bf16.mxu0 0
  %1325 = vmatpush2.bf16.msra.mxu0 %v946
  %1326 = vmatprep.subr.bf16.mxu0 0
  %1327 = vmatpush2.bf16.msra.mxu0 %v945
  %1328 = vmatprep.subr.bf16.mxu0 0
  %1329 = vmatpush2.bf16.msra.mxu0 %v944
  %1330 = vmatprep.subr.bf16.mxu0 0
  %1331 = vmatpush2.bf16.msra.mxu0 %v943
  %1332 = vmatprep.subr.bf16.mxu0 0
  %1333 = vmatpush2.bf16.msra.mxu0 %v942
  %1334 = vmatprep.subr.bf16.mxu0 0
  %1335 = vmatpush2.bf16.msra.mxu0 %v941
  %1336 = vmatprep.mubr.bf16.mxu0 %v508
  %1337 = vmatmul.mubr.bf16.gmra.mxu0 %v507
  %v1338 = vpop.f32.mrf.mxu0
  %v1339 = vadd.f32 %v1242, %v1338
  %v1340 = vpop.f32.mrf.mxu0
  %v1341 = vpop.f32.mrf.mxu0
  %v1342 = vadd.f32 %v1245, %v1341
  %v1343 = vpop.f32.mrf.mxu0
  %1344 = vmatprep.mubr.bf16.mxu0 %v516
  %1345 = vmatmul.mubr.bf16.gmra.mxu0 %v515
  %v1346 = vpop.f32.mrf.mxu0
  %v1347 = vadd.f32 %v1250, %v1346
  %v1348 = vpop.f32.mrf.mxu0
  %v1349 = vpop.f32.mrf.mxu0
  %v1350 = vadd.f32 %v1253, %v1349
  %v1351 = vpop.f32.mrf.mxu0
  %1352 = vmatprep.mubr.bf16.mxu0 %v524
  %1353 = vmatmul.mubr.bf16.gmra.mxu0 %v523
  %v1354 = vpop.f32.mrf.mxu0
  %v1355 = vadd.f32 %v1258, %v1354
  %v1356 = vpop.f32.mrf.mxu0
  %v1357 = vpop.f32.mrf.mxu0
  %v1358 = vadd.f32 %v1261, %v1357
  %v1359 = vpop.f32.mrf.mxu0
  %1360 = vmatprep.mubr.bf16.mxu0 %v532
  %1361 = vmatmul.mubr.bf16.gmra.mxu0 %v531
  %v1362 = vpop.f32.mrf.mxu0
  %v1363 = vadd.f32 %v1266, %v1362
  %v1364 = vpop.f32.mrf.mxu0
  %v1365 = vpop.f32.mrf.mxu0
  %v1366 = vadd.f32 %v1269, %v1365
  %v1367 = vpop.f32.mrf.mxu0
  %1368 = vmatprep.mubr.bf16.mxu0 %v540
  %1369 = vmatmul.mubr.bf16.gmra.mxu0 %v539
  %v1370 = vpop.f32.mrf.mxu0
  %v1371 = vadd.f32 %v1274, %v1370
  %v1372 = vpop.f32.mrf.mxu0
  %v1373 = vpop.f32.mrf.mxu0
  %v1374 = vadd.f32 %v1277, %v1373
  %v1375 = vpop.f32.mrf.mxu0
  %1376 = vmatprep.mubr.bf16.mxu0 %v548
  %1377 = vmatmul.mubr.bf16.gmra.mxu0 %v547
  %v1378 = vpop.f32.mrf.mxu0
  %v1379 = vadd.f32 %v1282, %v1378
  %v1380 = vpop.f32.mrf.mxu0
  %v1381 = vpop.f32.mrf.mxu0
  %v1382 = vadd.f32 %v1285, %v1381
  %v1383 = vpop.f32.mrf.mxu0
  %1384 = vmatprep.mubr.bf16.mxu0 %v556
  %1385 = vmatmul.mubr.bf16.gmra.mxu0 %v555
  %v1386 = vpop.f32.mrf.mxu0
  %v1387 = vadd.f32 %v1290, %v1386
  %v1388 = vpop.f32.mrf.mxu0
  %v1389 = vpop.f32.mrf.mxu0
  %v1390 = vadd.f32 %v1293, %v1389
  %v1391 = vpop.f32.mrf.mxu0
  %1392 = vmatprep.mubr.bf16.mxu0 %v564
  %1393 = vmatmul.mubr.bf16.gmra.mxu0 %v563
  %v1394 = vpop.f32.mrf.mxu0
  %v1395 = vadd.f32 %v1298, %v1394
  %v1396 = vpop.f32.mrf.mxu0
  %v1397 = vpop.f32.mrf.mxu0
  %v1398 = vadd.f32 %v1301, %v1397
  %v1399 = vpop.f32.mrf.mxu0
  %1400 = vdwg.mxu0
  %vm1401 = vcmask 64512
  %v1402 = vsel %vm1401, %v1339, 0.0
  %1403 = vadd.xlane.f32.xlu0 %v1402
  %v1404 = vpop.xlane.xlu0 %1403
  %v1405 = vsel %vm1401, %v1342, 0.0
  %1406 = vadd.xlane.f32.xlu0 %v1405
  %v1407 = vpop.xlane.xlu0 %1406
  %v1408 = vsel %vm1401, %v1347, 0.0
  %1409 = vadd.xlane.f32.xlu0 %v1408
  %v1410 = vpop.xlane.xlu0 %1409
  %v1411 = vsel %vm1401, %v1350, 0.0
  %1412 = vadd.xlane.f32.xlu0 %v1411
  %v1413 = vpop.xlane.xlu0 %1412
  %v1414 = vsel %vm1401, %v1355, 0.0
  %1415 = vadd.xlane.f32.xlu0 %v1414
  %v1416 = vpop.xlane.xlu0 %1415
  %v1417 = vsel %vm1401, %v1358, 0.0
  %1418 = vadd.xlane.f32.xlu0 %v1417
  %v1419 = vpop.xlane.xlu0 %1418
  %v1420 = vsel %vm1401, %v1363, 0.0
  %1421 = vadd.xlane.f32.xlu0 %v1420
  %v1422 = vpop.xlane.xlu0 %1421
  %v1423 = vsel %vm1401, %v1366, 0.0
  %1424 = vadd.xlane.f32.xlu0 %v1423
  %v1425 = vpop.xlane.xlu0 %1424
  %v1426 = vsel %vm1401, %v1371, 0.0
  %1427 = vadd.xlane.f32.xlu0 %v1426
  %v1428 = vpop.xlane.xlu0 %1427
  %v1429 = vsel %vm1401, %v1374, 0.0
  %1430 = vadd.xlane.f32.xlu0 %v1429
  %v1431 = vpop.xlane.xlu0 %1430
  %v1432 = vsel %vm1401, %v1379, 0.0
  %1433 = vadd.xlane.f32.xlu0 %v1432
  %v1434 = vpop.xlane.xlu0 %1433
  %v1435 = vsel %vm1401, %v1382, 0.0
  %1436 = vadd.xlane.f32.xlu0 %v1435
  %v1437 = vpop.xlane.xlu0 %1436
  %v1438 = vsel %vm1401, %v1387, 0.0
  %1439 = vadd.xlane.f32.xlu0 %v1438
  %v1440 = vpop.xlane.xlu0 %1439
  %v1441 = vsel %vm1401, %v1390, 0.0
  %1442 = vadd.xlane.f32.xlu0 %v1441
  %v1443 = vpop.xlane.xlu0 %1442
  %v1444 = vsel %vm1401, %v1395, 0.0
  %1445 = vadd.xlane.f32.xlu0 %v1444
  %v1446 = vpop.xlane.xlu0 %1445
  %v1447 = vsel %vm1401, %v1398, 0.0
  %1448 = vadd.xlane.f32.xlu0 %v1447
  %v1449 = vpop.xlane.xlu0 %1448
  %v1450 = vmul.f32 %v1404, 0.125
  %v1451 = vmul.f32 %v1407, 0.125
  %v1452 = vmul.f32 %v1410, 0.125
  %v1453 = vmul.f32 %v1413, 0.125
  %v1454 = vmul.f32 %v1416, 0.125
  %v1455 = vmul.f32 %v1419, 0.125
  %v1456 = vmul.f32 %v1422, 0.125
  %v1457 = vmul.f32 %v1425, 0.125
  %v1458 = vmul.f32 %v1428, 0.125
  %v1459 = vmul.f32 %v1431, 0.125
  %v1460 = vmul.f32 %v1434, 0.125
  %v1461 = vmul.f32 %v1437, 0.125
  %v1462 = vmul.f32 %v1440, 0.125
  %v1463 = vmul.f32 %v1443, 0.125
  %v1464 = vmul.f32 %v1446, 0.125
  %v1465 = vmul.f32 %v1449, 0.125
  %v1466 = vsub.f32 %v1339, %v1450
  %v1467 = vsub.f32 %v1342, %v1451
  %v1468 = vsub.f32 %v1347, %v1452
  %v1469 = vsub.f32 %v1350, %v1453
  %v1470 = vsub.f32 %v1355, %v1454
  %v1471 = vsub.f32 %v1358, %v1455
  %v1472 = vsub.f32 %v1363, %v1456
  %v1473 = vsub.f32 %v1366, %v1457
  %v1474 = vsub.f32 %v1371, %v1458
  %v1475 = vsub.f32 %v1374, %v1459
  %v1476 = vsub.f32 %v1379, %v1460
  %v1477 = vsub.f32 %v1382, %v1461
  %v1478 = vsub.f32 %v1387, %v1462
  %v1479 = vsub.f32 %v1390, %v1463
  %v1480 = vsub.f32 %v1395, %v1464
  %v1481 = vsub.f32 %v1398, %v1465
  %v1482 = vmul.f32 %v1466, %v1466
  %v1483 = vmul.f32 %v1467, %v1467
  %v1484 = vmul.f32 %v1468, %v1468
  %v1485 = vmul.f32 %v1469, %v1469
  %v1486 = vmul.f32 %v1470, %v1470
  %v1487 = vmul.f32 %v1471, %v1471
  %v1488 = vmul.f32 %v1472, %v1472
  %v1489 = vmul.f32 %v1473, %v1473
  %v1490 = vmul.f32 %v1474, %v1474
  %v1491 = vmul.f32 %v1475, %v1475
  %v1492 = vmul.f32 %v1476, %v1476
  %v1493 = vmul.f32 %v1477, %v1477
  %v1494 = vmul.f32 %v1478, %v1478
  %v1495 = vmul.f32 %v1479, %v1479
  %v1496 = vmul.f32 %v1480, %v1480
  %v1497 = vmul.f32 %v1481, %v1481
  %v1498 = vsel %vm1401, %v1482, 0.0
  %1499 = vadd.xlane.f32.xlu0 %v1498
  %v1500 = vpop.xlane.xlu0 %1499
  %v1501 = vsel %vm1401, %v1483, 0.0
  %1502 = vadd.xlane.f32.xlu0 %v1501
  %v1503 = vpop.xlane.xlu0 %1502
  %v1504 = vsel %vm1401, %v1484, 0.0
  %1505 = vadd.xlane.f32.xlu0 %v1504
  %v1506 = vpop.xlane.xlu0 %1505
  %v1507 = vsel %vm1401, %v1485, 0.0
  %1508 = vadd.xlane.f32.xlu0 %v1507
  %v1509 = vpop.xlane.xlu0 %1508
  %v1510 = vsel %vm1401, %v1486, 0.0
  %1511 = vadd.xlane.f32.xlu0 %v1510
  %v1512 = vpop.xlane.xlu0 %1511
  %v1513 = vsel %vm1401, %v1487, 0.0
  %1514 = vadd.xlane.f32.xlu0 %v1513
  %v1515 = vpop.xlane.xlu0 %1514
  %v1516 = vsel %vm1401, %v1488, 0.0
  %1517 = vadd.xlane.f32.xlu0 %v1516
  %v1518 = vpop.xlane.xlu0 %1517
  %v1519 = vsel %vm1401, %v1489, 0.0
  %1520 = vadd.xlane.f32.xlu0 %v1519
  %v1521 = vpop.xlane.xlu0 %1520
  %v1522 = vsel %vm1401, %v1490, 0.0
  %1523 = vadd.xlane.f32.xlu0 %v1522
  %v1524 = vpop.xlane.xlu0 %1523
  %v1525 = vsel %vm1401, %v1491, 0.0
  %1526 = vadd.xlane.f32.xlu0 %v1525
  %v1527 = vpop.xlane.xlu0 %1526
  %v1528 = vsel %vm1401, %v1492, 0.0
  %1529 = vadd.xlane.f32.xlu0 %v1528
  %v1530 = vpop.xlane.xlu0 %1529
  %v1531 = vsel %vm1401, %v1493, 0.0
  %1532 = vadd.xlane.f32.xlu0 %v1531
  %v1533 = vpop.xlane.xlu0 %1532
  %v1534 = vsel %vm1401, %v1494, 0.0
  %1535 = vadd.xlane.f32.xlu0 %v1534
  %v1536 = vpop.xlane.xlu0 %1535
  %v1537 = vsel %vm1401, %v1495, 0.0
  %1538 = vadd.xlane.f32.xlu0 %v1537
  %v1539 = vpop.xlane.xlu0 %1538
  %v1540 = vsel %vm1401, %v1496, 0.0
  %1541 = vadd.xlane.f32.xlu0 %v1540
  %v1542 = vpop.xlane.xlu0 %1541
  %v1543 = vsel %vm1401, %v1497, 0.0
  %1544 = vadd.xlane.f32.xlu0 %v1543
  %v1545 = vpop.xlane.xlu0 %1544
  %v1546 = vmul.f32 %v1500, 0.125
  %v1547 = vmul.f32 %v1503, 0.125
  %v1548 = vmul.f32 %v1506, 0.125
  %v1549 = vmul.f32 %v1509, 0.125
  %v1550 = vmul.f32 %v1512, 0.125
  %v1551 = vmul.f32 %v1515, 0.125
  %v1552 = vmul.f32 %v1518, 0.125
  %v1553 = vmul.f32 %v1521, 0.125
  %v1554 = vmul.f32 %v1524, 0.125
  %v1555 = vmul.f32 %v1527, 0.125
  %v1556 = vmul.f32 %v1530, 0.125
  %v1557 = vmul.f32 %v1533, 0.125
  %v1558 = vmul.f32 %v1536, 0.125
  %v1559 = vmul.f32 %v1539, 0.125
  %v1560 = vmul.f32 %v1542, 0.125
  %v1561 = vmul.f32 %v1545, 0.125
  %v1562 = vld [vmem:[%s3] sm:$0xff]
  %v1563 = vld [vmem:[%s3 + $0x8] sm:$0xff]
  %v1564 = vld [vmem:[%s3 + $0x10] sm:$0xff]
  %v1565 = vld [vmem:[%s3 + $0x18] sm:$0xff]
  %v1566 = vld [vmem:[%s3 + $0x20] sm:$0xff]
  %v1567 = vld [vmem:[%s3 + $0x28] sm:$0xff]
  %v1568 = vld [vmem:[%s3 + $0x30] sm:$0xff]
  %v1569 = vld [vmem:[%s3 + $0x38] sm:$0xff]
  %v1570 = vld [vmem:[%s3 + $0x40] sm:$0xff]
  %v1571 = vld [vmem:[%s3 + $0x48] sm:$0xff]
  %v1572 = vld [vmem:[%s3 + $0x50] sm:$0xff]
  %v1573 = vld [vmem:[%s3 + $0x58] sm:$0xff]
  %v1574 = vld [vmem:[%s3 + $0x60] sm:$0xff]
  %v1575 = vld [vmem:[%s3 + $0x68] sm:$0xff]
  %v1576 = vld [vmem:[%s3 + $0x70] sm:$0xff]
  %v1577 = vld [vmem:[%s3 + $0x78] sm:$0xff]
  %v1578 = vadd.f32 %v1546, 1e-05
  %v1579 = vadd.f32 %v1547, 1e-05
  %v1580 = vadd.f32 %v1548, 1e-05
  %v1581 = vadd.f32 %v1549, 1e-05
  %v1582 = vadd.f32 %v1550, 1e-05
  %v1583 = vadd.f32 %v1551, 1e-05
  %v1584 = vadd.f32 %v1552, 1e-05
  %v1585 = vadd.f32 %v1553, 1e-05
  %v1586 = vadd.f32 %v1554, 1e-05
  %v1587 = vadd.f32 %v1555, 1e-05
  %v1588 = vadd.f32 %v1556, 1e-05
  %v1589 = vadd.f32 %v1557, 1e-05
  %v1590 = vadd.f32 %v1558, 1e-05
  %v1591 = vadd.f32 %v1559, 1e-05
  %v1592 = vadd.f32 %v1560, 1e-05
  %v1593 = vadd.f32 %v1561, 1e-05
  %v1594 = vrsqrt.pop %v1578
  %v1595 = vrsqrt.pop %v1579
  %v1596 = vrsqrt.pop %v1580
  %v1597 = vrsqrt.pop %v1581
  %v1598 = vrsqrt.pop %v1582
  %v1599 = vrsqrt.pop %v1583
  %v1600 = vrsqrt.pop %v1584
  %v1601 = vrsqrt.pop %v1585
  %v1602 = vrsqrt.pop %v1586
  %v1603 = vrsqrt.pop %v1587
  %v1604 = vrsqrt.pop %v1588
  %v1605 = vrsqrt.pop %v1589
  %v1606 = vrsqrt.pop %v1590
  %v1607 = vrsqrt.pop %v1591
  %v1608 = vrsqrt.pop %v1592
  %v1609 = vrsqrt.pop %v1593
  %v1610 = vmul.f32 %v1562, %v1594
  %v1611 = vmul.f32 %v1563, %v1595
  %v1612 = vmul.f32 %v1564, %v1596
  %v1613 = vmul.f32 %v1565, %v1597
  %v1614 = vmul.f32 %v1566, %v1598
  %v1615 = vmul.f32 %v1567, %v1599
  %v1616 = vmul.f32 %v1568, %v1600
  %v1617 = vmul.f32 %v1569, %v1601
  %v1618 = vmul.f32 %v1570, %v1602
  %v1619 = vmul.f32 %v1571, %v1603
  %v1620 = vmul.f32 %v1572, %v1604
  %v1621 = vmul.f32 %v1573, %v1605
  %v1622 = vmul.f32 %v1574, %v1606
  %v1623 = vmul.f32 %v1575, %v1607
  %v1624 = vmul.f32 %v1576, %v1608
  %v1625 = vmul.f32 %v1577, %v1609
  %1627 = vset.pattern.permute.xlu0 0
  %1628 = vperm.xlu0 %1627, %v1610
  %v1629 = vpop.permute.xlu0 %1628
  %1632 = vset.pattern.permute.xlu0 0
  %1633 = vperm.xlu0 %1632, %v1611
  %v1634 = vpop.permute.xlu0 %1633
  %1637 = vset.pattern.permute.xlu0 0
  %1638 = vperm.xlu0 %1637, %v1612
  %v1639 = vpop.permute.xlu0 %1638
  %1642 = vset.pattern.permute.xlu0 0
  %1643 = vperm.xlu0 %1642, %v1613
  %v1644 = vpop.permute.xlu0 %1643
  %1647 = vset.pattern.permute.xlu0 0
  %1648 = vperm.xlu0 %1647, %v1614
  %v1649 = vpop.permute.xlu0 %1648
  %1652 = vset.pattern.permute.xlu0 0
  %1653 = vperm.xlu0 %1652, %v1615
  %v1654 = vpop.permute.xlu0 %1653
  %1657 = vset.pattern.permute.xlu0 0
  %1658 = vperm.xlu0 %1657, %v1616
  %v1659 = vpop.permute.xlu0 %1658
  %1662 = vset.pattern.permute.xlu0 0
  %1663 = vperm.xlu0 %1662, %v1617
  %v1664 = vpop.permute.xlu0 %1663
  %1667 = vset.pattern.permute.xlu0 0
  %1668 = vperm.xlu0 %1667, %v1618
  %v1669 = vpop.permute.xlu0 %1668
  %1672 = vset.pattern.permute.xlu0 0
  %1673 = vperm.xlu0 %1672, %v1619
  %v1674 = vpop.permute.xlu0 %1673
  %1677 = vset.pattern.permute.xlu0 0
  %1678 = vperm.xlu0 %1677, %v1620
  %v1679 = vpop.permute.xlu0 %1678
  %1682 = vset.pattern.permute.xlu0 0
  %1683 = vperm.xlu0 %1682, %v1621
  %v1684 = vpop.permute.xlu0 %1683
  %1687 = vset.pattern.permute.xlu0 0
  %1688 = vperm.xlu0 %1687, %v1622
  %v1689 = vpop.permute.xlu0 %1688
  %1692 = vset.pattern.permute.xlu0 0
  %1693 = vperm.xlu0 %1692, %v1623
  %v1694 = vpop.permute.xlu0 %1693
  %1697 = vset.pattern.permute.xlu0 0
  %1698 = vperm.xlu0 %1697, %v1624
  %v1699 = vpop.permute.xlu0 %1698
  %1702 = vset.pattern.permute.xlu0 0
  %1703 = vperm.xlu0 %1702, %v1625
  %v1704 = vpop.permute.xlu0 %1703
  %v1706 = vmul.f32 %v1466, %v1629
  %v1707 = vmul.f32 %v1467, %v1634
  %v1708 = vmul.f32 %v1468, %v1639
  %v1709 = vmul.f32 %v1469, %v1644
  %v1710 = vmul.f32 %v1470, %v1649
  %v1711 = vmul.f32 %v1471, %v1654
  %v1712 = vmul.f32 %v1472, %v1659
  %v1713 = vmul.f32 %v1473, %v1664
  %v1714 = vmul.f32 %v1474, %v1669
  %v1715 = vmul.f32 %v1475, %v1674
  %v1716 = vmul.f32 %v1476, %v1679
  %v1717 = vmul.f32 %v1477, %v1684
  %v1718 = vmul.f32 %v1478, %v1689
  %v1719 = vmul.f32 %v1479, %v1694
  %v1720 = vmul.f32 %v1480, %v1699
  %v1721 = vmul.f32 %v1481, %v1704
  %v1722 = vld [vmem:[%s4] sm:$0xff]
  %v1723 = vld [vmem:[%s4 + $0x8] sm:$0xff]
  %v1724 = vld [vmem:[%s4 + $0x10] sm:$0xff]
  %v1725 = vld [vmem:[%s4 + $0x18] sm:$0xff]
  %v1726 = vld [vmem:[%s4 + $0x20] sm:$0xff]
  %v1727 = vld [vmem:[%s4 + $0x28] sm:$0xff]
  %v1728 = vld [vmem:[%s4 + $0x30] sm:$0xff]
  %v1729 = vld [vmem:[%s4 + $0x38] sm:$0xff]
  %v1730 = vld [vmem:[%s4 + $0x40] sm:$0xff]
  %v1731 = vld [vmem:[%s4 + $0x48] sm:$0xff]
  %v1732 = vld [vmem:[%s4 + $0x50] sm:$0xff]
  %v1733 = vld [vmem:[%s4 + $0x58] sm:$0xff]
  %v1734 = vld [vmem:[%s4 + $0x60] sm:$0xff]
  %v1735 = vld [vmem:[%s4 + $0x68] sm:$0xff]
  %v1736 = vld [vmem:[%s4 + $0x70] sm:$0xff]
  %v1737 = vld [vmem:[%s4 + $0x78] sm:$0xff]
  %1739 = vset.pattern.permute.xlu0 0
  %1740 = vperm.xlu0 %1739, %v1722
  %v1741 = vpop.permute.xlu0 %1740
  %1744 = vset.pattern.permute.xlu0 0
  %1745 = vperm.xlu0 %1744, %v1723
  %v1746 = vpop.permute.xlu0 %1745
  %1749 = vset.pattern.permute.xlu0 0
  %1750 = vperm.xlu0 %1749, %v1724
  %v1751 = vpop.permute.xlu0 %1750
  %1754 = vset.pattern.permute.xlu0 0
  %1755 = vperm.xlu0 %1754, %v1725
  %v1756 = vpop.permute.xlu0 %1755
  %1759 = vset.pattern.permute.xlu0 0
  %1760 = vperm.xlu0 %1759, %v1726
  %v1761 = vpop.permute.xlu0 %1760
  %1764 = vset.pattern.permute.xlu0 0
  %1765 = vperm.xlu0 %1764, %v1727
  %v1766 = vpop.permute.xlu0 %1765
  %1769 = vset.pattern.permute.xlu0 0
  %1770 = vperm.xlu0 %1769, %v1728
  %v1771 = vpop.permute.xlu0 %1770
  %1774 = vset.pattern.permute.xlu0 0
  %1775 = vperm.xlu0 %1774, %v1729
  %v1776 = vpop.permute.xlu0 %1775
  %1779 = vset.pattern.permute.xlu0 0
  %1780 = vperm.xlu0 %1779, %v1730
  %v1781 = vpop.permute.xlu0 %1780
  %1784 = vset.pattern.permute.xlu0 0
  %1785 = vperm.xlu0 %1784, %v1731
  %v1786 = vpop.permute.xlu0 %1785
  %1789 = vset.pattern.permute.xlu0 0
  %1790 = vperm.xlu0 %1789, %v1732
  %v1791 = vpop.permute.xlu0 %1790
  %1794 = vset.pattern.permute.xlu0 0
  %1795 = vperm.xlu0 %1794, %v1733
  %v1796 = vpop.permute.xlu0 %1795
  %1799 = vset.pattern.permute.xlu0 0
  %1800 = vperm.xlu0 %1799, %v1734
  %v1801 = vpop.permute.xlu0 %1800
  %1804 = vset.pattern.permute.xlu0 0
  %1805 = vperm.xlu0 %1804, %v1735
  %v1806 = vpop.permute.xlu0 %1805
  %1809 = vset.pattern.permute.xlu0 0
  %1810 = vperm.xlu0 %1809, %v1736
  %v1811 = vpop.permute.xlu0 %1810
  %1814 = vset.pattern.permute.xlu0 0
  %1815 = vperm.xlu0 %1814, %v1737
  %v1816 = vpop.permute.xlu0 %1815
  %v1818 = vadd.f32 %v1706, %v1741
  %v1819 = vadd.f32 %v1707, %v1746
  %v1820 = vadd.f32 %v1708, %v1751
  %v1821 = vadd.f32 %v1709, %v1756
  %v1822 = vadd.f32 %v1710, %v1761
  %v1823 = vadd.f32 %v1711, %v1766
  %v1824 = vadd.f32 %v1712, %v1771
  %v1825 = vadd.f32 %v1713, %v1776
  %v1826 = vadd.f32 %v1714, %v1781
  %v1827 = vadd.f32 %v1715, %v1786
  %v1828 = vadd.f32 %v1716, %v1791
  %v1829 = vadd.f32 %v1717, %v1796
  %v1830 = vadd.f32 %v1718, %v1801
  %v1831 = vadd.f32 %v1719, %v1806
  %v1832 = vadd.f32 %v1720, %v1811
  %v1833 = vadd.f32 %v1721, %v1816
  %vm1834 = vcmp.ge.f32.partialorder %v1818, 0.0
  %vm1835 = vcmp.ge.f32.partialorder %v1819, 0.0
  %vm1836 = vcmp.ge.f32.partialorder %v1820, 0.0
  %vm1837 = vcmp.ge.f32.partialorder %v1821, 0.0
  %vm1838 = vcmp.ge.f32.partialorder %v1822, 0.0
  %vm1839 = vcmp.ge.f32.partialorder %v1823, 0.0
  %vm1840 = vcmp.ge.f32.partialorder %v1824, 0.0
  %vm1841 = vcmp.ge.f32.partialorder %v1825, 0.0
  %vm1842 = vcmp.ge.f32.partialorder %v1826, 0.0
  %vm1843 = vcmp.ge.f32.partialorder %v1827, 0.0
  %vm1844 = vcmp.ge.f32.partialorder %v1828, 0.0
  %vm1845 = vcmp.ge.f32.partialorder %v1829, 0.0
  %vm1846 = vcmp.ge.f32.partialorder %v1830, 0.0
  %vm1847 = vcmp.ge.f32.partialorder %v1831, 0.0
  %vm1848 = vcmp.ge.f32.partialorder %v1832, 0.0
  %vm1849 = vcmp.ge.f32.partialorder %v1833, 0.0
  %v1850 = vmul.f32 %v1818, 0.2
  %v1851 = vmul.f32 %v1819, 0.2
  %v1852 = vmul.f32 %v1820, 0.2
  %v1853 = vmul.f32 %v1821, 0.2
  %v1854 = vmul.f32 %v1822, 0.2
  %v1855 = vmul.f32 %v1823, 0.2
  %v1856 = vmul.f32 %v1824, 0.2
  %v1857 = vmul.f32 %v1825, 0.2
  %v1858 = vmul.f32 %v1826, 0.2
  %v1859 = vmul.f32 %v1827, 0.2
  %v1860 = vmul.f32 %v1828, 0.2
  %v1861 = vmul.f32 %v1829, 0.2
  %v1862 = vmul.f32 %v1830, 0.2
  %v1863 = vmul.f32 %v1831, 0.2
  %v1864 = vmul.f32 %v1832, 0.2
  %v1865 = vmul.f32 %v1833, 0.2
  %v1866 = vsel %vm1834, %v1818, %v1850
  %v1867 = vsel %vm1835, %v1819, %v1851
  %v1868 = vsel %vm1836, %v1820, %v1852
  %v1869 = vsel %vm1837, %v1821, %v1853
  %v1870 = vsel %vm1838, %v1822, %v1854
  %v1871 = vsel %vm1839, %v1823, %v1855
  %v1872 = vsel %vm1840, %v1824, %v1856
  %v1873 = vsel %vm1841, %v1825, %v1857
  %v1874 = vsel %vm1842, %v1826, %v1858
  %v1875 = vsel %vm1843, %v1827, %v1859
  %v1876 = vsel %vm1844, %v1828, %v1860
  %v1877 = vsel %vm1845, %v1829, %v1861
  %v1878 = vsel %vm1846, %v1830, %v1862
  %v1879 = vsel %vm1847, %v1831, %v1863
  %v1880 = vsel %vm1848, %v1832, %v1864
  %v1881 = vsel %vm1849, %v1833, %v1865
  %v1882 = vpack.c.bf16 %v1867, %v1866
  %v1883 = vpack.c.bf16 %v1869, %v1868
  %v1884 = vpack.c.bf16 %v1871, %v1870
  %v1885 = vpack.c.bf16 %v1873, %v1872
  %v1886 = vpack.c.bf16 %v1875, %v1874
  %v1887 = vpack.c.bf16 %v1877, %v1876
  %v1888 = vpack.c.bf16 %v1879, %v1878
  %v1889 = vpack.c.bf16 %v1881, %v1880
  %v1898 = vunpack.c.l.b16 %v1882
  %v1899 = vunpack.c.h.b16 %v1882
  %v1900 = vunpack.c.l.b16 %v1883
  %v1901 = vunpack.c.h.b16 %v1883
  %v1902 = vunpack.c.l.b16 %v1884
  %v1903 = vunpack.c.h.b16 %v1884
  %v1904 = vunpack.c.l.b16 %v1885
  %v1905 = vunpack.c.h.b16 %v1885
  %v1906 = vunpack.c.l.b16 %v1886
  %v1907 = vunpack.c.h.b16 %v1886
  %v1908 = vunpack.c.l.b16 %v1887
  %v1909 = vunpack.c.h.b16 %v1887
  %v1910 = vunpack.c.l.b16 %v1888
  %v1911 = vunpack.c.h.b16 %v1888
  %v1912 = vunpack.c.l.b16 %v1889
  %v1913 = vunpack.c.h.b16 %v1889
  %v1914 = vpack.c.b16 %v1898, %v1898
  %v1915 = vpack.c.b16 %v1899, %v1899
  %v1916 = vpack.c.b16 %v1900, %v1900
  %v1917 = vpack.c.b16 %v1901, %v1901
  %v1918 = vpack.c.b16 %v1902, %v1902
  %v1919 = vpack.c.b16 %v1903, %v1903
  %v1920 = vpack.c.b16 %v1904, %v1904
  %v1921 = vpack.c.b16 %v1905, %v1905
  %v1922 = vpack.c.b16 %v1906, %v1906
  %v1923 = vpack.c.b16 %v1907, %v1907
  %v1924 = vpack.c.b16 %v1908, %v1908
  %v1925 = vpack.c.b16 %v1909, %v1909
  %v1926 = vpack.c.b16 %v1910, %v1910
  %v1927 = vpack.c.b16 %v1911, %v1911
  %v1928 = vpack.c.b16 %v1912, %v1912
  %v1929 = vpack.c.b16 %v1913, %v1913
  %vm1946 = vcmask 60416
  %1947 = vst.msk [vmem:[%s5] sm:$0xf] %vm1946, %v1914
  %1948 = vst.msk [vmem:[%s5 + $0x4] sm:$0xf] %vm1946, %v1915
  %1949 = vst.msk [vmem:[%s5 + $0x8] sm:$0xf] %vm1946, %v1916
  %1950 = vst.msk [vmem:[%s5 + $0xc] sm:$0xf] %vm1946, %v1917
  %1951 = vst.msk [vmem:[%s5 + $0x10] sm:$0xf] %vm1946, %v1918
  %1952 = vst.msk [vmem:[%s5 + $0x14] sm:$0xf] %vm1946, %v1919
  %1953 = vst.msk [vmem:[%s5 + $0x18] sm:$0xf] %vm1946, %v1920
  %1954 = vst.msk [vmem:[%s5 + $0x1c] sm:$0xf] %vm1946, %v1921
  %1955 = vst.msk [vmem:[%s5 + $0x20] sm:$0xf] %vm1946, %v1922
  %1956 = vst.msk [vmem:[%s5 + $0x24] sm:$0xf] %vm1946, %v1923
  %1957 = vst.msk [vmem:[%s5 + $0x28] sm:$0xf] %vm1946, %v1924
  %1958 = vst.msk [vmem:[%s5 + $0x2c] sm:$0xf] %vm1946, %v1925
  %1959 = vst.msk [vmem:[%s5 + $0x30] sm:$0xf] %vm1946, %v1926
  %1960 = vst.msk [vmem:[%s5 + $0x34] sm:$0xf] %vm1946, %v1927
  %1961 = vst.msk [vmem:[%s5 + $0x38] sm:$0xf] %vm1946, %v1928
  %1962 = vst.msk [vmem:[%s5 + $0x3c] sm:$0xf] %vm1946, %v1929
  // Predicated region
  $region22: #{discriminator_forward.8} parent=0 // pred_check
    _
  $region23: #{discriminator_forward.8} parent=0 // pred_check_branch
    %1964 = sbr.rel (0) target = $region25
  $region24: #{discriminator_forward.8} parent=0 // pred_region
    _
  $region25: #{discriminator_forward.8} parent=0 // pred_fallthru
    _
  // Predicated region
  $region26: #{discriminator_forward.8} parent=0 // pred_check
    _
  $region27: #{discriminator_forward.8} parent=0 // pred_check_branch
    %1966 = sbr.rel (0) target = $region29
  $region28: #{discriminator_forward.8} parent=0 // pred_region
    _
  $region29: #{discriminator_forward.8} parent=0 // pred_fallthru
    _

// kernel: discriminator_forward.9
$region0: #{discriminator_forward.9}
  #allocation0 [shape = 'u32[]', space=smem, size = 0x4, offset = 0x4, fixed_abs, tag = 'smem constant byte address 0x4 - core index']
  #allocation1 [shape = 'u32[144,128]{1,0:T(1,128)}', space=vmem, size = 0x12000, scoped, tag = 'internal scratch']
  #allocation2 [shape = 'f32[1,1]{1,0:T(1,128)S(1)}', space=vmem, size = 0x200, scoped, tag = 'scoped memory for discriminator_forward.9']
  %s0 = inlined_call_operand.vmem [shape: bf16[2048,2], index: 0, kind: input, shape index: {}]
  %s1 = inlined_call_operand.vmem [shape: bf16[1,2048], index: 1, kind: input, shape index: {}]
  %s2 = inlined_call_operand.<no memory space> [shape: f32[1,1], index: 2, kind: input, shape index: {}]
  %s3 = inlined_call_operand.hbm [shape: f32[1,2], index: 3, kind: output, shape index: {}]
  %s4 = sld [smem:[#allocation0]]
  $region22: #{discriminator_forward.9} parent=0
    _
  %s6 = ssub.s32 1, %s4
  %s7 = scalar_select 0, %s6, %s4
  %v8 = vstv %s2
  %9 = vst [vmem:[#allocation2] sm:$0x1] %v8
  $region1: #{discriminator_forward.9} parent=0
    #allocation3 [shape = 'u8[512]{0}', space=vmem, size = 0x400, scoped, tag = 'output window, operand 0, single buffered']
    #allocation4 [shape = 's32[1]{0}', space=sflag, size = 0x4, scoped, tag = 'scoped memory for discriminator_forward.9']
    %10 = vsyncpa [#allocation4], 0
    // Predicated region
    $region2: #{discriminator_forward.9} parent=1 // pred_check
      _
    $region3: #{discriminator_forward.9} parent=1 // pred_check_branch
      %12 = sbr.rel (0) target = $region5
    $region4: #{discriminator_forward.9} parent=1 // pred_region
      _
    $region5: #{discriminator_forward.9} parent=1 // pred_fallthru
      _
    // Predicated region
    $region6: #{discriminator_forward.9} parent=1 // pred_check
      _
    $region7: #{discriminator_forward.9} parent=1 // pred_check_branch
      %14 = sbr.rel (0) target = $region9
    $region8: #{discriminator_forward.9} parent=1 // pred_region
      _
    $region9: #{discriminator_forward.9} parent=1 // pred_fallthru
      _
    // Predicated region
    $region10: #{discriminator_forward.9} parent=1 // pred_check
      _
    $region11: #{discriminator_forward.9} parent=1 // pred_check_branch
      %16 = sbr.rel (0) target = $region13
    $region12: #{discriminator_forward.9} parent=1 // pred_region
      _
    $region13: #{discriminator_forward.9} parent=1 // pred_fallthru
      _
    %v18 = vld [vmem:[%s1] sm:$0xff]
    %v19 = vld [vmem:[%s1 + $0x8] sm:$0xff]
    %v20 = vld [vmem:[%s0] sm:$0xf]
    %v21 = vld [vmem:[%s0 + $0x4] sm:$0xf]
    %v22 = vld [vmem:[%s0 + $0x8] sm:$0xf]
    %v23 = vld [vmem:[%s0 + $0xc] sm:$0xf]
    %v24 = vld [vmem:[%s0 + $0x10] sm:$0xf]
    %v25 = vld [vmem:[%s0 + $0x14] sm:$0xf]
    %v26 = vld [vmem:[%s0 + $0x18] sm:$0xf]
    %v27 = vld [vmem:[%s0 + $0x1c] sm:$0xf]
    %v28 = vld [vmem:[%s0 + $0x20] sm:$0xf]
    %v29 = vld [vmem:[%s0 + $0x24] sm:$0xf]
    %v30 = vld [vmem:[%s0 + $0x28] sm:$0xf]
    %v31 = vld [vmem:[%s0 + $0x2c] sm:$0xf]
    %v32 = vld [vmem:[%s0 + $0x30] sm:$0xf]
    %v33 = vld [vmem:[%s0 + $0x34] sm:$0xf]
    %v34 = vld [vmem:[%s0 + $0x38] sm:$0xf]
    %v35 = vld [vmem:[%s0 + $0x3c] sm:$0xf]
    %v36 = vld [vmem:[%s0 + $0x40] sm:$0xf]
    %v37 = vld [vmem:[%s0 + $0x44] sm:$0xf]
    %v38 = vld [vmem:[%s0 + $0x48] sm:$0xf]
    %v39 = vld [vmem:[%s0 + $0x4c] sm:$0xf]
    %v40 = vld [vmem:[%s0 + $0x50] sm:$0xf]
    %v41 = vld [vmem:[%s0 + $0x54] sm:$0xf]
    %v42 = vld [vmem:[%s0 + $0x58] sm:$0xf]
    %v43 = vld [vmem:[%s0 + $0x5c] sm:$0xf]
    %v44 = vld [vmem:[%s0 + $0x60] sm:$0xf]
    %v45 = vld [vmem:[%s0 + $0x64] sm:$0xf]
    %v46 = vld [vmem:[%s0 + $0x68] sm:$0xf]
    %v47 = vld [vmem:[%s0 + $0x6c] sm:$0xf]
    %v48 = vld [vmem:[%s0 + $0x70] sm:$0xf]
    %v49 = vld [vmem:[%s0 + $0x74] sm:$0xf]
    %v50 = vld [vmem:[%s0 + $0x78] sm:$0xf]
    %v51 = vld [vmem:[%s0 + $0x7c] sm:$0xf]
    %v52 = vld [vmem:[%s0 + $0x80] sm:$0xf]
    %v53 = vld [vmem:[%s0 + $0x84] sm:$0xf]
    %v54 = vld [vmem:[%s0 + $0x88] sm:$0xf]
    %v55 = vld [vmem:[%s0 + $0x8c] sm:$0xf]
    %v56 = vld [vmem:[%s0 + $0x90] sm:$0xf]
    %v57 = vld [vmem:[%s0 + $0x94] sm:$0xf]
    %v58 = vld [vmem:[%s0 + $0x98] sm:$0xf]
    %v59 = vld [vmem:[%s0 + $0x9c] sm:$0xf]
    %v60 = vld [vmem:[%s0 + $0xa0] sm:$0xf]
    %v61 = vld [vmem:[%s0 + $0xa4] sm:$0xf]
    %v62 = vld [vmem:[%s0 + $0xa8] sm:$0xf]
    %v63 = vld [vmem:[%s0 + $0xac] sm:$0xf]
    %v64 = vld [vmem:[%s0 + $0xb0] sm:$0xf]
    %v65 = vld [vmem:[%s0 + $0xb4] sm:$0xf]
    %v66 = vld [vmem:[%s0 + $0xb8] sm:$0xf]
    %v67 = vld [vmem:[%s0 + $0xbc] sm:$0xf]
    %v68 = vld [vmem:[%s0 + $0xc0] sm:$0xf]
    %v69 = vld [vmem:[%s0 + $0xc4] sm:$0xf]
    %v70 = vld [vmem:[%s0 + $0xc8] sm:$0xf]
    %v71 = vld [vmem:[%s0 + $0xcc] sm:$0xf]
    %v72 = vld [vmem:[%s0 + $0xd0] sm:$0xf]
    %v73 = vld [vmem:[%s0 + $0xd4] sm:$0xf]
    %v74 = vld [vmem:[%s0 + $0xd8] sm:$0xf]
    %v75 = vld [vmem:[%s0 + $0xdc] sm:$0xf]
    %v76 = vld [vmem:[%s0 + $0xe0] sm:$0xf]
    %v77 = vld [vmem:[%s0 + $0xe4] sm:$0xf]
    %v78 = vld [vmem:[%s0 + $0xe8] sm:$0xf]
    %v79 = vld [vmem:[%s0 + $0xec] sm:$0xf]
    %v80 = vld [vmem:[%s0 + $0xf0] sm:$0xf]
    %v81 = vld [vmem:[%s0 + $0xf4] sm:$0xf]
    %v82 = vld [vmem:[%s0 + $0xf8] sm:$0xf]
    %v83 = vld [vmem:[%s0 + $0xfc] sm:$0xf]
    %v84 = vld [vmem:[%s0 + $0x100] sm:$0xf]
    %v85 = vld [vmem:[%s0 + $0x104] sm:$0xf]
    %v86 = vld [vmem:[%s0 + $0x108] sm:$0xf]
    %v87 = vld [vmem:[%s0 + $0x10c] sm:$0xf]
    %v88 = vld [vmem:[%s0 + $0x110] sm:$0xf]
    %v89 = vld [vmem:[%s0 + $0x114] sm:$0xf]
    %v90 = vld [vmem:[%s0 + $0x118] sm:$0xf]
    %v91 = vld [vmem:[%s0 + $0x11c] sm:$0xf]
    %v92 = vld [vmem:[%s0 + $0x120] sm:$0xf]
    %v93 = vld [vmem:[%s0 + $0x124] sm:$0xf]
    %v94 = vld [vmem:[%s0 + $0x128] sm:$0xf]
    %v95 = vld [vmem:[%s0 + $0x12c] sm:$0xf]
    %v96 = vld [vmem:[%s0 + $0x130] sm:$0xf]
    %v97 = vld [vmem:[%s0 + $0x134] sm:$0xf]
    %v98 = vld [vmem:[%s0 + $0x138] sm:$0xf]
    %v99 = vld [vmem:[%s0 + $0x13c] sm:$0xf]
    %v100 = vld [vmem:[%s0 + $0x140] sm:$0xf]
    %v101 = vld [vmem:[%s0 + $0x144] sm:$0xf]
    %v102 = vld [vmem:[%s0 + $0x148] sm:$0xf]
    %v103 = vld [vmem:[%s0 + $0x14c] sm:$0xf]
    %v104 = vld [vmem:[%s0 + $0x150] sm:$0xf]
    %v105 = vld [vmem:[%s0 + $0x154] sm:$0xf]
    %v106 = vld [vmem:[%s0 + $0x158] sm:$0xf]
    %v107 = vld [vmem:[%s0 + $0x15c] sm:$0xf]
    %v108 = vld [vmem:[%s0 + $0x160] sm:$0xf]
    %v109 = vld [vmem:[%s0 + $0x164] sm:$0xf]
    %v110 = vld [vmem:[%s0 + $0x168] sm:$0xf]
    %v111 = vld [vmem:[%s0 + $0x16c] sm:$0xf]
    %v112 = vld [vmem:[%s0 + $0x170] sm:$0xf]
    %v113 = vld [vmem:[%s0 + $0x174] sm:$0xf]
    %v114 = vld [vmem:[%s0 + $0x178] sm:$0xf]
    %v115 = vld [vmem:[%s0 + $0x17c] sm:$0xf]
    %v116 = vld [vmem:[%s0 + $0x180] sm:$0xf]
    %v117 = vld [vmem:[%s0 + $0x184] sm:$0xf]
    %v118 = vld [vmem:[%s0 + $0x188] sm:$0xf]
    %v119 = vld [vmem:[%s0 + $0x18c] sm:$0xf]
    %v120 = vld [vmem:[%s0 + $0x190] sm:$0xf]
    %v121 = vld [vmem:[%s0 + $0x194] sm:$0xf]
    %v122 = vld [vmem:[%s0 + $0x198] sm:$0xf]
    %v123 = vld [vmem:[%s0 + $0x19c] sm:$0xf]
    %v124 = vld [vmem:[%s0 + $0x1a0] sm:$0xf]
    %v125 = vld [vmem:[%s0 + $0x1a4] sm:$0xf]
    %v126 = vld [vmem:[%s0 + $0x1a8] sm:$0xf]
    %v127 = vld [vmem:[%s0 + $0x1ac] sm:$0xf]
    %v128 = vld [vmem:[%s0 + $0x1b0] sm:$0xf]
    %v129 = vld [vmem:[%s0 + $0x1b4] sm:$0xf]
    %v130 = vld [vmem:[%s0 + $0x1b8] sm:$0xf]
    %v131 = vld [vmem:[%s0 + $0x1bc] sm:$0xf]
    %v132 = vld [vmem:[%s0 + $0x1c0] sm:$0xf]
    %v133 = vld [vmem:[%s0 + $0x1c4] sm:$0xf]
    %v134 = vld [vmem:[%s0 + $0x1c8] sm:$0xf]
    %v135 = vld [vmem:[%s0 + $0x1cc] sm:$0xf]
    %v136 = vld [vmem:[%s0 + $0x1d0] sm:$0xf]
    %v137 = vld [vmem:[%s0 + $0x1d4] sm:$0xf]
    %v138 = vld [vmem:[%s0 + $0x1d8] sm:$0xf]
    %v139 = vld [vmem:[%s0 + $0x1dc] sm:$0xf]
    %v140 = vld [vmem:[%s0 + $0x1e0] sm:$0xf]
    %v141 = vld [vmem:[%s0 + $0x1e4] sm:$0xf]
    %v142 = vld [vmem:[%s0 + $0x1e8] sm:$0xf]
    %v143 = vld [vmem:[%s0 + $0x1ec] sm:$0xf]
    %v144 = vld [vmem:[%s0 + $0x1f0] sm:$0xf]
    %v145 = vld [vmem:[%s0 + $0x1f4] sm:$0xf]
    %v146 = vld [vmem:[%s0 + $0x1f8] sm:$0xf]
    %v147 = vld [vmem:[%s0 + $0x1fc] sm:$0xf]
    %v148 = vld [vmem:[%s0 + $0x200] sm:$0xf]
    %v149 = vld [vmem:[%s0 + $0x204] sm:$0xf]
    %v150 = vld [vmem:[%s0 + $0x208] sm:$0xf]
    %v151 = vld [vmem:[%s0 + $0x20c] sm:$0xf]
    %v152 = vld [vmem:[%s0 + $0x210] sm:$0xf]
    %v153 = vld [vmem:[%s0 + $0x214] sm:$0xf]
    %v154 = vld [vmem:[%s0 + $0x218] sm:$0xf]
    %v155 = vld [vmem:[%s0 + $0x21c] sm:$0xf]
    %v156 = vld [vmem:[%s0 + $0x220] sm:$0xf]
    %v157 = vld [vmem:[%s0 + $0x224] sm:$0xf]
    %v158 = vld [vmem:[%s0 + $0x228] sm:$0xf]
    %v159 = vld [vmem:[%s0 + $0x22c] sm:$0xf]
    %v160 = vld [vmem:[%s0 + $0x230] sm:$0xf]
    %v161 = vld [vmem:[%s0 + $0x234] sm:$0xf]
    %v162 = vld [vmem:[%s0 + $0x238] sm:$0xf]
    %v163 = vld [vmem:[%s0 + $0x23c] sm:$0xf]
    %v164 = vld [vmem:[%s0 + $0x240] sm:$0xf]
    %v165 = vld [vmem:[%s0 + $0x244] sm:$0xf]
    %v166 = vld [vmem:[%s0 + $0x248] sm:$0xf]
    %v167 = vld [vmem:[%s0 + $0x24c] sm:$0xf]
    %v168 = vld [vmem:[%s0 + $0x250] sm:$0xf]
    %v169 = vld [vmem:[%s0 + $0x254] sm:$0xf]
    %v170 = vld [vmem:[%s0 + $0x258] sm:$0xf]
    %v171 = vld [vmem:[%s0 + $0x25c] sm:$0xf]
    %v172 = vld [vmem:[%s0 + $0x260] sm:$0xf]
    %v173 = vld [vmem:[%s0 + $0x264] sm:$0xf]
    %v174 = vld [vmem:[%s0 + $0x268] sm:$0xf]
    %v175 = vld [vmem:[%s0 + $0x26c] sm:$0xf]
    %v176 = vld [vmem:[%s0 + $0x270] sm:$0xf]
    %v177 = vld [vmem:[%s0 + $0x274] sm:$0xf]
    %v178 = vld [vmem:[%s0 + $0x278] sm:$0xf]
    %v179 = vld [vmem:[%s0 + $0x27c] sm:$0xf]
    %v180 = vld [vmem:[%s0 + $0x280] sm:$0xf]
    %v181 = vld [vmem:[%s0 + $0x284] sm:$0xf]
    %v182 = vld [vmem:[%s0 + $0x288] sm:$0xf]
    %v183 = vld [vmem:[%s0 + $0x28c] sm:$0xf]
    %v184 = vld [vmem:[%s0 + $0x290] sm:$0xf]
    %v185 = vld [vmem:[%s0 + $0x294] sm:$0xf]
    %v186 = vld [vmem:[%s0 + $0x298] sm:$0xf]
    %v187 = vld [vmem:[%s0 + $0x29c] sm:$0xf]
    %v188 = vld [vmem:[%s0 + $0x2a0] sm:$0xf]
    %v189 = vld [vmem:[%s0 + $0x2a4] sm:$0xf]
    %v190 = vld [vmem:[%s0 + $0x2a8] sm:$0xf]
    %v191 = vld [vmem:[%s0 + $0x2ac] sm:$0xf]
    %v192 = vld [vmem:[%s0 + $0x2b0] sm:$0xf]
    %v193 = vld [vmem:[%s0 + $0x2b4] sm:$0xf]
    %v194 = vld [vmem:[%s0 + $0x2b8] sm:$0xf]
    %v195 = vld [vmem:[%s0 + $0x2bc] sm:$0xf]
    %v196 = vld [vmem:[%s0 + $0x2c0] sm:$0xf]
    %v197 = vld [vmem:[%s0 + $0x2c4] sm:$0xf]
    %v198 = vld [vmem:[%s0 + $0x2c8] sm:$0xf]
    %v199 = vld [vmem:[%s0 + $0x2cc] sm:$0xf]
    %v200 = vld [vmem:[%s0 + $0x2d0] sm:$0xf]
    %v201 = vld [vmem:[%s0 + $0x2d4] sm:$0xf]
    %v202 = vld [vmem:[%s0 + $0x2d8] sm:$0xf]
    %v203 = vld [vmem:[%s0 + $0x2dc] sm:$0xf]
    %v204 = vld [vmem:[%s0 + $0x2e0] sm:$0xf]
    %v205 = vld [vmem:[%s0 + $0x2e4] sm:$0xf]
    %v206 = vld [vmem:[%s0 + $0x2e8] sm:$0xf]
    %v207 = vld [vmem:[%s0 + $0x2ec] sm:$0xf]
    %v208 = vld [vmem:[%s0 + $0x2f0] sm:$0xf]
    %v209 = vld [vmem:[%s0 + $0x2f4] sm:$0xf]
    %v210 = vld [vmem:[%s0 + $0x2f8] sm:$0xf]
    %v211 = vld [vmem:[%s0 + $0x2fc] sm:$0xf]
    %v212 = vld [vmem:[%s0 + $0x300] sm:$0xf]
    %v213 = vld [vmem:[%s0 + $0x304] sm:$0xf]
    %v214 = vld [vmem:[%s0 + $0x308] sm:$0xf]
    %v215 = vld [vmem:[%s0 + $0x30c] sm:$0xf]
    %v216 = vld [vmem:[%s0 + $0x310] sm:$0xf]
    %v217 = vld [vmem:[%s0 + $0x314] sm:$0xf]
    %v218 = vld [vmem:[%s0 + $0x318] sm:$0xf]
    %v219 = vld [vmem:[%s0 + $0x31c] sm:$0xf]
    %v220 = vld [vmem:[%s0 + $0x320] sm:$0xf]
    %v221 = vld [vmem:[%s0 + $0x324] sm:$0xf]
    %v222 = vld [vmem:[%s0 + $0x328] sm:$0xf]
    %v223 = vld [vmem:[%s0 + $0x32c] sm:$0xf]
    %v224 = vld [vmem:[%s0 + $0x330] sm:$0xf]
    %v225 = vld [vmem:[%s0 + $0x334] sm:$0xf]
    %v226 = vld [vmem:[%s0 + $0x338] sm:$0xf]
    %v227 = vld [vmem:[%s0 + $0x33c] sm:$0xf]
    %v228 = vld [vmem:[%s0 + $0x340] sm:$0xf]
    %v229 = vld [vmem:[%s0 + $0x344] sm:$0xf]
    %v230 = vld [vmem:[%s0 + $0x348] sm:$0xf]
    %v231 = vld [vmem:[%s0 + $0x34c] sm:$0xf]
    %v232 = vld [vmem:[%s0 + $0x350] sm:$0xf]
    %v233 = vld [vmem:[%s0 + $0x354] sm:$0xf]
    %v234 = vld [vmem:[%s0 + $0x358] sm:$0xf]
    %v235 = vld [vmem:[%s0 + $0x35c] sm:$0xf]
    %v236 = vld [vmem:[%s0 + $0x360] sm:$0xf]
    %v237 = vld [vmem:[%s0 + $0x364] sm:$0xf]
    %v238 = vld [vmem:[%s0 + $0x368] sm:$0xf]
    %v239 = vld [vmem:[%s0 + $0x36c] sm:$0xf]
    %v240 = vld [vmem:[%s0 + $0x370] sm:$0xf]
    %v241 = vld [vmem:[%s0 + $0x374] sm:$0xf]
    %v242 = vld [vmem:[%s0 + $0x378] sm:$0xf]
    %v243 = vld [vmem:[%s0 + $0x37c] sm:$0xf]
    %v244 = vld [vmem:[%s0 + $0x380] sm:$0xf]
    %v245 = vld [vmem:[%s0 + $0x384] sm:$0xf]
    %v246 = vld [vmem:[%s0 + $0x388] sm:$0xf]
    %v247 = vld [vmem:[%s0 + $0x38c] sm:$0xf]
    %v248 = vld [vmem:[%s0 + $0x390] sm:$0xf]
    %v249 = vld [vmem:[%s0 + $0x394] sm:$0xf]
    %v250 = vld [vmem:[%s0 + $0x398] sm:$0xf]
    %v251 = vld [vmem:[%s0 + $0x39c] sm:$0xf]
    %v252 = vld [vmem:[%s0 + $0x3a0] sm:$0xf]
    %v253 = vld [vmem:[%s0 + $0x3a4] sm:$0xf]
    %v254 = vld [vmem:[%s0 + $0x3a8] sm:$0xf]
    %v255 = vld [vmem:[%s0 + $0x3ac] sm:$0xf]
    %v256 = vld [vmem:[%s0 + $0x3b0] sm:$0xf]
    %v257 = vld [vmem:[%s0 + $0x3b4] sm:$0xf]
    %v258 = vld [vmem:[%s0 + $0x3b8] sm:$0xf]
    %v259 = vld [vmem:[%s0 + $0x3bc] sm:$0xf]
    %v260 = vld [vmem:[%s0 + $0x3c0] sm:$0xf]
    %v261 = vld [vmem:[%s0 + $0x3c4] sm:$0xf]
    %v262 = vld [vmem:[%s0 + $0x3c8] sm:$0xf]
    %v263 = vld [vmem:[%s0 + $0x3cc] sm:$0xf]
    %v264 = vld [vmem:[%s0 + $0x3d0] sm:$0xf]
    %v265 = vld [vmem:[%s0 + $0x3d4] sm:$0xf]
    %v266 = vld [vmem:[%s0 + $0x3d8] sm:$0xf]
    %v267 = vld [vmem:[%s0 + $0x3dc] sm:$0xf]
    %v268 = vld [vmem:[%s0 + $0x3e0] sm:$0xf]
    %v269 = vld [vmem:[%s0 + $0x3e4] sm:$0xf]
    %v270 = vld [vmem:[%s0 + $0x3e8] sm:$0xf]
    %v271 = vld [vmem:[%s0 + $0x3ec] sm:$0xf]
    %v272 = vld [vmem:[%s0 + $0x3f0] sm:$0xf]
    %v273 = vld [vmem:[%s0 + $0x3f4] sm:$0xf]
    %v274 = vld [vmem:[%s0 + $0x3f8] sm:$0xf]
    %v275 = vld [vmem:[%s0 + $0x3fc] sm:$0xf]
    %v276 = vld [vmem:[#allocation2] sm:$0x1]
    %278 = vset.pattern.permute.xlu0 0
    %279 = vperm.xlu0 %278, %v276
    %v280 = vpop.permute.xlu0 %279
    %v282 = vlaneseq
    %v283 = vshrl.u32 %v282, 7
    %v284 = vsub.s32 0, %v283
    %v285 = vrot.slane %v280, %v284
    %v288 = vcombine.high %v18, %v18
    %v290 = vunpack.c.l.s4 1966171168
    %v291 = vunpack.c.0.s8 %v290
    %v292 = vlaneseq
    %v293 = vshrl.u32 %v292, 7
    %v294 = vsub.s32 %v291, %v293
    %v295 = vrot.slane %v18, %v294
    %v297 = vunpack.c.l.s4 1966171168
    %v298 = vunpack.c.0.s8 %v297
    %v299 = vlaneseq
    %v300 = vshrl.u32 %v299, 7
    %v301 = vsub.s32 %v298, %v300
    %v302 = vrot.slane %v288, %v301
    %v303 = vcombine.high %v295, %v295
    %v304 = vcombine.high %v302, %v302
    %v306 = vunpack.c.l.s4 1966171168
    %v307 = vunpack.c.0.s8 %v306
    %v308 = vlaneseq
    %v309 = vshrl.u32 %v308, 7
    %v310 = vsub.s32 %v307, %v309
    %v311 = vrot.slane %v295, %v310
    %v313 = vunpack.c.l.s4 1966171168
    %v314 = vunpack.c.0.s8 %v313
    %v315 = vlaneseq
    %v316 = vshrl.u32 %v315, 7
    %v317 = vsub.s32 %v314, %v316
    %v318 = vrot.slane %v302, %v317
    %v320 = vunpack.c.l.s4 1966171168
    %v321 = vunpack.c.0.s8 %v320
    %v322 = vlaneseq
    %v323 = vshrl.u32 %v322, 7
    %v324 = vsub.s32 %v321, %v323
    %v325 = vrot.slane %v303, %v324
    %v327 = vunpack.c.l.s4 1966171168
    %v328 = vunpack.c.0.s8 %v327
    %v329 = vlaneseq
    %v330 = vshrl.u32 %v329, 7
    %v331 = vsub.s32 %v328, %v330
    %v332 = vrot.slane %v304, %v331
    %v333 = vcombine.high %v311, %v311
    %v334 = vcombine.high %v318, %v318
    %v335 = vcombine.high %v325, %v325
    %v336 = vcombine.high %v332, %v332
    %v337 = vcombine.high %v19, %v19
    %v339 = vunpack.c.l.s4 1966171168
    %v340 = vunpack.c.0.s8 %v339
    %v341 = vlaneseq
    %v342 = vshrl.u32 %v341, 7
    %v343 = vsub.s32 %v340, %v342
    %v344 = vrot.slane %v19, %v343
    %v346 = vunpack.c.l.s4 1966171168
    %v347 = vunpack.c.0.s8 %v346
    %v348 = vlaneseq
    %v349 = vshrl.u32 %v348, 7
    %v350 = vsub.s32 %v347, %v349
    %v351 = vrot.slane %v337, %v350
    %v352 = vcombine.high %v344, %v344
    %v353 = vcombine.high %v351, %v351
    %v355 = vunpack.c.l.s4 1966171168
    %v356 = vunpack.c.0.s8 %v355
    %v357 = vlaneseq
    %v358 = vshrl.u32 %v357, 7
    %v359 = vsub.s32 %v356, %v358
    %v360 = vrot.slane %v344, %v359
    %v362 = vunpack.c.l.s4 1966171168
    %v363 = vunpack.c.0.s8 %v362
    %v364 = vlaneseq
    %v365 = vshrl.u32 %v364, 7
    %v366 = vsub.s32 %v363, %v365
    %v367 = vrot.slane %v351, %v366
    %v369 = vunpack.c.l.s4 1966171168
    %v370 = vunpack.c.0.s8 %v369
    %v371 = vlaneseq
    %v372 = vshrl.u32 %v371, 7
    %v373 = vsub.s32 %v370, %v372
    %v374 = vrot.slane %v352, %v373
    %v376 = vunpack.c.l.s4 1966171168
    %v377 = vunpack.c.0.s8 %v376
    %v378 = vlaneseq
    %v379 = vshrl.u32 %v378, 7
    %v380 = vsub.s32 %v377, %v379
    %v381 = vrot.slane %v353, %v380
    %v382 = vcombine.high %v360, %v360
    %v383 = vcombine.high %v367, %v367
    %v384 = vcombine.high %v374, %v374
    %v385 = vcombine.high %v381, %v381
    %v658 = vunpack.c.l.b16 %v20
    %v659 = vunpack.c.l.b16 %v21
    %v660 = vunpack.c.l.b16 %v22
    %v661 = vunpack.c.l.b16 %v23
    %v662 = vunpack.c.l.b16 %v24
    %v663 = vunpack.c.l.b16 %v25
    %v664 = vunpack.c.l.b16 %v26
    %v665 = vunpack.c.l.b16 %v27
    %v666 = vunpack.c.l.b16 %v28
    %v667 = vunpack.c.l.b16 %v29
    %v668 = vunpack.c.l.b16 %v30
    %v669 = vunpack.c.l.b16 %v31
    %v670 = vunpack.c.l.b16 %v32
    %v671 = vunpack.c.l.b16 %v33
    %v672 = vunpack.c.l.b16 %v34
    %v673 = vunpack.c.l.b16 %v35
    %v674 = vunpack.c.l.b16 %v36
    %v675 = vunpack.c.l.b16 %v37
    %v676 = vunpack.c.l.b16 %v38
    %v677 = vunpack.c.l.b16 %v39
    %v678 = vunpack.c.l.b16 %v40
    %v679 = vunpack.c.l.b16 %v41
    %v680 = vunpack.c.l.b16 %v42
    %v681 = vunpack.c.l.b16 %v43
    %v682 = vunpack.c.l.b16 %v44
    %v683 = vunpack.c.l.b16 %v45
    %v684 = vunpack.c.l.b16 %v46
    %v685 = vunpack.c.l.b16 %v47
    %v686 = vunpack.c.l.b16 %v48
    %v687 = vunpack.c.l.b16 %v49
    %v688 = vunpack.c.l.b16 %v50
    %v689 = vunpack.c.l.b16 %v51
    %v690 = vunpack.c.l.b16 %v52
    %v691 = vunpack.c.l.b16 %v53
    %v692 = vunpack.c.l.b16 %v54
    %v693 = vunpack.c.l.b16 %v55
    %v694 = vunpack.c.l.b16 %v56
    %v695 = vunpack.c.l.b16 %v57
    %v696 = vunpack.c.l.b16 %v58
    %v697 = vunpack.c.l.b16 %v59
    %v698 = vunpack.c.l.b16 %v60
    %v699 = vunpack.c.l.b16 %v61
    %v700 = vunpack.c.l.b16 %v62
    %v701 = vunpack.c.l.b16 %v63
    %v702 = vunpack.c.l.b16 %v64
    %v703 = vunpack.c.l.b16 %v65
    %v704 = vunpack.c.l.b16 %v66
    %v705 = vunpack.c.l.b16 %v67
    %v706 = vunpack.c.l.b16 %v68
    %v707 = vunpack.c.l.b16 %v69
    %v708 = vunpack.c.l.b16 %v70
    %v709 = vunpack.c.l.b16 %v71
    %v710 = vunpack.c.l.b16 %v72
    %v711 = vunpack.c.l.b16 %v73
    %v712 = vunpack.c.l.b16 %v74
    %v713 = vunpack.c.l.b16 %v75
    %v714 = vunpack.c.l.b16 %v76
    %v715 = vunpack.c.l.b16 %v77
    %v716 = vunpack.c.l.b16 %v78
    %v717 = vunpack.c.l.b16 %v79
    %v718 = vunpack.c.l.b16 %v80
    %v719 = vunpack.c.l.b16 %v81
    %v720 = vunpack.c.l.b16 %v82
    %v721 = vunpack.c.l.b16 %v83
    %v722 = vunpack.c.l.b16 %v84
    %v723 = vunpack.c.l.b16 %v85
    %v724 = vunpack.c.l.b16 %v86
    %v725 = vunpack.c.l.b16 %v87
    %v726 = vunpack.c.l.b16 %v88
    %v727 = vunpack.c.l.b16 %v89
    %v728 = vunpack.c.l.b16 %v90
    %v729 = vunpack.c.l.b16 %v91
    %v730 = vunpack.c.l.b16 %v92
    %v731 = vunpack.c.l.b16 %v93
    %v732 = vunpack.c.l.b16 %v94
    %v733 = vunpack.c.l.b16 %v95
    %v734 = vunpack.c.l.b16 %v96
    %v735 = vunpack.c.l.b16 %v97
    %v736 = vunpack.c.l.b16 %v98
    %v737 = vunpack.c.l.b16 %v99
    %v738 = vunpack.c.l.b16 %v100
    %v739 = vunpack.c.l.b16 %v101
    %v740 = vunpack.c.l.b16 %v102
    %v741 = vunpack.c.l.b16 %v103
    %v742 = vunpack.c.l.b16 %v104
    %v743 = vunpack.c.l.b16 %v105
    %v744 = vunpack.c.l.b16 %v106
    %v745 = vunpack.c.l.b16 %v107
    %v746 = vunpack.c.l.b16 %v108
    %v747 = vunpack.c.l.b16 %v109
    %v748 = vunpack.c.l.b16 %v110
    %v749 = vunpack.c.l.b16 %v111
    %v750 = vunpack.c.l.b16 %v112
    %v751 = vunpack.c.l.b16 %v113
    %v752 = vunpack.c.l.b16 %v114
    %v753 = vunpack.c.l.b16 %v115
    %v754 = vunpack.c.l.b16 %v116
    %v755 = vunpack.c.l.b16 %v117
    %v756 = vunpack.c.l.b16 %v118
    %v757 = vunpack.c.l.b16 %v119
    %v758 = vunpack.c.l.b16 %v120
    %v759 = vunpack.c.l.b16 %v121
    %v760 = vunpack.c.l.b16 %v122
    %v761 = vunpack.c.l.b16 %v123
    %v762 = vunpack.c.l.b16 %v124
    %v763 = vunpack.c.l.b16 %v125
    %v764 = vunpack.c.l.b16 %v126
    %v765 = vunpack.c.l.b16 %v127
    %v766 = vunpack.c.l.b16 %v128
    %v767 = vunpack.c.l.b16 %v129
    %v768 = vunpack.c.l.b16 %v130
    %v769 = vunpack.c.l.b16 %v131
    %v770 = vunpack.c.l.b16 %v132
    %v771 = vunpack.c.l.b16 %v133
    %v772 = vunpack.c.l.b16 %v134
    %v773 = vunpack.c.l.b16 %v135
    %v774 = vunpack.c.l.b16 %v136
    %v775 = vunpack.c.l.b16 %v137
    %v776 = vunpack.c.l.b16 %v138
    %v777 = vunpack.c.l.b16 %v139
    %v778 = vunpack.c.l.b16 %v140
    %v779 = vunpack.c.l.b16 %v141
    %v780 = vunpack.c.l.b16 %v142
    %v781 = vunpack.c.l.b16 %v143
    %v782 = vunpack.c.l.b16 %v144
    %v783 = vunpack.c.l.b16 %v145
    %v784 = vunpack.c.l.b16 %v146
    %v785 = vunpack.c.l.b16 %v147
    %v786 = vunpack.c.l.b16 %v148
    %v787 = vunpack.c.l.b16 %v149
    %v788 = vunpack.c.l.b16 %v150
    %v789 = vunpack.c.l.b16 %v151
    %v790 = vunpack.c.l.b16 %v152
    %v791 = vunpack.c.l.b16 %v153
    %v792 = vunpack.c.l.b16 %v154
    %v793 = vunpack.c.l.b16 %v155
    %v794 = vunpack.c.l.b16 %v156
    %v795 = vunpack.c.l.b16 %v157
    %v796 = vunpack.c.l.b16 %v158
    %v797 = vunpack.c.l.b16 %v159
    %v798 = vunpack.c.l.b16 %v160
    %v799 = vunpack.c.l.b16 %v161
    %v800 = vunpack.c.l.b16 %v162
    %v801 = vunpack.c.l.b16 %v163
    %v802 = vunpack.c.l.b16 %v164
    %v803 = vunpack.c.l.b16 %v165
    %v804 = vunpack.c.l.b16 %v166
    %v805 = vunpack.c.l.b16 %v167
    %v806 = vunpack.c.l.b16 %v168
    %v807 = vunpack.c.l.b16 %v169
    %v808 = vunpack.c.l.b16 %v170
    %v809 = vunpack.c.l.b16 %v171
    %v810 = vunpack.c.l.b16 %v172
    %v811 = vunpack.c.l.b16 %v173
    %v812 = vunpack.c.l.b16 %v174
    %v813 = vunpack.c.l.b16 %v175
    %v814 = vunpack.c.l.b16 %v176
    %v815 = vunpack.c.l.b16 %v177
    %v816 = vunpack.c.l.b16 %v178
    %v817 = vunpack.c.l.b16 %v179
    %v818 = vunpack.c.l.b16 %v180
    %v819 = vunpack.c.l.b16 %v181
    %v820 = vunpack.c.l.b16 %v182
    %v821 = vunpack.c.l.b16 %v183
    %v822 = vunpack.c.l.b16 %v184
    %v823 = vunpack.c.l.b16 %v185
    %v824 = vunpack.c.l.b16 %v186
    %v825 = vunpack.c.l.b16 %v187
    %v826 = vunpack.c.l.b16 %v188
    %v827 = vunpack.c.l.b16 %v189
    %v828 = vunpack.c.l.b16 %v190
    %v829 = vunpack.c.l.b16 %v191
    %v830 = vunpack.c.l.b16 %v192
    %v831 = vunpack.c.l.b16 %v193
    %v832 = vunpack.c.l.b16 %v194
    %v833 = vunpack.c.l.b16 %v195
    %v834 = vunpack.c.l.b16 %v196
    %v835 = vunpack.c.l.b16 %v197
    %v836 = vunpack.c.l.b16 %v198
    %v837 = vunpack.c.l.b16 %v199
    %v838 = vunpack.c.l.b16 %v200
    %v839 = vunpack.c.l.b16 %v201
    %v840 = vunpack.c.l.b16 %v202
    %v841 = vunpack.c.l.b16 %v203
    %v842 = vunpack.c.l.b16 %v204
    %v843 = vunpack.c.l.b16 %v205
    %v844 = vunpack.c.l.b16 %v206
    %v845 = vunpack.c.l.b16 %v207
    %v846 = vunpack.c.l.b16 %v208
    %v847 = vunpack.c.l.b16 %v209
    %v848 = vunpack.c.l.b16 %v210
    %v849 = vunpack.c.l.b16 %v211
    %v850 = vunpack.c.l.b16 %v212
    %v851 = vunpack.c.l.b16 %v213
    %v852 = vunpack.c.l.b16 %v214
    %v853 = vunpack.c.l.b16 %v215
    %v854 = vunpack.c.l.b16 %v216
    %v855 = vunpack.c.l.b16 %v217
    %v856 = vunpack.c.l.b16 %v218
    %v857 = vunpack.c.l.b16 %v219
    %v858 = vunpack.c.l.b16 %v220
    %v859 = vunpack.c.l.b16 %v221
    %v860 = vunpack.c.l.b16 %v222
    %v861 = vunpack.c.l.b16 %v223
    %v862 = vunpack.c.l.b16 %v224
    %v863 = vunpack.c.l.b16 %v225
    %v864 = vunpack.c.l.b16 %v226
    %v865 = vunpack.c.l.b16 %v227
    %v866 = vunpack.c.l.b16 %v228
    %v867 = vunpack.c.l.b16 %v229
    %v868 = vunpack.c.l.b16 %v230
    %v869 = vunpack.c.l.b16 %v231
    %v870 = vunpack.c.l.b16 %v232
    %v871 = vunpack.c.l.b16 %v233
    %v872 = vunpack.c.l.b16 %v234
    %v873 = vunpack.c.l.b16 %v235
    %v874 = vunpack.c.l.b16 %v236
    %v875 = vunpack.c.l.b16 %v237
    %v876 = vunpack.c.l.b16 %v238
    %v877 = vunpack.c.l.b16 %v239
    %v878 = vunpack.c.l.b16 %v240
    %v879 = vunpack.c.l.b16 %v241
    %v880 = vunpack.c.l.b16 %v242
    %v881 = vunpack.c.l.b16 %v243
    %v882 = vunpack.c.l.b16 %v244
    %v883 = vunpack.c.l.b16 %v245
    %v884 = vunpack.c.l.b16 %v246
    %v885 = vunpack.c.l.b16 %v247
    %v886 = vunpack.c.l.b16 %v248
    %v887 = vunpack.c.l.b16 %v249
    %v888 = vunpack.c.l.b16 %v250
    %v889 = vunpack.c.l.b16 %v251
    %v890 = vunpack.c.l.b16 %v252
    %v891 = vunpack.c.l.b16 %v253
    %v892 = vunpack.c.l.b16 %v254
    %v893 = vunpack.c.l.b16 %v255
    %v894 = vunpack.c.l.b16 %v256
    %v895 = vunpack.c.l.b16 %v257
    %v896 = vunpack.c.l.b16 %v258
    %v897 = vunpack.c.l.b16 %v259
    %v898 = vunpack.c.l.b16 %v260
    %v899 = vunpack.c.l.b16 %v261
    %v900 = vunpack.c.l.b16 %v262
    %v901 = vunpack.c.l.b16 %v263
    %v902 = vunpack.c.l.b16 %v264
    %v903 = vunpack.c.l.b16 %v265
    %v904 = vunpack.c.l.b16 %v266
    %v905 = vunpack.c.l.b16 %v267
    %v906 = vunpack.c.l.b16 %v268
    %v907 = vunpack.c.l.b16 %v269
    %v908 = vunpack.c.l.b16 %v270
    %v909 = vunpack.c.l.b16 %v271
    %v910 = vunpack.c.l.b16 %v272
    %v911 = vunpack.c.l.b16 %v273
    %v912 = vunpack.c.l.b16 %v274
    %v913 = vunpack.c.l.b16 %v275
    %v914 = vpack.c.b16 %v659, %v658
    %v915 = vpack.c.b16 %v661, %v660
    %v916 = vpack.c.b16 %v663, %v662
    %v917 = vpack.c.b16 %v665, %v664
    %v918 = vpack.c.b16 %v667, %v666
    %v919 = vpack.c.b16 %v669, %v668
    %v920 = vpack.c.b16 %v671, %v670
    %v921 = vpack.c.b16 %v673, %v672
    %v922 = vpack.c.b16 %v675, %v674
    %v923 = vpack.c.b16 %v677, %v676
    %v924 = vpack.c.b16 %v679, %v678
    %v925 = vpack.c.b16 %v681, %v680
    %v926 = vpack.c.b16 %v683, %v682
    %v927 = vpack.c.b16 %v685, %v684
    %v928 = vpack.c.b16 %v687, %v686
    %v929 = vpack.c.b16 %v689, %v688
    %v930 = vpack.c.b16 %v691, %v690
    %v931 = vpack.c.b16 %v693, %v692
    %v932 = vpack.c.b16 %v695, %v694
    %v933 = vpack.c.b16 %v697, %v696
    %v934 = vpack.c.b16 %v699, %v698
    %v935 = vpack.c.b16 %v701, %v700
    %v936 = vpack.c.b16 %v703, %v702
    %v937 = vpack.c.b16 %v705, %v704
    %v938 = vpack.c.b16 %v707, %v706
    %v939 = vpack.c.b16 %v709, %v708
    %v940 = vpack.c.b16 %v711, %v710
    %v941 = vpack.c.b16 %v713, %v712
    %v942 = vpack.c.b16 %v715, %v714
    %v943 = vpack.c.b16 %v717, %v716
    %v944 = vpack.c.b16 %v719, %v718
    %v945 = vpack.c.b16 %v721, %v720
    %v946 = vpack.c.b16 %v723, %v722
    %v947 = vpack.c.b16 %v725, %v724
    %v948 = vpack.c.b16 %v727, %v726
    %v949 = vpack.c.b16 %v729, %v728
    %v950 = vpack.c.b16 %v731, %v730
    %v951 = vpack.c.b16 %v733, %v732
    %v952 = vpack.c.b16 %v735, %v734
    %v953 = vpack.c.b16 %v737, %v736
    %v954 = vpack.c.b16 %v739, %v738
    %v955 = vpack.c.b16 %v741, %v740
    %v956 = vpack.c.b16 %v743, %v742
    %v957 = vpack.c.b16 %v745, %v744
    %v958 = vpack.c.b16 %v747, %v746
    %v959 = vpack.c.b16 %v749, %v748
    %v960 = vpack.c.b16 %v751, %v750
    %v961 = vpack.c.b16 %v753, %v752
    %v962 = vpack.c.b16 %v755, %v754
    %v963 = vpack.c.b16 %v757, %v756
    %v964 = vpack.c.b16 %v759, %v758
    %v965 = vpack.c.b16 %v761, %v760
    %v966 = vpack.c.b16 %v763, %v762
    %v967 = vpack.c.b16 %v765, %v764
    %v968 = vpack.c.b16 %v767, %v766
    %v969 = vpack.c.b16 %v769, %v768
    %v970 = vpack.c.b16 %v771, %v770
    %v971 = vpack.c.b16 %v773, %v772
    %v972 = vpack.c.b16 %v775, %v774
    %v973 = vpack.c.b16 %v777, %v776
    %v974 = vpack.c.b16 %v779, %v778
    %v975 = vpack.c.b16 %v781, %v780
    %v976 = vpack.c.b16 %v783, %v782
    %v977 = vpack.c.b16 %v785, %v784
    %v978 = vpack.c.b16 %v787, %v786
    %v979 = vpack.c.b16 %v789, %v788
    %v980 = vpack.c.b16 %v791, %v790
    %v981 = vpack.c.b16 %v793, %v792
    %v982 = vpack.c.b16 %v795, %v794
    %v983 = vpack.c.b16 %v797, %v796
    %v984 = vpack.c.b16 %v799, %v798
    %v985 = vpack.c.b16 %v801, %v800
    %v986 = vpack.c.b16 %v803, %v802
    %v987 = vpack.c.b16 %v805, %v804
    %v988 = vpack.c.b16 %v807, %v806
    %v989 = vpack.c.b16 %v809, %v808
    %v990 = vpack.c.b16 %v811, %v810
    %v991 = vpack.c.b16 %v813, %v812
    %v992 = vpack.c.b16 %v815, %v814
    %v993 = vpack.c.b16 %v817, %v816
    %v994 = vpack.c.b16 %v819, %v818
    %v995 = vpack.c.b16 %v821, %v820
    %v996 = vpack.c.b16 %v823, %v822
    %v997 = vpack.c.b16 %v825, %v824
    %v998 = vpack.c.b16 %v827, %v826
    %v999 = vpack.c.b16 %v829, %v828
    %v1000 = vpack.c.b16 %v831, %v830
    %v1001 = vpack.c.b16 %v833, %v832
    %v1002 = vpack.c.b16 %v835, %v834
    %v1003 = vpack.c.b16 %v837, %v836
    %v1004 = vpack.c.b16 %v839, %v838
    %v1005 = vpack.c.b16 %v841, %v840
    %v1006 = vpack.c.b16 %v843, %v842
    %v1007 = vpack.c.b16 %v845, %v844
    %v1008 = vpack.c.b16 %v847, %v846
    %v1009 = vpack.c.b16 %v849, %v848
    %v1010 = vpack.c.b16 %v851, %v850
    %v1011 = vpack.c.b16 %v853, %v852
    %v1012 = vpack.c.b16 %v855, %v854
    %v1013 = vpack.c.b16 %v857, %v856
    %v1014 = vpack.c.b16 %v859, %v858
    %v1015 = vpack.c.b16 %v861, %v860
    %v1016 = vpack.c.b16 %v863, %v862
    %v1017 = vpack.c.b16 %v865, %v864
    %v1018 = vpack.c.b16 %v867, %v866
    %v1019 = vpack.c.b16 %v869, %v868
    %v1020 = vpack.c.b16 %v871, %v870
    %v1021 = vpack.c.b16 %v873, %v872
    %v1022 = vpack.c.b16 %v875, %v874
    %v1023 = vpack.c.b16 %v877, %v876
    %v1024 = vpack.c.b16 %v879, %v878
    %v1025 = vpack.c.b16 %v881, %v880
    %v1026 = vpack.c.b16 %v883, %v882
    %v1027 = vpack.c.b16 %v885, %v884
    %v1028 = vpack.c.b16 %v887, %v886
    %v1029 = vpack.c.b16 %v889, %v888
    %v1030 = vpack.c.b16 %v891, %v890
    %v1031 = vpack.c.b16 %v893, %v892
    %v1032 = vpack.c.b16 %v895, %v894
    %v1033 = vpack.c.b16 %v897, %v896
    %v1034 = vpack.c.b16 %v899, %v898
    %v1035 = vpack.c.b16 %v901, %v900
    %v1036 = vpack.c.b16 %v903, %v902
    %v1037 = vpack.c.b16 %v905, %v904
    %v1038 = vpack.c.b16 %v907, %v906
    %v1039 = vpack.c.b16 %v909, %v908
    %v1040 = vpack.c.b16 %v911, %v910
    %v1041 = vpack.c.b16 %v913, %v912
    %1170 = vmatprep.subr.bf16.mxu0 0
    %1171 = vmatpush1.bf16.msra.mxu0 %v921
    %1172 = vmatprep.subr.bf16.mxu0 0
    %1173 = vmatpush1.bf16.msra.mxu0 %v920
    %1174 = vmatprep.subr.bf16.mxu0 0
    %1175 = vmatpush1.bf16.msra.mxu0 %v919
    %1176 = vmatprep.subr.bf16.mxu0 0
    %1177 = vmatpush1.bf16.msra.mxu0 %v918
    %1178 = vmatprep.subr.bf16.mxu0 0
    %1179 = vmatpush1.bf16.msra.mxu0 %v917
    %1180 = vmatprep.subr.bf16.mxu0 0
    %1181 = vmatpush1.bf16.msra.mxu0 %v916
    %1182 = vmatprep.subr.bf16.mxu0 0
    %1183 = vmatpush1.bf16.msra.mxu0 %v915
    %1184 = vmatprep.subr.bf16.mxu0 0
    %1185 = vmatpush1.bf16.msra.mxu0 %v914
    %1186 = vmatprep.subr.bf16.mxu0 0
    %1187 = vmatpush2.bf16.msra.mxu0 %v929
    %1188 = vmatprep.subr.bf16.mxu0 0
    %1189 = vmatpush2.bf16.msra.mxu0 %v928
    %1190 = vmatprep.subr.bf16.mxu0 0
    %1191 = vmatpush2.bf16.msra.mxu0 %v927
    %1192 = vmatprep.subr.bf16.mxu0 0
    %1193 = vmatpush2.bf16.msra.mxu0 %v926
    %1194 = vmatprep.subr.bf16.mxu0 0
    %1195 = vmatpush2.bf16.msra.mxu0 %v925
    %1196 = vmatprep.subr.bf16.mxu0 0
    %1197 = vmatpush2.bf16.msra.mxu0 %v924
    %1198 = vmatprep.subr.bf16.mxu0 0
    %1199 = vmatpush2.bf16.msra.mxu0 %v923
    %1200 = vmatprep.subr.bf16.mxu0 0
    %1201 = vmatpush2.bf16.msra.mxu0 %v922
    %1202 = vmatprep.mubr.bf16.mxu0 %v325
    %1203 = vmatmul.mubr.bf16.gmra.mxu0 %v311
    %v1204 = vpop.f32.mrf.mxu0
    %v1205 = vadd.f32 %v285, %v1204
    %v1206 = vpop.f32.mrf.mxu0
    %v1207 = vpop.f32.mrf.mxu0
    %v1208 = vpop.f32.mrf.mxu0
    %1209 = vdwg.mxu0
    %1210 = vmatprep.subr.bf16.mxu0 0
    %1211 = vmatpush1.bf16.msra.mxu0 %v937
    %1212 = vmatprep.subr.bf16.mxu0 0
    %1213 = vmatpush1.bf16.msra.mxu0 %v936
    %1214 = vmatprep.subr.bf16.mxu0 0
    %1215 = vmatpush1.bf16.msra.mxu0 %v935
    %1216 = vmatprep.subr.bf16.mxu0 0
    %1217 = vmatpush1.bf16.msra.mxu0 %v934
    %1218 = vmatprep.subr.bf16.mxu0 0
    %1219 = vmatpush1.bf16.msra.mxu0 %v933
    %1220 = vmatprep.subr.bf16.mxu0 0
    %1221 = vmatpush1.bf16.msra.mxu0 %v932
    %1222 = vmatprep.subr.bf16.mxu0 0
    %1223 = vmatpush1.bf16.msra.mxu0 %v931
    %1224 = vmatprep.subr.bf16.mxu0 0
    %1225 = vmatpush1.bf16.msra.mxu0 %v930
    %1226 = vmatprep.subr.bf16.mxu0 0
    %1227 = vmatpush2.bf16.msra.mxu0 %v945
    %1228 = vmatprep.subr.bf16.mxu0 0
    %1229 = vmatpush2.bf16.msra.mxu0 %v944
    %1230 = vmatprep.subr.bf16.mxu0 0
    %1231 = vmatpush2.bf16.msra.mxu0 %v943
    %1232 = vmatprep.subr.bf16.mxu0 0
    %1233 = vmatpush2.bf16.msra.mxu0 %v942
    %1234 = vmatprep.subr.bf16.mxu0 0
    %1235 = vmatpush2.bf16.msra.mxu0 %v941
    %1236 = vmatprep.subr.bf16.mxu0 0
    %1237 = vmatpush2.bf16.msra.mxu0 %v940
    %1238 = vmatprep.subr.bf16.mxu0 0
    %1239 = vmatpush2.bf16.msra.mxu0 %v939
    %1240 = vmatprep.subr.bf16.mxu0 0
    %1241 = vmatpush2.bf16.msra.mxu0 %v938
    %1242 = vmatprep.mubr.bf16.mxu0 %v335
    %1243 = vmatmul.mubr.bf16.gmra.mxu0 %v333
    %v1244 = vpop.f32.mrf.mxu0
    %v1245 = vadd.f32 %v1205, %v1244
    %v1246 = vpop.f32.mrf.mxu0
    %v1247 = vpop.f32.mrf.mxu0
    %v1248 = vpop.f32.mrf.mxu0
    %1249 = vdwg.mxu0
    %1250 = vmatprep.subr.bf16.mxu0 0
    %1251 = vmatpush1.bf16.msra.mxu0 %v953
    %1252 = vmatprep.subr.bf16.mxu0 0
    %1253 = vmatpush1.bf16.msra.mxu0 %v952
    %1254 = vmatprep.subr.bf16.mxu0 0
    %1255 = vmatpush1.bf16.msra.mxu0 %v951
    %1256 = vmatprep.subr.bf16.mxu0 0
    %1257 = vmatpush1.bf16.msra.mxu0 %v950
    %1258 = vmatprep.subr.bf16.mxu0 0
    %1259 = vmatpush1.bf16.msra.mxu0 %v949
    %1260 = vmatprep.subr.bf16.mxu0 0
    %1261 = vmatpush1.bf16.msra.mxu0 %v948
    %1262 = vmatprep.subr.bf16.mxu0 0
    %1263 = vmatpush1.bf16.msra.mxu0 %v947
    %1264 = vmatprep.subr.bf16.mxu0 0
    %1265 = vmatpush1.bf16.msra.mxu0 %v946
    %1266 = vmatprep.subr.bf16.mxu0 0
    %1267 = vmatpush2.bf16.msra.mxu0 %v961
    %1268 = vmatprep.subr.bf16.mxu0 0
    %1269 = vmatpush2.bf16.msra.mxu0 %v960
    %1270 = vmatprep.subr.bf16.mxu0 0
    %1271 = vmatpush2.bf16.msra.mxu0 %v959
    %1272 = vmatprep.subr.bf16.mxu0 0
    %1273 = vmatpush2.bf16.msra.mxu0 %v958
    %1274 = vmatprep.subr.bf16.mxu0 0
    %1275 = vmatpush2.bf16.msra.mxu0 %v957
    %1276 = vmatprep.subr.bf16.mxu0 0
    %1277 = vmatpush2.bf16.msra.mxu0 %v956
    %1278 = vmatprep.subr.bf16.mxu0 0
    %1279 = vmatpush2.bf16.msra.mxu0 %v955
    %1280 = vmatprep.subr.bf16.mxu0 0
    %1281 = vmatpush2.bf16.msra.mxu0 %v954
    %1282 = vmatprep.mubr.bf16.mxu0 %v332
    %1283 = vmatmul.mubr.bf16.gmra.mxu0 %v318
    %v1284 = vpop.f32.mrf.mxu0
    %v1285 = vadd.f32 %v1245, %v1284
    %v1286 = vpop.f32.mrf.mxu0
    %v1287 = vpop.f32.mrf.mxu0
    %v1288 = vpop.f32.mrf.mxu0
    %1289 = vdwg.mxu0
    %1290 = vmatprep.subr.bf16.mxu0 0
    %1291 = vmatpush1.bf16.msra.mxu0 %v969
    %1292 = vmatprep.subr.bf16.mxu0 0
    %1293 = vmatpush1.bf16.msra.mxu0 %v968
    %1294 = vmatprep.subr.bf16.mxu0 0
    %1295 = vmatpush1.bf16.msra.mxu0 %v967
    %1296 = vmatprep.subr.bf16.mxu0 0
    %1297 = vmatpush1.bf16.msra.mxu0 %v966
    %1298 = vmatprep.subr.bf16.mxu0 0
    %1299 = vmatpush1.bf16.msra.mxu0 %v965
    %1300 = vmatprep.subr.bf16.mxu0 0
    %1301 = vmatpush1.bf16.msra.mxu0 %v964
    %1302 = vmatprep.subr.bf16.mxu0 0
    %1303 = vmatpush1.bf16.msra.mxu0 %v963
    %1304 = vmatprep.subr.bf16.mxu0 0
    %1305 = vmatpush1.bf16.msra.mxu0 %v962
    %1306 = vmatprep.subr.bf16.mxu0 0
    %1307 = vmatpush2.bf16.msra.mxu0 %v977
    %1308 = vmatprep.subr.bf16.mxu0 0
    %1309 = vmatpush2.bf16.msra.mxu0 %v976
    %1310 = vmatprep.subr.bf16.mxu0 0
    %1311 = vmatpush2.bf16.msra.mxu0 %v975
    %1312 = vmatprep.subr.bf16.mxu0 0
    %1313 = vmatpush2.bf16.msra.mxu0 %v974
    %1314 = vmatprep.subr.bf16.mxu0 0
    %1315 = vmatpush2.bf16.msra.mxu0 %v973
    %1316 = vmatprep.subr.bf16.mxu0 0
    %1317 = vmatpush2.bf16.msra.mxu0 %v972
    %1318 = vmatprep.subr.bf16.mxu0 0
    %1319 = vmatpush2.bf16.msra.mxu0 %v971
    %1320 = vmatprep.subr.bf16.mxu0 0
    %1321 = vmatpush2.bf16.msra.mxu0 %v970
    %1322 = vmatprep.mubr.bf16.mxu0 %v336
    %1323 = vmatmul.mubr.bf16.gmra.mxu0 %v334
    %v1324 = vpop.f32.mrf.mxu0
    %v1325 = vadd.f32 %v1285, %v1324
    %v1326 = vpop.f32.mrf.mxu0
    %v1327 = vpop.f32.mrf.mxu0
    %v1328 = vpop.f32.mrf.mxu0
    %1329 = vdwg.mxu0
    %1330 = vmatprep.subr.bf16.mxu0 0
    %1331 = vmatpush1.bf16.msra.mxu0 %v985
    %1332 = vmatprep.subr.bf16.mxu0 0
    %1333 = vmatpush1.bf16.msra.mxu0 %v984
    %1334 = vmatprep.subr.bf16.mxu0 0
    %1335 = vmatpush1.bf16.msra.mxu0 %v983
    %1336 = vmatprep.subr.bf16.mxu0 0
    %1337 = vmatpush1.bf16.msra.mxu0 %v982
    %1338 = vmatprep.subr.bf16.mxu0 0
    %1339 = vmatpush1.bf16.msra.mxu0 %v981
    %1340 = vmatprep.subr.bf16.mxu0 0
    %1341 = vmatpush1.bf16.msra.mxu0 %v980
    %1342 = vmatprep.subr.bf16.mxu0 0
    %1343 = vmatpush1.bf16.msra.mxu0 %v979
    %1344 = vmatprep.subr.bf16.mxu0 0
    %1345 = vmatpush1.bf16.msra.mxu0 %v978
    %1346 = vmatprep.subr.bf16.mxu0 0
    %1347 = vmatpush2.bf16.msra.mxu0 %v993
    %1348 = vmatprep.subr.bf16.mxu0 0
    %1349 = vmatpush2.bf16.msra.mxu0 %v992
    %1350 = vmatprep.subr.bf16.mxu0 0
    %1351 = vmatpush2.bf16.msra.mxu0 %v991
    %1352 = vmatprep.subr.bf16.mxu0 0
    %1353 = vmatpush2.bf16.msra.mxu0 %v990
    %1354 = vmatprep.subr.bf16.mxu0 0
    %1355 = vmatpush2.bf16.msra.mxu0 %v989
    %1356 = vmatprep.subr.bf16.mxu0 0
    %1357 = vmatpush2.bf16.msra.mxu0 %v988
    %1358 = vmatprep.subr.bf16.mxu0 0
    %1359 = vmatpush2.bf16.msra.mxu0 %v987
    %1360 = vmatprep.subr.bf16.mxu0 0
    %1361 = vmatpush2.bf16.msra.mxu0 %v986
    %1362 = vmatprep.mubr.bf16.mxu0 %v374
    %1363 = vmatmul.mubr.bf16.gmra.mxu0 %v360
    %v1364 = vpop.f32.mrf.mxu0
    %v1365 = vadd.f32 %v1325, %v1364
    %v1366 = vpop.f32.mrf.mxu0
    %v1367 = vpop.f32.mrf.mxu0
    %v1368 = vpop.f32.mrf.mxu0
    %1369 = vdwg.mxu0
    %1370 = vmatprep.subr.bf16.mxu0 0
    %1371 = vmatpush1.bf16.msra.mxu0 %v1001
    %1372 = vmatprep.subr.bf16.mxu0 0
    %1373 = vmatpush1.bf16.msra.mxu0 %v1000
    %1374 = vmatprep.subr.bf16.mxu0 0
    %1375 = vmatpush1.bf16.msra.mxu0 %v999
    %1376 = vmatprep.subr.bf16.mxu0 0
    %1377 = vmatpush1.bf16.msra.mxu0 %v998
    %1378 = vmatprep.subr.bf16.mxu0 0
    %1379 = vmatpush1.bf16.msra.mxu0 %v997
    %1380 = vmatprep.subr.bf16.mxu0 0
    %1381 = vmatpush1.bf16.msra.mxu0 %v996
    %1382 = vmatprep.subr.bf16.mxu0 0
    %1383 = vmatpush1.bf16.msra.mxu0 %v995
    %1384 = vmatprep.subr.bf16.mxu0 0
    %1385 = vmatpush1.bf16.msra.mxu0 %v994
    %1386 = vmatprep.subr.bf16.mxu0 0
    %1387 = vmatpush2.bf16.msra.mxu0 %v1009
    %1388 = vmatprep.subr.bf16.mxu0 0
    %1389 = vmatpush2.bf16.msra.mxu0 %v1008
    %1390 = vmatprep.subr.bf16.mxu0 0
    %1391 = vmatpush2.bf16.msra.mxu0 %v1007
    %1392 = vmatprep.subr.bf16.mxu0 0
    %1393 = vmatpush2.bf16.msra.mxu0 %v1006
    %1394 = vmatprep.subr.bf16.mxu0 0
    %1395 = vmatpush2.bf16.msra.mxu0 %v1005
    %1396 = vmatprep.subr.bf16.mxu0 0
    %1397 = vmatpush2.bf16.msra.mxu0 %v1004
    %1398 = vmatprep.subr.bf16.mxu0 0
    %1399 = vmatpush2.bf16.msra.mxu0 %v1003
    %1400 = vmatprep.subr.bf16.mxu0 0
    %1401 = vmatpush2.bf16.msra.mxu0 %v1002
    %1402 = vmatprep.mubr.bf16.mxu0 %v384
    %1403 = vmatmul.mubr.bf16.gmra.mxu0 %v382
    %v1404 = vpop.f32.mrf.mxu0
    %v1405 = vadd.f32 %v1365, %v1404
    %v1406 = vpop.f32.mrf.mxu0
    %v1407 = vpop.f32.mrf.mxu0
    %v1408 = vpop.f32.mrf.mxu0
    %1409 = vdwg.mxu0
    %1410 = vmatprep.subr.bf16.mxu0 0
    %1411 = vmatpush1.bf16.msra.mxu0 %v1017
    %1412 = vmatprep.subr.bf16.mxu0 0
    %1413 = vmatpush1.bf16.msra.mxu0 %v1016
    %1414 = vmatprep.subr.bf16.mxu0 0
    %1415 = vmatpush1.bf16.msra.mxu0 %v1015
    %1416 = vmatprep.subr.bf16.mxu0 0
    %1417 = vmatpush1.bf16.msra.mxu0 %v1014
    %1418 = vmatprep.subr.bf16.mxu0 0
    %1419 = vmatpush1.bf16.msra.mxu0 %v1013
    %1420 = vmatprep.subr.bf16.mxu0 0
    %1421 = vmatpush1.bf16.msra.mxu0 %v1012
    %1422 = vmatprep.subr.bf16.mxu0 0
    %1423 = vmatpush1.bf16.msra.mxu0 %v1011
    %1424 = vmatprep.subr.bf16.mxu0 0
    %1425 = vmatpush1.bf16.msra.mxu0 %v1010
    %1426 = vmatprep.subr.bf16.mxu0 0
    %1427 = vmatpush2.bf16.msra.mxu0 %v1025
    %1428 = vmatprep.subr.bf16.mxu0 0
    %1429 = vmatpush2.bf16.msra.mxu0 %v1024
    %1430 = vmatprep.subr.bf16.mxu0 0
    %1431 = vmatpush2.bf16.msra.mxu0 %v1023
    %1432 = vmatprep.subr.bf16.mxu0 0
    %1433 = vmatpush2.bf16.msra.mxu0 %v1022
    %1434 = vmatprep.subr.bf16.mxu0 0
    %1435 = vmatpush2.bf16.msra.mxu0 %v1021
    %1436 = vmatprep.subr.bf16.mxu0 0
    %1437 = vmatpush2.bf16.msra.mxu0 %v1020
    %1438 = vmatprep.subr.bf16.mxu0 0
    %1439 = vmatpush2.bf16.msra.mxu0 %v1019
    %1440 = vmatprep.subr.bf16.mxu0 0
    %1441 = vmatpush2.bf16.msra.mxu0 %v1018
    %1442 = vmatprep.mubr.bf16.mxu0 %v381
    %1443 = vmatmul.mubr.bf16.gmra.mxu0 %v367
    %v1444 = vpop.f32.mrf.mxu0
    %v1445 = vadd.f32 %v1405, %v1444
    %v1446 = vpop.f32.mrf.mxu0
    %v1447 = vpop.f32.mrf.mxu0
    %v1448 = vpop.f32.mrf.mxu0
    %1449 = vdwg.mxu0
    %1450 = vmatprep.subr.bf16.mxu0 0
    %1451 = vmatpush1.bf16.msra.mxu0 %v1033
    %1452 = vmatprep.subr.bf16.mxu0 0
    %1453 = vmatpush1.bf16.msra.mxu0 %v1032
    %1454 = vmatprep.subr.bf16.mxu0 0
    %1455 = vmatpush1.bf16.msra.mxu0 %v1031
    %1456 = vmatprep.subr.bf16.mxu0 0
    %1457 = vmatpush1.bf16.msra.mxu0 %v1030
    %1458 = vmatprep.subr.bf16.mxu0 0
    %1459 = vmatpush1.bf16.msra.mxu0 %v1029
    %1460 = vmatprep.subr.bf16.mxu0 0
    %1461 = vmatpush1.bf16.msra.mxu0 %v1028
    %1462 = vmatprep.subr.bf16.mxu0 0
    %1463 = vmatpush1.bf16.msra.mxu0 %v1027
    %1464 = vmatprep.subr.bf16.mxu0 0
    %1465 = vmatpush1.bf16.msra.mxu0 %v1026
    %1466 = vmatprep.subr.bf16.mxu0 0
    %1467 = vmatpush2.bf16.msra.mxu0 %v1041
    %1468 = vmatprep.subr.bf16.mxu0 0
    %1469 = vmatpush2.bf16.msra.mxu0 %v1040
    %1470 = vmatprep.subr.bf16.mxu0 0
    %1471 = vmatpush2.bf16.msra.mxu0 %v1039
    %1472 = vmatprep.subr.bf16.mxu0 0
    %1473 = vmatpush2.bf16.msra.mxu0 %v1038
    %1474 = vmatprep.subr.bf16.mxu0 0
    %1475 = vmatpush2.bf16.msra.mxu0 %v1037
    %1476 = vmatprep.subr.bf16.mxu0 0
    %1477 = vmatpush2.bf16.msra.mxu0 %v1036
    %1478 = vmatprep.subr.bf16.mxu0 0
    %1479 = vmatpush2.bf16.msra.mxu0 %v1035
    %1480 = vmatprep.subr.bf16.mxu0 0
    %1481 = vmatpush2.bf16.msra.mxu0 %v1034
    %1482 = vmatprep.mubr.bf16.mxu0 %v385
    %1483 = vmatmul.mubr.bf16.gmra.mxu0 %v383
    %v1484 = vpop.f32.mrf.mxu0
    %v1485 = vadd.f32 %v1445, %v1484
    %v1486 = vpop.f32.mrf.mxu0
    %v1487 = vpop.f32.mrf.mxu0
    %v1488 = vpop.f32.mrf.mxu0
    %1489 = vdwg.mxu0
    %v1490 = vsub.f32 0.0, %v1485
    %v1491 = vmul.f32 %v1490, 1.442695
    %v1492 = vpow.pop %v1491
    %v1493 = vadd.f32 %v1492, 1.0
    %v1494 = vrcp.pop %v1493
    %vm1495 = vcmask 8192
    %1496 = vst.msk [vmem:[#allocation3] sm:$0x1] %vm1495, %v1494
    // Predicated region
    $region14: #{discriminator_forward.9} parent=1 // pred_check
      _
    $region15: #{discriminator_forward.9} parent=1 // pred_check_branch
      %1498 = sbr.rel (0) target = $region17
    $region16: #{discriminator_forward.9} parent=1 // pred_region
      %s1500 = ssub.s32 16, 16
      %1501 = vsyncadd [#allocation4], %s1500
      %s1503 = sshll.u32 [#allocation3], 4
      %s1504 = int_to_ptr.vmem [resolvable:$true] %s1503
      %1506 = dma.vmem_to_hbm [thread:$0]  %s1504, 16, %s3, [#allocation4]
    $region17: #{discriminator_forward.9} parent=1 // pred_fallthru
      _
    // Predicated region
    $region18: #{discriminator_forward.9} parent=1 // pred_check
      _
    $region19: #{discriminator_forward.9} parent=1 // pred_check_branch
      %1508 = sbr.rel (0) target = $region21
    $region20: #{discriminator_forward.9} parent=1 // pred_region
      %1509 = dma.done [#allocation4], 16
    $region21: #{discriminator_forward.9} parent=1 // pred_fallthru
      _
    %1510 = vsyncpa [#allocation4], 1

</llo_original>
